<compile_context>
chip_gen: v7x
topology: tpu7x:2x2x1
jax: 0.10.0
libtpu: 0.0.40
codegen_flags: <defaults>
</compile_context>

<pallas_src>
import functools

import jax
import jax.numpy as jnp
import numpy as np
from jax import lax
from jax.experimental import pallas as pl
from jax.experimental.pallas import tpu as pltpu

_INV_SQRT2 = np.float32(1.0 / np.sqrt(2.0))


def _gelu_exact(x):
    # exact (erf) GELU, computed in f32 (matches PyTorch nn.GELU default).
    # TODO(synk): on v6e/v7x a bf16/tanh-approx GELU would halve VPU cost and
    # route through the EUP; kept f32 erf for numeric parity (and v5e has no
    # bf16 VPU/EUP anyway).
    return 0.5 * x * (1.0 + lax.erf(x * _INV_SQRT2))


# =========================================================================
# 1) TokenLearner kernel
#    layout per grid step (P images packed along the sublane axis):
#      x    : (P*HW, C)                         bf16
#      for each GF slab (slab-fused GELU):
#        h_s   = x @ w1t[:, slab] + b1[slab]    (P*HW, slab)   f32, one MXU call
#        attn += w2bd[:, slab] . h_s^T          (G, P*HW)      NT matmul, f32 acc
#      attn += b2                               (G, P*HW)
#      out_p = (attn_p . x_p) / HW              (G, C)         lane-dense store
# =========================================================================
def tokenlearner_kernel(x_ref, w1t_ref, b1_ref, w2bd_ref, b2_ref, o_ref,
                        *, HW, P, n_slabs):
    x = x_ref[0]                                                  # (P*HW, C) bf16
    GF = w1t_ref.shape[1]
    slab = GF // n_slabs

    attn = None
    for s in range(n_slabs):                                      # static unroll
        lo = s * slab
        hi = lo + slab
        h = jnp.dot(x, w1t_ref[:, lo:hi],
                    preferred_element_type=jnp.float32)           # (P*HW, slab)
        h = _gelu_exact(h + b1_ref[:, lo:hi])                     # f32, slab-fused GELU
        # block-diag second projection, accumulated across slabs:
        # (G, slab) . (P*HW, slab)^T -> (G, P*HW)
        part = lax.dot_general(w2bd_ref[:, lo:hi], h.astype(jnp.bfloat16),
                               (((1,), (1,)), ((), ())),
                               preferred_element_type=jnp.float32)
        attn = part if attn is None else attn + part

    attn = (attn + b2_ref[...]).astype(jnp.bfloat16)              # (G, P*HW)
    inv_hw = np.float32(1.0 / HW)
    for p in range(P):                                            # static unroll
        a_p = attn[:, p * HW:(p + 1) * HW]                        # (G, HW)
        x_p = x[p * HW:(p + 1) * HW, :]                           # (HW, C)
        o_ref[p] = jnp.dot(a_p, x_p,
                           preferred_element_type=jnp.float32) * inv_hw


def pack_tokenlearner_params(w1, b1, w2, b2):
    """One-time repack (hoisted out of the per-call path, review feedback).

    w1: (G, FC, C), b1: (FC, G), w2: (G, FC), b2: (G, 1).
    """
    G, FC, C = w1.shape
    GF = G * FC
    w1t = w1.reshape(GF, C).T.astype(jnp.bfloat16)                # (C, GF)
    b1row = b1.T.reshape(1, GF).astype(jnp.float32)               # (1, GF) lane-major
    w2bd = (jnp.einsum("ig,gf->igf", jnp.eye(G, dtype=jnp.float32),
                       w2.astype(jnp.float32))
            .reshape(G, GF).astype(jnp.bfloat16))                 # (G, GF) block-diag
    b2col = b2.astype(jnp.float32).reshape(G, 1)                  # (G, 1)
    return dict(w1t=w1t, b1row=b1row, w2bd=w2bd, b2col=b2col)


def token_learner(x_nchw, packed, *, num_output_tokens,
                  images_per_step=4, gf_slab=512):
    """x_nchw: (B, C, H, W) -> (B, C, G)   (matches PyTorch TokenLearner output).

    In BAKU the batch axis is already (bs * num_cam/timesteps) via the
    `b t c h w -> (b t) c h w` rearrange, so B is normally >= images_per_step.
    """
    B, C, H, W = x_nchw.shape
    HW = H * W
    G = num_output_tokens
    GF = packed["w1t"].shape[1]
    P = images_per_step

    # slab size for the fused GELU (must tile GF and stay lane-aligned)
    if gf_slab <= 0 or gf_slab > GF or GF % gf_slab != 0 or gf_slab % 128 != 0:
        gf_slab = GF
    n_slabs = GF // gf_slab

    # cast BEFORE the layout shuffle (halves bytes moved by the XLA transpose)
    xb = x_nchw.astype(jnp.bfloat16)
    B_pad = ((B + P - 1) // P) * P
    if B_pad != B:
        xb = jnp.concatenate(
            [xb, jnp.zeros((B_pad - B, C, H, W), jnp.bfloat16)], axis=0)

    # (B, C, H, W) -> (B, HW, C) -> (B/P, P*HW, C): spatial on sublanes,
    # channels lane-dense, P images stacked per grid step.
    xp = (xb.reshape(B_pad, C, HW)
          .transpose(0, 2, 1)
          .reshape(B_pad // P, P * HW, C))
    S2 = P * HW

    kernel = functools.partial(tokenlearner_kernel, HW=HW, P=P, n_slabs=n_slabs)
    out_gc = pl.pallas_call(
        kernel,
        out_shape=jax.ShapeDtypeStruct((B_pad, G, C), jnp.float32),
        grid=(B_pad // P,),
        in_specs=[
            pl.BlockSpec((1, S2, C), lambda i: (i, 0, 0)),
            pl.BlockSpec((C, GF), lambda i: (0, 0)),
            pl.BlockSpec((1, GF), lambda i: (0, 0)),
            pl.BlockSpec((G, GF), lambda i: (0, 0)),
            pl.BlockSpec((G, 1), lambda i: (0, 0)),
        ],
        out_specs=pl.BlockSpec((P, G, C), lambda i: (i, 0, 0)),
        compiler_params=pltpu.CompilerParams(
            dimension_semantics=("parallel",)),   # batch axis shards across TCs (v7x)
    )(xp, packed["w1t"], packed["b1row"], packed["w2bd"], packed["b2col"])

    # (B, G, C) -> (B, C, G): cheap XLA transpose; in-kernel stores stay lane-dense
    return out_gc[:B].transpose(0, 2, 1)


# =========================================================================
# 2) Discretized MLP head kernel
#    feat   = Linear -> ReLU -> Linear -> ReLU -> Linear          (share)
#    logits = Linear(feat) -> (R, A*K)                            (bin head)
#    argmax/de-discretization happens in the wrapper (no serial epilogue,
#    no masked narrow-lane store, no NaN argmax corner case).
# =========================================================================
def head_kernel(x_ref, w1_ref, b1_ref, w2_ref, b2_ref, w3_ref, b3_ref,
                wb_ref, bb_ref, logits_ref):
    x = x_ref[...]                                                # (R, IN) bf16
    h = jnp.dot(x, w1_ref[...], preferred_element_type=jnp.float32) + b1_ref[...]
    h = jnp.maximum(h, 0.0).astype(jnp.bfloat16)
    h = jnp.dot(h, w2_ref[...], preferred_element_type=jnp.float32) + b2_ref[...]
    h = jnp.maximum(h, 0.0).astype(jnp.bfloat16)
    feat = jnp.dot(h, w3_ref[...], preferred_element_type=jnp.float32) + b3_ref[...]
    logits_ref[...] = (jnp.dot(feat.astype(jnp.bfloat16), wb_ref[...],
                               preferred_element_type=jnp.float32) + bb_ref[...])


def pack_head_params(params):
    """One-time bf16/f32 repack of the head weights (hoisted out of the call)."""
    packed = {k: params[k].astype(jnp.bfloat16) for k in ("w1", "w2", "w3", "wb")}
    packed.update({k: params[k].astype(jnp.float32) for k in ("b1", "b2", "b3", "bb")})
    return packed


def discretized_head(x_ntd, packed, amin, amax, *, nbins):
    """x_ntd: (N, T, D) -> (continuous (N,T,A), bin_logits (N,T,A,K))."""
    N, T, D = x_ntd.shape
    A = amax.shape[-1]
    K = nbins
    R = N * T
    x2 = x_ntd.reshape(R, D).astype(jnp.bfloat16)

    vmem = pltpu.MemorySpace.VMEM
    # R = N*T is tiny here; whole problem is one VMEM-resident call.
    # TODO(synk): add a grid over R (row tiles in multiples of 8) if N*T grows >128.
    logits = pl.pallas_call(
        head_kernel,
        out_shape=jax.ShapeDtypeStruct((R, A * K), jnp.float32),
        in_specs=[pl.BlockSpec(memory_space=vmem)] * 9,
        out_specs=pl.BlockSpec(memory_space=vmem),
    )(x2, packed["w1"], packed["b1"], packed["w2"], packed["b2"],
      packed["w3"], packed["b3"], packed["wb"], packed["bb"])

    logits4 = logits.reshape(N, T, A, K)
    # discretize-to-continuous in the wrapper (review feedback)
    arg = jnp.argmax(logits4, axis=-1).astype(jnp.float32)        # (N, T, A)
    scale = (amax - amin).astype(jnp.float32) * (1.0 / (K - 1))
    cont = arg * scale.reshape(1, 1, A) + amin.astype(jnp.float32).reshape(1, 1, A)
    return cont, logits4


# =========================================================================
# pure-JAX f32 references (sanity checks)
# =========================================================================
def token_learner_ref(x_nchw, w1, b1, w2, b2, G):
    B, C, H, W = x_nchw.shape
    xf = x_nchw.reshape(B, C, H * W)
    rows = []
    for g in range(G):
        h = jnp.einsum("fc,bcs->bfs", w1[g], xf) + b1[:, g][None, :, None]
        h = _gelu_exact(h)
        a = jnp.einsum("f,bfs->bs", w2[g], h) + b2[g, 0]
        rows.append(a)
    attn = jnp.stack(rows, axis=1)                                # (B, G, S)
    return jnp.einsum("bcs,bgs->bcg", xf, attn) / (H * W)


def head_ref(x_ntd, p, nbins):
    N, T, D = x_ntd.shape
    A = p["amax"].shape[1]
    x2 = x_ntd.reshape(N * T, D)
    h = jnp.maximum(x2 @ p["w1"] + p["b1"], 0.0)
    h = jnp.maximum(h @ p["w2"] + p["b2"], 0.0)
    feat = h @ p["w3"] + p["b3"]
    logits = feat @ p["wb"] + p["bb"]
    logits4 = logits.reshape(N, T, A, nbins)
    arg = jnp.argmax(logits4, axis=-1).astype(jnp.float32)
    cont = arg / (nbins - 1) * (p["amax"][0] - p["amin"][0]) + p["amin"][0]
    return cont, logits4


# =========================================================================
if __name__ == "__main__":
    key = jax.random.PRNGKey(0)
    ks = jax.random.split(key, 12)

    # ---- TokenLearner-style image-token pooling ----
    # B = 8 images = bs(2) x views/timesteps(4) folded, as BAKU's
    # `b t c h w -> (b t) c h w` rearrange implies (grid of 2 parallel steps
    # with 4 images packed per step).
    B, C, H, W = 8, 128, 8, 8
    G = 8                      # num output tokens
    FF = 2
    FC = C * FF                # per-group inner dim

    x_img = jax.random.normal(ks[0], (B, C, H, W), jnp.float32)
    tl_w1 = jax.random.normal(ks[1], (G, FC, C), jnp.float32) * 0.05
    tl_b1 = jax.random.normal(ks[2], (FC, G), jnp.float32) * 0.05
    tl_w2 = jax.random.normal(ks[3], (G, FC), jnp.float32) * 0.05
    tl_b2 = jax.random.normal(ks[4], (G, 1), jnp.float32) * 0.05

    tl_packed = pack_tokenlearner_params(tl_w1, tl_b1, tl_w2, tl_b2)
    tok = jax.block_until_ready(
        token_learner(x_img, tl_packed, num_output_tokens=G))
    tok_ref = token_learner_ref(x_img, tl_w1, tl_b1, tl_w2, tl_b2, G)
    # bf16 MXU feed (x, weights, attn) vs f32 reference -> loosened tolerance
    np.testing.assert_allclose(np.asarray(tok), np.asarray(tok_ref),
                               rtol=2e-2, atol=1e-2)

    # ---- Discretized MLP action head ----
    N, T = 2, 8
    HID = 32                   # hidden_dim (= input_size = hidden_size)
    A = 8                      # action dim
    K = 256                    # nbins

    feats = jax.random.normal(ks[5], (N, T, HID), jnp.float32)
    head_params = dict(
        w1=jax.random.normal(ks[6], (HID, HID), jnp.float32) * 0.1,
        b1=jnp.zeros((1, HID), jnp.float32),
        w2=jax.random.normal(ks[7], (HID, HID), jnp.float32) * 0.1,
        b2=jnp.zeros((1, HID), jnp.float32),
        w3=jax.random.normal(ks[8], (HID, HID), jnp.float32) * 0.1,
        b3=jnp.zeros((1, HID), jnp.float32),
        wb=jax.random.normal(ks[9], (HID, A * K), jnp.float32) * 0.1,
        bb=jax.random.normal(ks[10], (1, A * K), jnp.float32) * 0.01,
        amax=jnp.linspace(0.5, 1.0, A, dtype=jnp.float32).reshape(1, A),
        amin=jnp.linspace(-1.0, -0.5, A, dtype=jnp.float32).reshape(1, A),
    )

    hd_packed = pack_head_params(head_params)
    cont, logits = discretized_head(feats, hd_packed,
                                    head_params["amin"], head_params["amax"],
                                    nbins=K)
    cont = jax.block_until_ready(cont)
    logits = jax.block_until_ready(logits)

    # logits: bf16 kernel vs f32 reference (loose tolerance)
    _, logits_ref = head_ref(feats, head_params, K)
    np.testing.assert_allclose(np.asarray(logits), np.asarray(logits_ref),
                               rtol=5e-2, atol=2e-2)

    # cont: check the wrapper discretization exactly against the kernel's own
    # logits (avoids spurious failures from bf16-induced argmax flips near ties)
    arg_chk = jnp.argmax(np.asarray(logits).reshape(N * T, A, K), axis=-1)
    scale_chk = (head_params["amax"] - head_params["amin"]) * (1.0 / (K - 1))
    cont_chk = arg_chk.astype(jnp.float32) * scale_chk + head_params["amin"]
    np.testing.assert_allclose(np.asarray(cont.reshape(N * T, A)),
                               np.asarray(cont_chk), rtol=1e-5, atol=1e-5)
    assert np.all(np.isfinite(np.asarray(cont)))

    print("KERNEL_OK")
</pallas_src>

<mosaic_0001>
module attributes {stable_mosaic.version = 11 : i64} {
  func.func @tokenlearner_kernel(%arg0: i32, %arg1: memref<1x256x128xbf16, #tpu.memory_space<vmem>>, %arg2: memref<128x2048xbf16, #tpu.memory_space<vmem>>, %arg3: memref<1x2048xf32, #tpu.memory_space<vmem>>, %arg4: memref<8x2048xbf16, #tpu.memory_space<vmem>>, %arg5: memref<8x1xf32, #tpu.memory_space<vmem>>, %arg6: memref<4x8x128xf32, #tpu.memory_space<vmem>>) attributes {dimension_semantics = [#tpu.dimension_semantics<parallel>], iteration_bounds = array<i64: 2>, scalar_prefetch = 0 : i64, scratch_operands = 0 : i64, tpu.core_type = #tpu.core_type<tc>, window_params = [{transform_indices = @transform_0, window_bounds = array<i64: 1, 256, 128>}, {pipeline_mode = #tpu.pipeline_mode<synchronous>, transform_indices = @transform_1, window_bounds = array<i64: 128, 2048>}, {pipeline_mode = #tpu.pipeline_mode<synchronous>, transform_indices = @transform_2, window_bounds = array<i64: 1, 2048>}, {pipeline_mode = #tpu.pipeline_mode<synchronous>, transform_indices = @transform_3, window_bounds = array<i64: 8, 2048>}, {pipeline_mode = #tpu.pipeline_mode<synchronous>, transform_indices = @transform_4, window_bounds = array<i64: 8, 1>}, {transform_indices = @transform_5, window_bounds = array<i64: 4, 8, 128>}]} {
    %c0 = arith.constant 0 : index
    %c0_0 = arith.constant 0 : index
    %c0_1 = arith.constant 0 : index
    %0 = vector.load %arg1[%c0, %c0_0, %c0_1] : memref<1x256x128xbf16, #tpu.memory_space<vmem>>, vector<1x256x128xbf16>
    %1 = vector.shape_cast %0 : vector<1x256x128xbf16> to vector<256x128xbf16>
    %c0_2 = arith.constant 0 : index
    %c0_3 = arith.constant 0 : index
    %2 = vector.load %arg2[%c0_2, %c0_3] : memref<128x2048xbf16, #tpu.memory_space<vmem>>, vector<128x512xbf16>
    %cst = arith.constant dense<0.000000e+00> : vector<256x512xf32>
    %3 = tpu.matmul %1, %2, %cst {dimension_numbers = #tpu.dot_dimension_numbers<[1], [0], [0], [1], [0, 0, 1, 1], [], []>} : vector<256x128xbf16>, vector<128x512xbf16>, vector<256x512xf32> -> vector<256x512xf32>
    %c0_4 = arith.constant 0 : index
    %c0_5 = arith.constant 0 : index
    %4 = vector.load %arg3[%c0_4, %c0_5] : memref<1x2048xf32, #tpu.memory_space<vmem>>, vector<1x512xf32>
    %5 = vector.broadcast %4 : vector<1x512xf32> to vector<256x512xf32>
    %6 = arith.addf %3, %5 : vector<256x512xf32>
    %cst_6 = arith.constant 5.000000e-01 : f32
    %7 = vector.broadcast %cst_6 : f32 to vector<256x512xf32>
    %8 = arith.mulf %7, %6 : vector<256x512xf32>
    %cst_7 = arith.constant 0.707106769 : f32
    %9 = vector.broadcast %cst_7 : f32 to vector<256x512xf32>
    %10 = arith.mulf %6, %9 : vector<256x512xf32>
    %11 = math.erf %10 : vector<256x512xf32>
    %cst_8 = arith.constant 1.000000e+00 : f32
    %12 = vector.broadcast %cst_8 : f32 to vector<256x512xf32>
    %13 = arith.addf %12, %11 : vector<256x512xf32>
    %14 = arith.mulf %8, %13 : vector<256x512xf32>
    %c0_9 = arith.constant 0 : index
    %c0_10 = arith.constant 0 : index
    %15 = vector.load %arg4[%c0_9, %c0_10] : memref<8x2048xbf16, #tpu.memory_space<vmem>>, vector<8x512xbf16>
    %16 = arith.truncf %14 : vector<256x512xf32> to vector<256x512xbf16>
    %cst_11 = arith.constant dense<0.000000e+00> : vector<8x256xf32>
    %17 = tpu.matmul %15, %16, %cst_11 {dimension_numbers = #tpu.dot_dimension_numbers<[1], [1], [0], [0], [0, 0, 1, 0], [], []>} : vector<8x512xbf16>, vector<256x512xbf16>, vector<8x256xf32> -> vector<8x256xf32>
    %c0_12 = arith.constant 0 : index
    %c512 = arith.constant 512 : index
    %18 = vector.load %arg2[%c0_12, %c512] : memref<128x2048xbf16, #tpu.memory_space<vmem>>, vector<128x512xbf16>
    %cst_13 = arith.constant dense<0.000000e+00> : vector<256x512xf32>
    %19 = tpu.matmul %1, %18, %cst_13 {dimension_numbers = #tpu.dot_dimension_numbers<[1], [0], [0], [1], [0, 0, 1, 1], [], []>} : vector<256x128xbf16>, vector<128x512xbf16>, vector<256x512xf32> -> vector<256x512xf32>
    %c0_14 = arith.constant 0 : index
    %c512_15 = arith.constant 512 : index
    %20 = vector.load %arg3[%c0_14, %c512_15] : memref<1x2048xf32, #tpu.memory_space<vmem>>, vector<1x512xf32>
    %21 = vector.broadcast %20 : vector<1x512xf32> to vector<256x512xf32>
    %22 = arith.addf %19, %21 : vector<256x512xf32>
    %cst_16 = arith.constant 5.000000e-01 : f32
    %23 = vector.broadcast %cst_16 : f32 to vector<256x512xf32>
    %24 = arith.mulf %23, %22 : vector<256x512xf32>
    %cst_17 = arith.constant 0.707106769 : f32
    %25 = vector.broadcast %cst_17 : f32 to vector<256x512xf32>
    %26 = arith.mulf %22, %25 : vector<256x512xf32>
    %27 = math.erf %26 : vector<256x512xf32>
    %cst_18 = arith.constant 1.000000e+00 : f32
    %28 = vector.broadcast %cst_18 : f32 to vector<256x512xf32>
    %29 = arith.addf %28, %27 : vector<256x512xf32>
    %30 = arith.mulf %24, %29 : vector<256x512xf32>
    %c0_19 = arith.constant 0 : index
    %c512_20 = arith.constant 512 : index
    %31 = vector.load %arg4[%c0_19, %c512_20] : memref<8x2048xbf16, #tpu.memory_space<vmem>>, vector<8x512xbf16>
    %32 = arith.truncf %30 : vector<256x512xf32> to vector<256x512xbf16>
    %cst_21 = arith.constant dense<0.000000e+00> : vector<8x256xf32>
    %33 = tpu.matmul %31, %32, %cst_21 {dimension_numbers = #tpu.dot_dimension_numbers<[1], [1], [0], [0], [0, 0, 1, 0], [], []>} : vector<8x512xbf16>, vector<256x512xbf16>, vector<8x256xf32> -> vector<8x256xf32>
    %34 = arith.addf %17, %33 : vector<8x256xf32>
    %c0_22 = arith.constant 0 : index
    %c1024 = arith.constant 1024 : index
    %35 = vector.load %arg2[%c0_22, %c1024] : memref<128x2048xbf16, #tpu.memory_space<vmem>>, vector<128x512xbf16>
    %cst_23 = arith.constant dense<0.000000e+00> : vector<256x512xf32>
    %36 = tpu.matmul %1, %35, %cst_23 {dimension_numbers = #tpu.dot_dimension_numbers<[1], [0], [0], [1], [0, 0, 1, 1], [], []>} : vector<256x128xbf16>, vector<128x512xbf16>, vector<256x512xf32> -> vector<256x512xf32>
    %c0_24 = arith.constant 0 : index
    %c1024_25 = arith.constant 1024 : index
    %37 = vector.load %arg3[%c0_24, %c1024_25] : memref<1x2048xf32, #tpu.memory_space<vmem>>, vector<1x512xf32>
    %38 = vector.broadcast %37 : vector<1x512xf32> to vector<256x512xf32>
    %39 = arith.addf %36, %38 : vector<256x512xf32>
    %cst_26 = arith.constant 5.000000e-01 : f32
    %40 = vector.broadcast %cst_26 : f32 to vector<256x512xf32>
    %41 = arith.mulf %40, %39 : vector<256x512xf32>
    %cst_27 = arith.constant 0.707106769 : f32
    %42 = vector.broadcast %cst_27 : f32 to vector<256x512xf32>
    %43 = arith.mulf %39, %42 : vector<256x512xf32>
    %44 = math.erf %43 : vector<256x512xf32>
    %cst_28 = arith.constant 1.000000e+00 : f32
    %45 = vector.broadcast %cst_28 : f32 to vector<256x512xf32>
    %46 = arith.addf %45, %44 : vector<256x512xf32>
    %47 = arith.mulf %41, %46 : vector<256x512xf32>
    %c0_29 = arith.constant 0 : index
    %c1024_30 = arith.constant 1024 : index
    %48 = vector.load %arg4[%c0_29, %c1024_30] : memref<8x2048xbf16, #tpu.memory_space<vmem>>, vector<8x512xbf16>
    %49 = arith.truncf %47 : vector<256x512xf32> to vector<256x512xbf16>
    %cst_31 = arith.constant dense<0.000000e+00> : vector<8x256xf32>
    %50 = tpu.matmul %48, %49, %cst_31 {dimension_numbers = #tpu.dot_dimension_numbers<[1], [1], [0], [0], [0, 0, 1, 0], [], []>} : vector<8x512xbf16>, vector<256x512xbf16>, vector<8x256xf32> -> vector<8x256xf32>
    %51 = arith.addf %34, %50 : vector<8x256xf32>
    %c0_32 = arith.constant 0 : index
    %c1536 = arith.constant 1536 : index
    %52 = vector.load %arg2[%c0_32, %c1536] : memref<128x2048xbf16, #tpu.memory_space<vmem>>, vector<128x512xbf16>
    %cst_33 = arith.constant dense<0.000000e+00> : vector<256x512xf32>
    %53 = tpu.matmul %1, %52, %cst_33 {dimension_numbers = #tpu.dot_dimension_numbers<[1], [0], [0], [1], [0, 0, 1, 1], [], []>} : vector<256x128xbf16>, vector<128x512xbf16>, vector<256x512xf32> -> vector<256x512xf32>
    %c0_34 = arith.constant 0 : index
    %c1536_35 = arith.constant 1536 : index
    %54 = vector.load %arg3[%c0_34, %c1536_35] : memref<1x2048xf32, #tpu.memory_space<vmem>>, vector<1x512xf32>
    %55 = vector.broadcast %54 : vector<1x512xf32> to vector<256x512xf32>
    %56 = arith.addf %53, %55 : vector<256x512xf32>
    %cst_36 = arith.constant 5.000000e-01 : f32
    %57 = vector.broadcast %cst_36 : f32 to vector<256x512xf32>
    %58 = arith.mulf %57, %56 : vector<256x512xf32>
    %cst_37 = arith.constant 0.707106769 : f32
    %59 = vector.broadcast %cst_37 : f32 to vector<256x512xf32>
    %60 = arith.mulf %56, %59 : vector<256x512xf32>
    %61 = math.erf %60 : vector<256x512xf32>
    %cst_38 = arith.constant 1.000000e+00 : f32
    %62 = vector.broadcast %cst_38 : f32 to vector<256x512xf32>
    %63 = arith.addf %62, %61 : vector<256x512xf32>
    %64 = arith.mulf %58, %63 : vector<256x512xf32>
    %c0_39 = arith.constant 0 : index
    %c1536_40 = arith.constant 1536 : index
    %65 = vector.load %arg4[%c0_39, %c1536_40] : memref<8x2048xbf16, #tpu.memory_space<vmem>>, vector<8x512xbf16>
    %66 = arith.truncf %64 : vector<256x512xf32> to vector<256x512xbf16>
    %cst_41 = arith.constant dense<0.000000e+00> : vector<8x256xf32>
    %67 = tpu.matmul %65, %66, %cst_41 {dimension_numbers = #tpu.dot_dimension_numbers<[1], [1], [0], [0], [0, 0, 1, 0], [], []>} : vector<8x512xbf16>, vector<256x512xbf16>, vector<8x256xf32> -> vector<8x256xf32>
    %68 = arith.addf %51, %67 : vector<8x256xf32>
    %c0_42 = arith.constant 0 : index
    %c0_43 = arith.constant 0 : index
    %69 = vector.load %arg5[%c0_42, %c0_43] : memref<8x1xf32, #tpu.memory_space<vmem>>, vector<8x1xf32>
    %70 = vector.broadcast %69 : vector<8x1xf32> to vector<8x256xf32>
    %71 = arith.addf %68, %70 : vector<8x256xf32>
    %72 = arith.truncf %71 : vector<8x256xf32> to vector<8x256xbf16>
    %73 = vector.extract_strided_slice %72 {offsets = [0, 0], sizes = [8, 64], strides = [1, 1]} : vector<8x256xbf16> to vector<8x64xbf16>
    %74 = vector.extract_strided_slice %1 {offsets = [0, 0], sizes = [64, 128], strides = [1, 1]} : vector<256x128xbf16> to vector<64x128xbf16>
    %cst_44 = arith.constant dense<0.000000e+00> : vector<8x128xf32>
    %75 = tpu.matmul %73, %74, %cst_44 {dimension_numbers = #tpu.dot_dimension_numbers<[1], [0], [0], [1], [0, 0, 1, 1], [], []>} : vector<8x64xbf16>, vector<64x128xbf16>, vector<8x128xf32> -> vector<8x128xf32>
    %cst_45 = arith.constant 1.562500e-02 : f32
    %76 = vector.broadcast %cst_45 : f32 to vector<8x128xf32>
    %77 = arith.mulf %75, %76 : vector<8x128xf32>
    %c0_46 = arith.constant 0 : index
    %c0_47 = arith.constant 0 : index
    %c0_48 = arith.constant 0 : index
    %78 = vector.load %arg6[%c0_46, %c0_47, %c0_48] : memref<4x8x128xf32, #tpu.memory_space<vmem>>, vector<1x8x128xf32>
    %79 = vector.shape_cast %78 : vector<1x8x128xf32> to vector<8x128xf32>
    %80 = vector.shape_cast %77 : vector<8x128xf32> to vector<1x8x128xf32>
    tpu.vector_store %arg6[%c0_46, %c0_47, %c0_48], %80 {strides = array<i32>} : memref<4x8x128xf32, #tpu.memory_space<vmem>>, vector<1x8x128xf32>,
    %81 = vector.extract_strided_slice %72 {offsets = [0, 64], sizes = [8, 64], strides = [1, 1]} : vector<8x256xbf16> to vector<8x64xbf16>
    %82 = vector.extract_strided_slice %1 {offsets = [64, 0], sizes = [64, 128], strides = [1, 1]} : vector<256x128xbf16> to vector<64x128xbf16>
    %cst_49 = arith.constant dense<0.000000e+00> : vector<8x128xf32>
    %83 = tpu.matmul %81, %82, %cst_49 {dimension_numbers = #tpu.dot_dimension_numbers<[1], [0], [0], [1], [0, 0, 1, 1], [], []>} : vector<8x64xbf16>, vector<64x128xbf16>, vector<8x128xf32> -> vector<8x128xf32>
    %cst_50 = arith.constant 1.562500e-02 : f32
    %84 = vector.broadcast %cst_50 : f32 to vector<8x128xf32>
    %85 = arith.mulf %83, %84 : vector<8x128xf32>
    %c1 = arith.constant 1 : index
    %c0_51 = arith.constant 0 : index
    %c0_52 = arith.constant 0 : index
    %86 = vector.load %arg6[%c1, %c0_51, %c0_52] : memref<4x8x128xf32, #tpu.memory_space<vmem>>, vector<1x8x128xf32>
    %87 = vector.shape_cast %86 : vector<1x8x128xf32> to vector<8x128xf32>
    %88 = vector.shape_cast %85 : vector<8x128xf32> to vector<1x8x128xf32>
    tpu.vector_store %arg6[%c1, %c0_51, %c0_52], %88 {strides = array<i32>} : memref<4x8x128xf32, #tpu.memory_space<vmem>>, vector<1x8x128xf32>,
    %89 = vector.extract_strided_slice %72 {offsets = [0, 128], sizes = [8, 64], strides = [1, 1]} : vector<8x256xbf16> to vector<8x64xbf16>
    %90 = vector.extract_strided_slice %1 {offsets = [128, 0], sizes = [64, 128], strides = [1, 1]} : vector<256x128xbf16> to vector<64x128xbf16>
    %cst_53 = arith.constant dense<0.000000e+00> : vector<8x128xf32>
    %91 = tpu.matmul %89, %90, %cst_53 {dimension_numbers = #tpu.dot_dimension_numbers<[1], [0], [0], [1], [0, 0, 1, 1], [], []>} : vector<8x64xbf16>, vector<64x128xbf16>, vector<8x128xf32> -> vector<8x128xf32>
    %cst_54 = arith.constant 1.562500e-02 : f32
    %92 = vector.broadcast %cst_54 : f32 to vector<8x128xf32>
    %93 = arith.mulf %91, %92 : vector<8x128xf32>
    %c2 = arith.constant 2 : index
    %c0_55 = arith.constant 0 : index
    %c0_56 = arith.constant 0 : index
    %94 = vector.load %arg6[%c2, %c0_55, %c0_56] : memref<4x8x128xf32, #tpu.memory_space<vmem>>, vector<1x8x128xf32>
    %95 = vector.shape_cast %94 : vector<1x8x128xf32> to vector<8x128xf32>
    %96 = vector.shape_cast %93 : vector<8x128xf32> to vector<1x8x128xf32>
    tpu.vector_store %arg6[%c2, %c0_55, %c0_56], %96 {strides = array<i32>} : memref<4x8x128xf32, #tpu.memory_space<vmem>>, vector<1x8x128xf32>,
    %97 = vector.extract_strided_slice %72 {offsets = [0, 192], sizes = [8, 64], strides = [1, 1]} : vector<8x256xbf16> to vector<8x64xbf16>
    %98 = vector.extract_strided_slice %1 {offsets = [192, 0], sizes = [64, 128], strides = [1, 1]} : vector<256x128xbf16> to vector<64x128xbf16>
    %cst_57 = arith.constant dense<0.000000e+00> : vector<8x128xf32>
    %99 = tpu.matmul %97, %98, %cst_57 {dimension_numbers = #tpu.dot_dimension_numbers<[1], [0], [0], [1], [0, 0, 1, 1], [], []>} : vector<8x64xbf16>, vector<64x128xbf16>, vector<8x128xf32> -> vector<8x128xf32>
    %cst_58 = arith.constant 1.562500e-02 : f32
    %100 = vector.broadcast %cst_58 : f32 to vector<8x128xf32>
    %101 = arith.mulf %99, %100 : vector<8x128xf32>
    %c3 = arith.constant 3 : index
    %c0_59 = arith.constant 0 : index
    %c0_60 = arith.constant 0 : index
    %102 = vector.load %arg6[%c3, %c0_59, %c0_60] : memref<4x8x128xf32, #tpu.memory_space<vmem>>, vector<1x8x128xf32>
    %103 = vector.shape_cast %102 : vector<1x8x128xf32> to vector<8x128xf32>
    %104 = vector.shape_cast %101 : vector<8x128xf32> to vector<1x8x128xf32>
    tpu.vector_store %arg6[%c3, %c0_59, %c0_60], %104 {strides = array<i32>} : memref<4x8x128xf32, #tpu.memory_space<vmem>>, vector<1x8x128xf32>,
    return
  }
  func.func @transform_0(%arg0: i32) -> (i32, i32, i32) {
    %c0_i32 = arith.constant 0 : i32
    %c0_i32_0 = arith.constant 0 : i32
    %c0_i32_1 = arith.constant 0 : i32
    return %arg0, %c0_i32, %c0_i32_0 : i32, i32, i32
  }
  func.func @transform_1(%arg0: i32) -> (i32, i32) {
    %c0_i32 = arith.constant 0 : i32
    %c0_i32_0 = arith.constant 0 : i32
    %c0_i32_1 = arith.constant 0 : i32
    return %c0_i32, %c0_i32_0 : i32, i32
  }
  func.func @transform_2(%arg0: i32) -> (i32, i32) {
    %c0_i32 = arith.constant 0 : i32
    %c0_i32_0 = arith.constant 0 : i32
    %c0_i32_1 = arith.constant 0 : i32
    return %c0_i32, %c0_i32_0 : i32, i32
  }
  func.func @transform_3(%arg0: i32) -> (i32, i32) {
    %c0_i32 = arith.constant 0 : i32
    %c0_i32_0 = arith.constant 0 : i32
    %c0_i32_1 = arith.constant 0 : i32
    return %c0_i32, %c0_i32_0 : i32, i32
  }
  func.func @transform_4(%arg0: i32) -> (i32, i32) {
    %c0_i32 = arith.constant 0 : i32
    %c0_i32_0 = arith.constant 0 : i32
    %c0_i32_1 = arith.constant 0 : i32
    return %c0_i32, %c0_i32_0 : i32, i32
  }
  func.func @transform_5(%arg0: i32) -> (i32, i32, i32) {
    %c0_i32 = arith.constant 0 : i32
    %c0_i32_0 = arith.constant 0 : i32
    %c0_i32_1 = arith.constant 0 : i32
    return %arg0, %c0_i32, %c0_i32_0 : i32, i32, i32
  }
}

</mosaic_0001>

<llo_original>
// kernel: tpu_custom_call.1
$region0: #{tpu_custom_call.1}
  #allocation0 [shape = 'u32[]', space=smem, size = 0x4, offset = 0x4, fixed_abs, tag = 'smem constant byte address 0x4 - core index']
  #allocation1 [shape = 'u32[144,128]{1,0:T(1,128)}', space=vmem, size = 0x12000, scoped, tag = 'internal scratch']
  %s0 = inlined_call_operand.hbm [shape: bf16[2,256,128], index: 0, kind: input, shape index: {}]
  %s1 = inlined_call_operand.hbm [shape: bf16[128,2048], index: 1, kind: input, shape index: {}]
  %s2 = inlined_call_operand.vmem [shape: f32[1,2048], index: 2, kind: input, shape index: {}]
  %s3 = inlined_call_operand.hbm [shape: bf16[8,2048], index: 3, kind: input, shape index: {}]
  %s4 = inlined_call_operand.vmem [shape: f32[8,1], index: 4, kind: input, shape index: {}]
  %s5 = inlined_call_operand.hbm [shape: f32[8,8,128], index: 5, kind: output, shape index: {}]
  %s6 = sld [smem:[#allocation0]]
  $region65: #{tpu_custom_call.1} parent=0
    _
  %s8 = ssub.s32 1, %s6
  %s9 = scalar_select 0, %s8, %s6
  $region1: #{tpu_custom_call.1} parent=0
    #allocation2 [shape = 'u8[131072]{0}', space=vmem, size = 0x20000, scoped, tag = 'input window, operand 0']
    #allocation3 [shape = 's32[2]{0}', space=sflag, size = 0x8, scoped, tag = 'scoped memory for tpu_custom_call.1']
    #allocation4 [shape = 's32[2]{0}', space=sflag, size = 0x8, scoped, tag = 'scoped memory for tpu_custom_call.1']
    #allocation5 [shape = 'u8[524288]{0}', space=vmem, size = 0x80000, scoped, tag = 'input window, operand 1, single buffered']
    #allocation6 [shape = 's32[1]{0}', space=sflag, size = 0x4, scoped, tag = 'scoped memory for tpu_custom_call.1']
    #allocation7 [shape = 'u8[32768]{0}', space=vmem, size = 0x8000, scoped, tag = 'input window, operand 3, single buffered']
    #allocation8 [shape = 'u8[32768]{0}', space=vmem, size = 0x8000, scoped, tag = 'output window, operand 0']
    %10 = vsyncpa [#allocation3], 0
    %s11 = scalar_lea.sflag [#allocation3], 1
    %12 = vsyncpa %s11, 0
    %13 = vsyncpa [#allocation6], 0
    %14 = vsyncpa [#allocation4], 0
    %s15 = scalar_lea.sflag [#allocation4], 1
    %16 = vsyncpa %s15, 0
    loop: start=0, step=1, limit=4
    $region2: #{tpu_custom_call.1} parent=1 // loop_pre_header
      _
    $region3: #{tpu_custom_call.1} parent=1 // loop_header
      %s18 = sphi 0, %s22
      %p19 = scmp.ge.s32.totalorder %s18, 4
      %s28 = sphi 0, %s30
      %s31 = sphi 0, %s28
      %s32 = sphi 0, %s31
      %s48 = sphi 0, %s32
      %s52 = sphi 0, %s52
      %s54 = sphi 0, %s52
      %s55 = sphi 0, %s54
      %s69 = sphi 0, %s55
      %s73 = sphi 0, %s73
      %s75 = sphi 0, %s73
      %s76 = sphi 0, %s75
      %s90 = sphi 0, %s76
      %s94 = sphi 0, %s94
      %s96 = sphi 0, %s94
      %s97 = sphi 0, %s96
      %s111 = sphi 0, %s97
      %s115 = sphi 0, %s115
      %s117 = sphi 0, %s115
      %s118 = sphi 0, %s117
      %s132 = sphi 0, %s118
      %s138 = sphi 0, %s140
      %s141 = sphi 0, %s138
      %s142 = sphi 0, %s141
      %s158 = sphi 0, %s142
    $region4: #{tpu_custom_call.1} parent=1 // loop_header_branch
      %21 = sbr.rel (%p19) target = $region8
    $region5: #{tpu_custom_call.1} parent=1 // loop_body
      %s23 = ssub.s32 %s18, 1
      %s24 = ssub.s32 %s18, 2
      %s25 = sadd.s32 %s18, 1
      %s26 = ssub.s32 %s18, %s25
      %p27 = scmp.eq.s32.totalorder %s26, 0
      %s29 = sadd.s32 %s28, 1
      %s30 = scalar_select %p27, %s28, %s29
      %p33 = pneg %p27
      %p34 = scmp.eq.s32.totalorder %s18, 1
      %p35 = por %p33, %p34
      %p36 = scmp.ne.s32.totalorder %s28, %s31
      %p37 = scmp.eq.s32.totalorder %s18, 0
      %p38 = por %p36, %p37
      %p39 = scmp.ne.s32.totalorder %s28, %s31
      %p40 = scmp.eq.s32.totalorder %s23, 1
      %p41 = por %p39, %p40
      %p42 = scmp.ne.s32.totalorder %s31, %s32
      %p43 = scmp.eq.s32.totalorder %s23, 0
      %p44 = por %p42, %p43
      %p45 = scmp.ne.s32.totalorder %s31, %s32
      %p46 = scmp.eq.s32.totalorder %s24, 1
      %p47 = por %p45, %p46
      %p49 = scmp.ne.s32.totalorder %s32, %s48
      %p50 = scmp.eq.s32.totalorder %s24, 0
      %p51 = por %p49, %p50
      %s53 = sadd.s32 %s52, 1
      %p56 = scmp.eq.s32.totalorder %s18, 1
      %p57 = scmp.ne.s32.totalorder %s52, %s54
      %p58 = scmp.eq.s32.totalorder %s18, 0
      %p59 = por %p57, %p58
      %p60 = scmp.ne.s32.totalorder %s52, %s54
      %p61 = scmp.eq.s32.totalorder %s23, 1
      %p62 = por %p60, %p61
      %p63 = scmp.ne.s32.totalorder %s54, %s55
      %p64 = scmp.eq.s32.totalorder %s23, 0
      %p65 = por %p63, %p64
      %p66 = scmp.ne.s32.totalorder %s54, %s55
      %p67 = scmp.eq.s32.totalorder %s24, 1
      %p68 = por %p66, %p67
      %p70 = scmp.ne.s32.totalorder %s55, %s69
      %p71 = scmp.eq.s32.totalorder %s24, 0
      %p72 = por %p70, %p71
      %s74 = sadd.s32 %s73, 1
      %p77 = scmp.eq.s32.totalorder %s18, 1
      %p78 = scmp.ne.s32.totalorder %s73, %s75
      %p79 = scmp.eq.s32.totalorder %s18, 0
      %p80 = por %p78, %p79
      %p81 = scmp.ne.s32.totalorder %s73, %s75
      %p82 = scmp.eq.s32.totalorder %s23, 1
      %p83 = por %p81, %p82
      %p84 = scmp.ne.s32.totalorder %s75, %s76
      %p85 = scmp.eq.s32.totalorder %s23, 0
      %p86 = por %p84, %p85
      %p87 = scmp.ne.s32.totalorder %s75, %s76
      %p88 = scmp.eq.s32.totalorder %s24, 1
      %p89 = por %p87, %p88
      %p91 = scmp.ne.s32.totalorder %s76, %s90
      %p92 = scmp.eq.s32.totalorder %s24, 0
      %p93 = por %p91, %p92
      %s95 = sadd.s32 %s94, 1
      %p98 = scmp.eq.s32.totalorder %s18, 1
      %p99 = scmp.ne.s32.totalorder %s94, %s96
      %p100 = scmp.eq.s32.totalorder %s18, 0
      %p101 = por %p99, %p100
      %p102 = scmp.ne.s32.totalorder %s94, %s96
      %p103 = scmp.eq.s32.totalorder %s23, 1
      %p104 = por %p102, %p103
      %p105 = scmp.ne.s32.totalorder %s96, %s97
      %p106 = scmp.eq.s32.totalorder %s23, 0
      %p107 = por %p105, %p106
      %p108 = scmp.ne.s32.totalorder %s96, %s97
      %p109 = scmp.eq.s32.totalorder %s24, 1
      %p110 = por %p108, %p109
      %p112 = scmp.ne.s32.totalorder %s97, %s111
      %p113 = scmp.eq.s32.totalorder %s24, 0
      %p114 = por %p112, %p113
      %s116 = sadd.s32 %s115, 1
      %p119 = scmp.eq.s32.totalorder %s18, 1
      %p120 = scmp.ne.s32.totalorder %s115, %s117
      %p121 = scmp.eq.s32.totalorder %s18, 0
      %p122 = por %p120, %p121
      %p123 = scmp.ne.s32.totalorder %s115, %s117
      %p124 = scmp.eq.s32.totalorder %s23, 1
      %p125 = por %p123, %p124
      %p126 = scmp.ne.s32.totalorder %s117, %s118
      %p127 = scmp.eq.s32.totalorder %s23, 0
      %p128 = por %p126, %p127
      %p129 = scmp.ne.s32.totalorder %s117, %s118
      %p130 = scmp.eq.s32.totalorder %s24, 1
      %p131 = por %p129, %p130
      %p133 = scmp.ne.s32.totalorder %s118, %s132
      %p134 = scmp.eq.s32.totalorder %s24, 0
      %p135 = por %p133, %p134
      %s136 = ssub.s32 %s18, %s25
      %p137 = scmp.eq.s32.totalorder %s136, 0
      %s139 = sadd.s32 %s138, 1
      %s140 = scalar_select %p137, %s138, %s139
      %p143 = pneg %p137
      %p144 = scmp.eq.s32.totalorder %s18, 1
      %p145 = por %p143, %p144
      %p146 = scmp.ne.s32.totalorder %s138, %s141
      %p147 = scmp.eq.s32.totalorder %s18, 0
      %p148 = por %p146, %p147
      %p149 = scmp.ne.s32.totalorder %s138, %s141
      %p150 = scmp.eq.s32.totalorder %s23, 1
      %p151 = por %p149, %p150
      %p152 = scmp.ne.s32.totalorder %s141, %s142
      %p153 = scmp.eq.s32.totalorder %s23, 0
      %p154 = por %p152, %p153
      %p155 = scmp.ne.s32.totalorder %s141, %s142
      %p156 = scmp.eq.s32.totalorder %s24, 1
      %p157 = por %p155, %p156
      %p159 = scmp.ne.s32.totalorder %s142, %s158
      %p160 = scmp.eq.s32.totalorder %s24, 0
      %p161 = por %p159, %p160
      %p162 = scmp.le.s32.totalorder 1, %s18
      %p163 = scmp.lt.s32.totalorder %s18, 3
      %p164 = pnand %p162, %p163
      %p165 = pneg %p164
      // Predicated region
      $region9: #{tpu_custom_call.1} parent=5 // pred_check
        _
      $region10: #{tpu_custom_call.1} parent=5 // pred_check_branch
        %167 = sbr.rel (%p164) target = $region12
      $region11: #{tpu_custom_call.1} parent=5 // pred_region
        %s168 = ssub.s32 %s18, 1
        // Predicated region
        $region13: #{tpu_custom_call.1} parent=11 // pred_check
          %p169 = pneg %p65
        $region14: #{tpu_custom_call.1} parent=11 // pred_check_branch
          %171 = sbr.rel (%p169) target = $region16
        $region15: #{tpu_custom_call.1} parent=11 // pred_region
          %s173 = ssub.s32 16384, 16384
          %174 = vsyncadd [#allocation6], %s173
          %s175 = sshll.u32 [#allocation5], 4
          %s176 = int_to_ptr.vmem [resolvable:$true] %s175
          %181 = dma.hbm_to_vmem [thread:$0]  %s1, 16384, %s176, [#allocation6], 1024, 1024, 64
        $region16: #{tpu_custom_call.1} parent=11 // pred_fallthru
          _
        // Predicated region
        $region17: #{tpu_custom_call.1} parent=11 // pred_check
          %p182 = pneg %p86
        $region18: #{tpu_custom_call.1} parent=11 // pred_check_branch
          %184 = sbr.rel (%p182) target = $region20
        $region19: #{tpu_custom_call.1} parent=11 // pred_region
          _
        $region20: #{tpu_custom_call.1} parent=11 // pred_fallthru
          _
        // Predicated region
        $region21: #{tpu_custom_call.1} parent=11 // pred_check
          %p185 = pneg %p107
        $region22: #{tpu_custom_call.1} parent=11 // pred_check_branch
          %187 = sbr.rel (%p185) target = $region24
        $region23: #{tpu_custom_call.1} parent=11 // pred_region
          %s189 = ssub.s32 1024, 1024
          %190 = vsyncadd [#allocation6], %s189
          %s192 = sshll.u32 [#allocation7], 4
          %s193 = int_to_ptr.vmem [resolvable:$true] %s192
          %195 = dma.hbm_to_vmem [thread:$0]  %s3, 1024, %s193, [#allocation6]
        $region24: #{tpu_custom_call.1} parent=11 // pred_fallthru
          _
        // Predicated region
        $region25: #{tpu_custom_call.1} parent=11 // pred_check
          %p196 = pneg %p128
        $region26: #{tpu_custom_call.1} parent=11 // pred_check_branch
          %198 = sbr.rel (%p196) target = $region28
        $region27: #{tpu_custom_call.1} parent=11 // pred_region
          _
        $region28: #{tpu_custom_call.1} parent=11 // pred_fallthru
          _
      $region12: #{tpu_custom_call.1} parent=5 // pred_fallthru
        _
      %p199 = scmp.lt.s32.totalorder %s18, 2
      // Predicated region
      $region29: #{tpu_custom_call.1} parent=5 // pred_check
        %p200 = pneg %p199
      $region30: #{tpu_custom_call.1} parent=5 // pred_check_branch
        %202 = sbr.rel (%p200) target = $region32
      $region31: #{tpu_custom_call.1} parent=5 // pred_region
        // Predicated region
        $region33: #{tpu_custom_call.1} parent=31 // pred_check
          %p203 = pneg %p38
        $region34: #{tpu_custom_call.1} parent=31 // pred_check_branch
          %205 = sbr.rel (%p203) target = $region36
        $region35: #{tpu_custom_call.1} parent=31 // pred_region
          %s206 = sand.u32 %s28, 1
          %s207 = scalar_lea.sflag [#allocation3], %s206
          %s208 = sand.u32 %s28, 1
          %s209 = smul.addr %s208, 128
          %s210 = scalar_lea.vmem [#allocation2], %s209
          %s212 = ssub.s32 2048, 2048
          %213 = vsyncadd %s207, %s212
          %s214 = smul.addr %s18, 32
          %s215 = smul.addr %s214, 64
          %s216 = scalar_lea.hbm %s0, %s215
          %s217 = sshll.u32 %s210, 4
          %s218 = int_to_ptr.vmem [resolvable:$true] %s217
          %223 = dma.hbm_to_vmem [thread:$0]  %s216, 2048, %s218, %s207, 64, 64, 4
        $region36: #{tpu_custom_call.1} parent=31 // pred_fallthru
          _
      $region32: #{tpu_custom_call.1} parent=5 // pred_fallthru
        _
      %p224 = scmp.le.s32.totalorder 1, %s18
      %p225 = scmp.lt.s32.totalorder %s18, 3
      %p226 = pnand %p224, %p225
      %p227 = pneg %p226
      // Predicated region
      $region37: #{tpu_custom_call.1} parent=5 // pred_check
        _
      $region38: #{tpu_custom_call.1} parent=5 // pred_check_branch
        %229 = sbr.rel (%p226) target = $region40
      $region39: #{tpu_custom_call.1} parent=5 // pred_region
        %s230 = ssub.s32 %s18, 1
        %s231 = sand.u32 %s31, 1
        %s232 = scalar_lea.sflag [#allocation3], %s231
        %s233 = sand.u32 %s31, 1
        %s234 = smul.addr %s233, 128
        %s235 = scalar_lea.vmem [#allocation2], %s234
        // Predicated region
        $region41: #{tpu_custom_call.1} parent=39 // pred_check
          %p236 = pneg %p44
        $region42: #{tpu_custom_call.1} parent=39 // pred_check_branch
          %238 = sbr.rel (%p236) target = $region44
        $region43: #{tpu_custom_call.1} parent=39 // pred_region
          %239 = dma.done %s232, 2048
        $region44: #{tpu_custom_call.1} parent=39 // pred_fallthru
          _
        // Predicated region
        $region45: #{tpu_custom_call.1} parent=39 // pred_check
          %p240 = pneg %p65
        $region46: #{tpu_custom_call.1} parent=39 // pred_check_branch
          %242 = sbr.rel (%p240) target = $region48
        $region47: #{tpu_custom_call.1} parent=39 // pred_region
          %243 = dma.done [#allocation6], 16384
        $region48: #{tpu_custom_call.1} parent=39 // pred_fallthru
          _
        // Predicated region
        $region49: #{tpu_custom_call.1} parent=39 // pred_check
          %p244 = pneg %p107
        $region50: #{tpu_custom_call.1} parent=39 // pred_check_branch
          %246 = sbr.rel (%p244) target = $region52
        $region51: #{tpu_custom_call.1} parent=39 // pred_region
          %247 = dma.done [#allocation6], 1024
        $region52: #{tpu_custom_call.1} parent=39 // pred_fallthru
          _
        %s248 = sand.u32 %s31, 1
        %s249 = scalar_lea.sflag [#allocation3], %s248
        %s250 = sand.u32 %s31, 1
        %s251 = smul.addr %s250, 128
        %s252 = scalar_lea.vmem [#allocation2], %s251
        %p253 = pneg %p44
        %p254 = pneg %p41
        %p255 = pneg %p65
        %p256 = pneg %p62
        %p257 = pneg %p86
        %p258 = pneg %p83
        %p259 = pneg %p107
        %p260 = pneg %p104
        %p261 = pneg %p128
        %p262 = pneg %p125
        %p263 = pneg %p154
        %p264 = pneg %p151
        %s265 = sand.u32 %s141, 1
        %s266 = scalar_lea.sflag [#allocation4], %s265
        %s267 = sand.u32 %s141, 1
        %s268 = smul.addr %s267, 32
        %s269 = scalar_lea.vmem [#allocation8], %s268
        %s270 = smul.u32 4, %s23
        %v272 = vld [vmem:[%s235] sm:$0xf]
        %v273 = vld [vmem:[%s235 + $0x4] sm:$0xf]
        %v274 = vld [vmem:[%s235 + $0x8] sm:$0xf]
        %v275 = vld [vmem:[%s235 + $0xc] sm:$0xf]
        %v276 = vld [vmem:[%s235 + $0x10] sm:$0xf]
        %v277 = vld [vmem:[%s235 + $0x14] sm:$0xf]
        %v278 = vld [vmem:[%s235 + $0x18] sm:$0xf]
        %v279 = vld [vmem:[%s235 + $0x1c] sm:$0xf]
        %v280 = vld [vmem:[%s235 + $0x20] sm:$0xf]
        %v281 = vld [vmem:[%s235 + $0x24] sm:$0xf]
        %v282 = vld [vmem:[%s235 + $0x28] sm:$0xf]
        %v283 = vld [vmem:[%s235 + $0x2c] sm:$0xf]
        %v284 = vld [vmem:[%s235 + $0x30] sm:$0xf]
        %v285 = vld [vmem:[%s235 + $0x34] sm:$0xf]
        %v286 = vld [vmem:[%s235 + $0x38] sm:$0xf]
        %v287 = vld [vmem:[%s235 + $0x3c] sm:$0xf]
        %v288 = vld [vmem:[%s235 + $0x40] sm:$0xf]
        %v289 = vld [vmem:[%s235 + $0x44] sm:$0xf]
        %v290 = vld [vmem:[%s235 + $0x48] sm:$0xf]
        %v291 = vld [vmem:[%s235 + $0x4c] sm:$0xf]
        %v292 = vld [vmem:[%s235 + $0x50] sm:$0xf]
        %v293 = vld [vmem:[%s235 + $0x54] sm:$0xf]
        %v294 = vld [vmem:[%s235 + $0x58] sm:$0xf]
        %v295 = vld [vmem:[%s235 + $0x5c] sm:$0xf]
        %v296 = vld [vmem:[%s235 + $0x60] sm:$0xf]
        %v297 = vld [vmem:[%s235 + $0x64] sm:$0xf]
        %v298 = vld [vmem:[%s235 + $0x68] sm:$0xf]
        %v299 = vld [vmem:[%s235 + $0x6c] sm:$0xf]
        %v300 = vld [vmem:[%s235 + $0x70] sm:$0xf]
        %v301 = vld [vmem:[%s235 + $0x74] sm:$0xf]
        %v302 = vld [vmem:[%s235 + $0x78] sm:$0xf]
        %v303 = vld [vmem:[%s235 + $0x7c] sm:$0xf]
        %v304 = vld [vmem:[#allocation5] sm:$0xff]
        %v305 = vld [vmem:[#allocation5 + $0x8] sm:$0xff]
        %v306 = vld [vmem:[#allocation5 + $0x40] sm:$0xff]
        %v307 = vld [vmem:[#allocation5 + $0x48] sm:$0xff]
        %v308 = vld [vmem:[#allocation5 + $0x80] sm:$0xff]
        %v309 = vld [vmem:[#allocation5 + $0x88] sm:$0xff]
        %v310 = vld [vmem:[#allocation5 + $0xc0] sm:$0xff]
        %v311 = vld [vmem:[#allocation5 + $0xc8] sm:$0xff]
        %v312 = vld [vmem:[#allocation5 + $0x100] sm:$0xff]
        %v313 = vld [vmem:[#allocation5 + $0x108] sm:$0xff]
        %v314 = vld [vmem:[#allocation5 + $0x140] sm:$0xff]
        %v315 = vld [vmem:[#allocation5 + $0x148] sm:$0xff]
        %v316 = vld [vmem:[#allocation5 + $0x180] sm:$0xff]
        %v317 = vld [vmem:[#allocation5 + $0x188] sm:$0xff]
        %v318 = vld [vmem:[#allocation5 + $0x1c0] sm:$0xff]
        %v319 = vld [vmem:[#allocation5 + $0x1c8] sm:$0xff]
        %v320 = vld [vmem:[#allocation5 + $0x200] sm:$0xff]
        %v321 = vld [vmem:[#allocation5 + $0x208] sm:$0xff]
        %v322 = vld [vmem:[#allocation5 + $0x240] sm:$0xff]
        %v323 = vld [vmem:[#allocation5 + $0x248] sm:$0xff]
        %v324 = vld [vmem:[#allocation5 + $0x280] sm:$0xff]
        %v325 = vld [vmem:[#allocation5 + $0x288] sm:$0xff]
        %v326 = vld [vmem:[#allocation5 + $0x2c0] sm:$0xff]
        %v327 = vld [vmem:[#allocation5 + $0x2c8] sm:$0xff]
        %v328 = vld [vmem:[#allocation5 + $0x300] sm:$0xff]
        %v329 = vld [vmem:[#allocation5 + $0x308] sm:$0xff]
        %v330 = vld [vmem:[#allocation5 + $0x340] sm:$0xff]
        %v331 = vld [vmem:[#allocation5 + $0x348] sm:$0xff]
        %v332 = vld [vmem:[#allocation5 + $0x380] sm:$0xff]
        %v333 = vld [vmem:[#allocation5 + $0x388] sm:$0xff]
        %v334 = vld [vmem:[#allocation5 + $0x3c0] sm:$0xff]
        %v335 = vld [vmem:[#allocation5 + $0x3c8] sm:$0xff]
        %v336 = vld [vmem:[%s2] sm:$0xf]
        %v338 = vlaneseq
        %v339 = vshrl.u32 %v338, 7
        %v340 = vsub.s32 0, %v339
        %v341 = vrot.slane %v336, %v340
        %v342 = vlaneseq
        %v343 = vshrl.u32 %v342, 7
        %v344 = vsub.s32 1, %v343
        %v345 = vrot.slane %v336, %v344
        %v346 = vlaneseq
        %v347 = vshrl.u32 %v346, 7
        %v348 = vsub.s32 2, %v347
        %v349 = vrot.slane %v336, %v348
        %v350 = vlaneseq
        %v351 = vshrl.u32 %v350, 7
        %v352 = vsub.s32 3, %v351
        %v353 = vrot.slane %v336, %v352
        %v390 = vunpack.c.l.b16 %v272
        %v391 = vunpack.c.l.b16 %v273
        %v392 = vunpack.c.l.b16 %v274
        %v393 = vunpack.c.l.b16 %v275
        %v394 = vunpack.c.l.b16 %v276
        %v395 = vunpack.c.l.b16 %v277
        %v396 = vunpack.c.l.b16 %v278
        %v397 = vunpack.c.l.b16 %v279
        %v398 = vunpack.c.l.b16 %v280
        %v399 = vunpack.c.l.b16 %v281
        %v400 = vunpack.c.l.b16 %v282
        %v401 = vunpack.c.l.b16 %v283
        %v402 = vunpack.c.l.b16 %v284
        %v403 = vunpack.c.l.b16 %v285
        %v404 = vunpack.c.l.b16 %v286
        %v405 = vunpack.c.l.b16 %v287
        %v406 = vunpack.c.l.b16 %v288
        %v407 = vunpack.c.l.b16 %v289
        %v408 = vunpack.c.l.b16 %v290
        %v409 = vunpack.c.l.b16 %v291
        %v410 = vunpack.c.l.b16 %v292
        %v411 = vunpack.c.l.b16 %v293
        %v412 = vunpack.c.l.b16 %v294
        %v413 = vunpack.c.l.b16 %v295
        %v414 = vunpack.c.l.b16 %v296
        %v415 = vunpack.c.l.b16 %v297
        %v416 = vunpack.c.l.b16 %v298
        %v417 = vunpack.c.l.b16 %v299
        %v418 = vunpack.c.l.b16 %v300
        %v419 = vunpack.c.l.b16 %v301
        %v420 = vunpack.c.l.b16 %v302
        %v421 = vunpack.c.l.b16 %v303
        %v422 = vpack.c.b16 %v391, %v390
        %v423 = vpack.c.b16 %v393, %v392
        %v424 = vpack.c.b16 %v395, %v394
        %v425 = vpack.c.b16 %v397, %v396
        %v426 = vpack.c.b16 %v399, %v398
        %v427 = vpack.c.b16 %v401, %v400
        %v428 = vpack.c.b16 %v403, %v402
        %v429 = vpack.c.b16 %v405, %v404
        %v430 = vpack.c.b16 %v407, %v406
        %v431 = vpack.c.b16 %v409, %v408
        %v432 = vpack.c.b16 %v411, %v410
        %v433 = vpack.c.b16 %v413, %v412
        %v434 = vpack.c.b16 %v415, %v414
        %v435 = vpack.c.b16 %v417, %v416
        %v436 = vpack.c.b16 %v419, %v418
        %v437 = vpack.c.b16 %v421, %v420
        %v486 = vunpack.c.l.b16 %v304
        %v487 = vunpack.c.h.b16 %v304
        %v488 = vunpack.c.l.b16 %v305
        %v489 = vunpack.c.h.b16 %v305
        %v490 = vunpack.c.l.b16 %v306
        %v491 = vunpack.c.h.b16 %v306
        %v492 = vunpack.c.l.b16 %v307
        %v493 = vunpack.c.h.b16 %v307
        %v494 = vunpack.c.l.b16 %v308
        %v495 = vunpack.c.h.b16 %v308
        %v496 = vunpack.c.l.b16 %v309
        %v497 = vunpack.c.h.b16 %v309
        %v498 = vunpack.c.l.b16 %v310
        %v499 = vunpack.c.h.b16 %v310
        %v500 = vunpack.c.l.b16 %v311
        %v501 = vunpack.c.h.b16 %v311
        %v502 = vunpack.c.l.b16 %v312
        %v503 = vunpack.c.h.b16 %v312
        %v504 = vunpack.c.l.b16 %v313
        %v505 = vunpack.c.h.b16 %v313
        %v506 = vunpack.c.l.b16 %v314
        %v507 = vunpack.c.h.b16 %v314
        %v508 = vunpack.c.l.b16 %v315
        %v509 = vunpack.c.h.b16 %v315
        %v510 = vunpack.c.l.b16 %v316
        %v511 = vunpack.c.h.b16 %v316
        %v512 = vunpack.c.l.b16 %v317
        %v513 = vunpack.c.h.b16 %v317
        %v514 = vunpack.c.l.b16 %v318
        %v515 = vunpack.c.h.b16 %v318
        %v516 = vunpack.c.l.b16 %v319
        %v517 = vunpack.c.h.b16 %v319
        %v518 = vunpack.c.l.b16 %v320
        %v519 = vunpack.c.h.b16 %v320
        %v520 = vunpack.c.l.b16 %v321
        %v521 = vunpack.c.h.b16 %v321
        %v522 = vunpack.c.l.b16 %v322
        %v523 = vunpack.c.h.b16 %v322
        %v524 = vunpack.c.l.b16 %v323
        %v525 = vunpack.c.h.b16 %v323
        %v526 = vunpack.c.l.b16 %v324
        %v527 = vunpack.c.h.b16 %v324
        %v528 = vunpack.c.l.b16 %v325
        %v529 = vunpack.c.h.b16 %v325
        %v530 = vunpack.c.l.b16 %v326
        %v531 = vunpack.c.h.b16 %v326
        %v532 = vunpack.c.l.b16 %v327
        %v533 = vunpack.c.h.b16 %v327
        %v534 = vunpack.c.l.b16 %v328
        %v535 = vunpack.c.h.b16 %v328
        %v536 = vunpack.c.l.b16 %v329
        %v537 = vunpack.c.h.b16 %v329
        %v538 = vunpack.c.l.b16 %v330
        %v539 = vunpack.c.h.b16 %v330
        %v540 = vunpack.c.l.b16 %v331
        %v541 = vunpack.c.h.b16 %v331
        %v542 = vunpack.c.l.b16 %v332
        %v543 = vunpack.c.h.b16 %v332
        %v544 = vunpack.c.l.b16 %v333
        %v545 = vunpack.c.h.b16 %v333
        %v546 = vunpack.c.l.b16 %v334
        %v547 = vunpack.c.h.b16 %v334
        %v548 = vunpack.c.l.b16 %v335
        %v549 = vunpack.c.h.b16 %v335
        %v550 = vpack.c.b16 %v490, %v486
        %v551 = vpack.c.b16 %v491, %v487
        %v552 = vpack.c.b16 %v492, %v488
        %v553 = vpack.c.b16 %v493, %v489
        %v554 = vpack.c.b16 %v498, %v494
        %v555 = vpack.c.b16 %v499, %v495
        %v556 = vpack.c.b16 %v500, %v496
        %v557 = vpack.c.b16 %v501, %v497
        %v558 = vpack.c.b16 %v506, %v502
        %v559 = vpack.c.b16 %v507, %v503
        %v560 = vpack.c.b16 %v508, %v504
        %v561 = vpack.c.b16 %v509, %v505
        %v562 = vpack.c.b16 %v514, %v510
        %v563 = vpack.c.b16 %v515, %v511
        %v564 = vpack.c.b16 %v516, %v512
        %v565 = vpack.c.b16 %v517, %v513
        %v566 = vpack.c.b16 %v522, %v518
        %v567 = vpack.c.b16 %v523, %v519
        %v568 = vpack.c.b16 %v524, %v520
        %v569 = vpack.c.b16 %v525, %v521
        %v570 = vpack.c.b16 %v530, %v526
        %v571 = vpack.c.b16 %v531, %v527
        %v572 = vpack.c.b16 %v532, %v528
        %v573 = vpack.c.b16 %v533, %v529
        %v574 = vpack.c.b16 %v538, %v534
        %v575 = vpack.c.b16 %v539, %v535
        %v576 = vpack.c.b16 %v540, %v536
        %v577 = vpack.c.b16 %v541, %v537
        %v578 = vpack.c.b16 %v546, %v542
        %v579 = vpack.c.b16 %v547, %v543
        %v580 = vpack.c.b16 %v548, %v544
        %v581 = vpack.c.b16 %v549, %v545
        %614 = vmatprep.subr.bf16.mxu0 %v551
        %615 = vmatpush1.bf16.msra.mxu0 %v550
        %616 = vmatprep.subr.bf16.mxu0 %v555
        %617 = vmatpush1.bf16.msra.mxu0 %v554
        %618 = vmatprep.subr.bf16.mxu0 %v559
        %619 = vmatpush1.bf16.msra.mxu0 %v558
        %620 = vmatprep.subr.bf16.mxu0 %v563
        %621 = vmatpush1.bf16.msra.mxu0 %v562
        %622 = vmatprep.subr.bf16.mxu0 %v567
        %623 = vmatpush1.bf16.msra.mxu0 %v566
        %624 = vmatprep.subr.bf16.mxu0 %v571
        %625 = vmatpush1.bf16.msra.mxu0 %v570
        %626 = vmatprep.subr.bf16.mxu0 %v575
        %627 = vmatpush1.bf16.msra.mxu0 %v574
        %628 = vmatprep.subr.bf16.mxu0 %v579
        %629 = vmatpush1.bf16.msra.mxu0 %v578
        %630 = vmatprep.subr.bf16.mxu0 0
        %631 = vmatpush1.bf16.msra.mxu0 0
        %632 = vmatprep.subr.bf16.mxu0 0
        %633 = vmatpush1.bf16.msra.mxu0 0
        %634 = vmatprep.subr.bf16.mxu0 0
        %635 = vmatpush1.bf16.msra.mxu0 0
        %636 = vmatprep.subr.bf16.mxu0 0
        %637 = vmatpush1.bf16.msra.mxu0 0
        %638 = vmatprep.subr.bf16.mxu0 0
        %639 = vmatpush1.bf16.msra.mxu0 0
        %640 = vmatprep.subr.bf16.mxu0 0
        %641 = vmatpush1.bf16.msra.mxu0 0
        %642 = vmatprep.subr.bf16.mxu0 0
        %643 = vmatpush1.bf16.msra.mxu0 0
        %644 = vmatprep.subr.bf16.mxu0 0
        %645 = vmatpush1.bf16.msra.mxu0 0
        %646 = vmatprep.mubr.bf16.mxu0 0
        %647 = vmatmul.mubr.bf16.gmra.mrb[0].mxu0 %v422
        %v648 = vpop.f32.mrb[0].mxu0
        %v649 = vadd.f32 %v341, %v648
        %v650 = vpop.f32.mrb[0].mxu0
        %v651 = vadd.f32 %v345, %v650
        %v652 = vpop.f32.mrb[0].mxu0
        %v653 = vadd.f32 %v341, %v652
        %v654 = vpop.f32.mrb[0].mxu0
        %v655 = vadd.f32 %v345, %v654
        %656 = vmatprep.mubr.bf16.mxu0 0
        %657 = vmatmul.mubr.bf16.gmra.mrb[0].mxu0 %v423
        %v658 = vpop.f32.mrb[0].mxu0
        %v659 = vadd.f32 %v341, %v658
        %v660 = vpop.f32.mrb[0].mxu0
        %v661 = vadd.f32 %v345, %v660
        %v662 = vpop.f32.mrb[0].mxu0
        %v663 = vadd.f32 %v341, %v662
        %v664 = vpop.f32.mrb[0].mxu0
        %v665 = vadd.f32 %v345, %v664
        %666 = vmatprep.mubr.bf16.mxu0 0
        %667 = vmatmul.mubr.bf16.gmra.mrb[0].mxu0 %v424
        %v668 = vpop.f32.mrb[0].mxu0
        %v669 = vadd.f32 %v341, %v668
        %v670 = vpop.f32.mrb[0].mxu0
        %v671 = vadd.f32 %v345, %v670
        %v672 = vpop.f32.mrb[0].mxu0
        %v673 = vadd.f32 %v341, %v672
        %v674 = vpop.f32.mrb[0].mxu0
        %v675 = vadd.f32 %v345, %v674
        %676 = vmatprep.mubr.bf16.mxu0 0
        %677 = vmatmul.mubr.bf16.gmra.mrb[0].mxu0 %v425
        %v678 = vpop.f32.mrb[0].mxu0
        %v679 = vadd.f32 %v341, %v678
        %v680 = vpop.f32.mrb[0].mxu0
        %v681 = vadd.f32 %v345, %v680
        %v682 = vpop.f32.mrb[0].mxu0
        %v683 = vadd.f32 %v341, %v682
        %v684 = vpop.f32.mrb[0].mxu0
        %v685 = vadd.f32 %v345, %v684
        %686 = vmatprep.mubr.bf16.mxu0 0
        %687 = vmatmul.mubr.bf16.gmra.mrb[0].mxu0 %v426
        %v688 = vpop.f32.mrb[0].mxu0
        %v689 = vadd.f32 %v341, %v688
        %v690 = vpop.f32.mrb[0].mxu0
        %v691 = vadd.f32 %v345, %v690
        %v692 = vpop.f32.mrb[0].mxu0
        %v693 = vadd.f32 %v341, %v692
        %v694 = vpop.f32.mrb[0].mxu0
        %v695 = vadd.f32 %v345, %v694
        %696 = vmatprep.mubr.bf16.mxu0 0
        %697 = vmatmul.mubr.bf16.gmra.mrb[0].mxu0 %v427
        %v698 = vpop.f32.mrb[0].mxu0
        %v699 = vadd.f32 %v341, %v698
        %v700 = vpop.f32.mrb[0].mxu0
        %v701 = vadd.f32 %v345, %v700
        %v702 = vpop.f32.mrb[0].mxu0
        %v703 = vadd.f32 %v341, %v702
        %v704 = vpop.f32.mrb[0].mxu0
        %v705 = vadd.f32 %v345, %v704
        %706 = vmatprep.mubr.bf16.mxu0 0
        %707 = vmatmul.mubr.bf16.gmra.mrb[0].mxu0 %v428
        %v708 = vpop.f32.mrb[0].mxu0
        %v709 = vadd.f32 %v341, %v708
        %v710 = vpop.f32.mrb[0].mxu0
        %v711 = vadd.f32 %v345, %v710
        %v712 = vpop.f32.mrb[0].mxu0
        %v713 = vadd.f32 %v341, %v712
        %v714 = vpop.f32.mrb[0].mxu0
        %v715 = vadd.f32 %v345, %v714
        %716 = vmatprep.mubr.bf16.mxu0 0
        %717 = vmatmul.mubr.bf16.gmra.mrb[0].mxu0 %v429
        %v718 = vpop.f32.mrb[0].mxu0
        %v719 = vadd.f32 %v341, %v718
        %v720 = vpop.f32.mrb[0].mxu0
        %v721 = vadd.f32 %v345, %v720
        %v722 = vpop.f32.mrb[0].mxu0
        %v723 = vadd.f32 %v341, %v722
        %v724 = vpop.f32.mrb[0].mxu0
        %v725 = vadd.f32 %v345, %v724
        %726 = vmatprep.mubr.bf16.mxu0 0
        %727 = vmatmul.mubr.bf16.gmra.mrb[0].mxu0 %v430
        %v728 = vpop.f32.mrb[0].mxu0
        %v729 = vadd.f32 %v341, %v728
        %v730 = vpop.f32.mrb[0].mxu0
        %v731 = vadd.f32 %v345, %v730
        %v732 = vpop.f32.mrb[0].mxu0
        %v733 = vadd.f32 %v341, %v732
        %v734 = vpop.f32.mrb[0].mxu0
        %v735 = vadd.f32 %v345, %v734
        %736 = vmatprep.mubr.bf16.mxu0 0
        %737 = vmatmul.mubr.bf16.gmra.mrb[0].mxu0 %v431
        %v738 = vpop.f32.mrb[0].mxu0
        %v739 = vadd.f32 %v341, %v738
        %v740 = vpop.f32.mrb[0].mxu0
        %v741 = vadd.f32 %v345, %v740
        %v742 = vpop.f32.mrb[0].mxu0
        %v743 = vadd.f32 %v341, %v742
        %v744 = vpop.f32.mrb[0].mxu0
        %v745 = vadd.f32 %v345, %v744
        %746 = vmatprep.mubr.bf16.mxu0 0
        %747 = vmatmul.mubr.bf16.gmra.mrb[0].mxu0 %v432
        %v748 = vpop.f32.mrb[0].mxu0
        %v749 = vadd.f32 %v341, %v748
        %v750 = vpop.f32.mrb[0].mxu0
        %v751 = vadd.f32 %v345, %v750
        %v752 = vpop.f32.mrb[0].mxu0
        %v753 = vadd.f32 %v341, %v752
        %v754 = vpop.f32.mrb[0].mxu0
        %v755 = vadd.f32 %v345, %v754
        %756 = vmatprep.mubr.bf16.mxu0 0
        %757 = vmatmul.mubr.bf16.gmra.mrb[0].mxu0 %v433
        %v758 = vpop.f32.mrb[0].mxu0
        %v759 = vadd.f32 %v341, %v758
        %v760 = vpop.f32.mrb[0].mxu0
        %v761 = vadd.f32 %v345, %v760
        %v762 = vpop.f32.mrb[0].mxu0
        %v763 = vadd.f32 %v341, %v762
        %v764 = vpop.f32.mrb[0].mxu0
        %v765 = vadd.f32 %v345, %v764
        %766 = vmatprep.mubr.bf16.mxu0 0
        %767 = vmatmul.mubr.bf16.gmra.mrb[0].mxu0 %v434
        %v768 = vpop.f32.mrb[0].mxu0
        %v769 = vadd.f32 %v341, %v768
        %v770 = vpop.f32.mrb[0].mxu0
        %v771 = vadd.f32 %v345, %v770
        %v772 = vpop.f32.mrb[0].mxu0
        %v773 = vadd.f32 %v341, %v772
        %v774 = vpop.f32.mrb[0].mxu0
        %v775 = vadd.f32 %v345, %v774
        %776 = vmatprep.mubr.bf16.mxu0 0
        %777 = vmatmul.mubr.bf16.gmra.mrb[0].mxu0 %v435
        %v778 = vpop.f32.mrb[0].mxu0
        %v779 = vadd.f32 %v341, %v778
        %v780 = vpop.f32.mrb[0].mxu0
        %v781 = vadd.f32 %v345, %v780
        %v782 = vpop.f32.mrb[0].mxu0
        %v783 = vadd.f32 %v341, %v782
        %v784 = vpop.f32.mrb[0].mxu0
        %v785 = vadd.f32 %v345, %v784
        %786 = vmatprep.mubr.bf16.mxu0 0
        %787 = vmatmul.mubr.bf16.gmra.mrb[0].mxu0 %v436
        %v788 = vpop.f32.mrb[0].mxu0
        %v789 = vadd.f32 %v341, %v788
        %v790 = vpop.f32.mrb[0].mxu0
        %v791 = vadd.f32 %v345, %v790
        %v792 = vpop.f32.mrb[0].mxu0
        %v793 = vadd.f32 %v341, %v792
        %v794 = vpop.f32.mrb[0].mxu0
        %v795 = vadd.f32 %v345, %v794
        %796 = vmatprep.mubr.bf16.mxu0 0
        %797 = vmatmul.mubr.bf16.gmra.mrb[0].mxu0 %v437
        %v798 = vpop.f32.mrb[0].mxu0
        %v799 = vadd.f32 %v341, %v798
        %v800 = vpop.f32.mrb[0].mxu0
        %v801 = vadd.f32 %v345, %v800
        %v802 = vpop.f32.mrb[0].mxu0
        %v803 = vadd.f32 %v341, %v802
        %v804 = vpop.f32.mrb[0].mxu0
        %v805 = vadd.f32 %v345, %v804
        %806 = vdwg.mxu0
        %807 = vmatprep.subr.bf16.mxu0 %v553
        %808 = vmatpush1.bf16.msra.mxu0 %v552
        %809 = vmatprep.subr.bf16.mxu0 %v557
        %810 = vmatpush1.bf16.msra.mxu0 %v556
        %811 = vmatprep.subr.bf16.mxu0 %v561
        %812 = vmatpush1.bf16.msra.mxu0 %v560
        %813 = vmatprep.subr.bf16.mxu0 %v565
        %814 = vmatpush1.bf16.msra.mxu0 %v564
        %815 = vmatprep.subr.bf16.mxu0 %v569
        %816 = vmatpush1.bf16.msra.mxu0 %v568
        %817 = vmatprep.subr.bf16.mxu0 %v573
        %818 = vmatpush1.bf16.msra.mxu0 %v572
        %819 = vmatprep.subr.bf16.mxu0 %v577
        %820 = vmatpush1.bf16.msra.mxu0 %v576
        %821 = vmatprep.subr.bf16.mxu0 %v581
        %822 = vmatpush1.bf16.msra.mxu0 %v580
        %823 = vmatprep.subr.bf16.mxu0 0
        %824 = vmatpush1.bf16.msra.mxu0 0
        %825 = vmatprep.subr.bf16.mxu0 0
        %826 = vmatpush1.bf16.msra.mxu0 0
        %827 = vmatprep.subr.bf16.mxu0 0
        %828 = vmatpush1.bf16.msra.mxu0 0
        %829 = vmatprep.subr.bf16.mxu0 0
        %830 = vmatpush1.bf16.msra.mxu0 0
        %831 = vmatprep.subr.bf16.mxu0 0
        %832 = vmatpush1.bf16.msra.mxu0 0
        %833 = vmatprep.subr.bf16.mxu0 0
        %834 = vmatpush1.bf16.msra.mxu0 0
        %835 = vmatprep.subr.bf16.mxu0 0
        %836 = vmatpush1.bf16.msra.mxu0 0
        %837 = vmatprep.subr.bf16.mxu0 0
        %838 = vmatpush1.bf16.msra.mxu0 0
        %839 = vmatprep.mubr.bf16.mxu0 0
        %840 = vmatmul.mubr.bf16.gmra.mrb[0].mxu0 %v422
        %v841 = vpop.f32.mrb[0].mxu0
        %v842 = vadd.f32 %v349, %v841
        %v843 = vpop.f32.mrb[0].mxu0
        %v844 = vadd.f32 %v353, %v843
        %v845 = vpop.f32.mrb[0].mxu0
        %v846 = vadd.f32 %v349, %v845
        %v847 = vpop.f32.mrb[0].mxu0
        %v848 = vadd.f32 %v353, %v847
        %849 = vmatprep.mubr.bf16.mxu0 0
        %850 = vmatmul.mubr.bf16.gmra.mrb[0].mxu0 %v423
        %v851 = vpop.f32.mrb[0].mxu0
        %v852 = vadd.f32 %v349, %v851
        %v853 = vpop.f32.mrb[0].mxu0
        %v854 = vadd.f32 %v353, %v853
        %v855 = vpop.f32.mrb[0].mxu0
        %v856 = vadd.f32 %v349, %v855
        %v857 = vpop.f32.mrb[0].mxu0
        %v858 = vadd.f32 %v353, %v857
        %859 = vmatprep.mubr.bf16.mxu0 0
        %860 = vmatmul.mubr.bf16.gmra.mrb[0].mxu0 %v424
        %v861 = vpop.f32.mrb[0].mxu0
        %v862 = vadd.f32 %v349, %v861
        %v863 = vpop.f32.mrb[0].mxu0
        %v864 = vadd.f32 %v353, %v863
        %v865 = vpop.f32.mrb[0].mxu0
        %v866 = vadd.f32 %v349, %v865
        %v867 = vpop.f32.mrb[0].mxu0
        %v868 = vadd.f32 %v353, %v867
        %869 = vmatprep.mubr.bf16.mxu0 0
        %870 = vmatmul.mubr.bf16.gmra.mrb[0].mxu0 %v425
        %v871 = vpop.f32.mrb[0].mxu0
        %v872 = vadd.f32 %v349, %v871
        %v873 = vpop.f32.mrb[0].mxu0
        %v874 = vadd.f32 %v353, %v873
        %v875 = vpop.f32.mrb[0].mxu0
        %v876 = vadd.f32 %v349, %v875
        %v877 = vpop.f32.mrb[0].mxu0
        %v878 = vadd.f32 %v353, %v877
        %879 = vmatprep.mubr.bf16.mxu0 0
        %880 = vmatmul.mubr.bf16.gmra.mrb[0].mxu0 %v426
        %v881 = vpop.f32.mrb[0].mxu0
        %v882 = vadd.f32 %v349, %v881
        %v883 = vpop.f32.mrb[0].mxu0
        %v884 = vadd.f32 %v353, %v883
        %v885 = vpop.f32.mrb[0].mxu0
        %v886 = vadd.f32 %v349, %v885
        %v887 = vpop.f32.mrb[0].mxu0
        %v888 = vadd.f32 %v353, %v887
        %889 = vmatprep.mubr.bf16.mxu0 0
        %890 = vmatmul.mubr.bf16.gmra.mrb[0].mxu0 %v427
        %v891 = vpop.f32.mrb[0].mxu0
        %v892 = vadd.f32 %v349, %v891
        %v893 = vpop.f32.mrb[0].mxu0
        %v894 = vadd.f32 %v353, %v893
        %v895 = vpop.f32.mrb[0].mxu0
        %v896 = vadd.f32 %v349, %v895
        %v897 = vpop.f32.mrb[0].mxu0
        %v898 = vadd.f32 %v353, %v897
        %899 = vmatprep.mubr.bf16.mxu0 0
        %900 = vmatmul.mubr.bf16.gmra.mrb[0].mxu0 %v428
        %v901 = vpop.f32.mrb[0].mxu0
        %v902 = vadd.f32 %v349, %v901
        %v903 = vpop.f32.mrb[0].mxu0
        %v904 = vadd.f32 %v353, %v903
        %v905 = vpop.f32.mrb[0].mxu0
        %v906 = vadd.f32 %v349, %v905
        %v907 = vpop.f32.mrb[0].mxu0
        %v908 = vadd.f32 %v353, %v907
        %909 = vmatprep.mubr.bf16.mxu0 0
        %910 = vmatmul.mubr.bf16.gmra.mrb[0].mxu0 %v429
        %v911 = vpop.f32.mrb[0].mxu0
        %v912 = vadd.f32 %v349, %v911
        %v913 = vpop.f32.mrb[0].mxu0
        %v914 = vadd.f32 %v353, %v913
        %v915 = vpop.f32.mrb[0].mxu0
        %v916 = vadd.f32 %v349, %v915
        %v917 = vpop.f32.mrb[0].mxu0
        %v918 = vadd.f32 %v353, %v917
        %919 = vmatprep.mubr.bf16.mxu0 0
        %920 = vmatmul.mubr.bf16.gmra.mrb[0].mxu0 %v430
        %v921 = vpop.f32.mrb[0].mxu0
        %v922 = vadd.f32 %v349, %v921
        %v923 = vpop.f32.mrb[0].mxu0
        %v924 = vadd.f32 %v353, %v923
        %v925 = vpop.f32.mrb[0].mxu0
        %v926 = vadd.f32 %v349, %v925
        %v927 = vpop.f32.mrb[0].mxu0
        %v928 = vadd.f32 %v353, %v927
        %929 = vmatprep.mubr.bf16.mxu0 0
        %930 = vmatmul.mubr.bf16.gmra.mrb[0].mxu0 %v431
        %v931 = vpop.f32.mrb[0].mxu0
        %v932 = vadd.f32 %v349, %v931
        %v933 = vpop.f32.mrb[0].mxu0
        %v934 = vadd.f32 %v353, %v933
        %v935 = vpop.f32.mrb[0].mxu0
        %v936 = vadd.f32 %v349, %v935
        %v937 = vpop.f32.mrb[0].mxu0
        %v938 = vadd.f32 %v353, %v937
        %939 = vmatprep.mubr.bf16.mxu0 0
        %940 = vmatmul.mubr.bf16.gmra.mrb[0].mxu0 %v432
        %v941 = vpop.f32.mrb[0].mxu0
        %v942 = vadd.f32 %v349, %v941
        %v943 = vpop.f32.mrb[0].mxu0
        %v944 = vadd.f32 %v353, %v943
        %v945 = vpop.f32.mrb[0].mxu0
        %v946 = vadd.f32 %v349, %v945
        %v947 = vpop.f32.mrb[0].mxu0
        %v948 = vadd.f32 %v353, %v947
        %949 = vmatprep.mubr.bf16.mxu0 0
        %950 = vmatmul.mubr.bf16.gmra.mrb[0].mxu0 %v433
        %v951 = vpop.f32.mrb[0].mxu0
        %v952 = vadd.f32 %v349, %v951
        %v953 = vpop.f32.mrb[0].mxu0
        %v954 = vadd.f32 %v353, %v953
        %v955 = vpop.f32.mrb[0].mxu0
        %v956 = vadd.f32 %v349, %v955
        %v957 = vpop.f32.mrb[0].mxu0
        %v958 = vadd.f32 %v353, %v957
        %959 = vmatprep.mubr.bf16.mxu0 0
        %960 = vmatmul.mubr.bf16.gmra.mrb[0].mxu0 %v434
        %v961 = vpop.f32.mrb[0].mxu0
        %v962 = vadd.f32 %v349, %v961
        %v963 = vpop.f32.mrb[0].mxu0
        %v964 = vadd.f32 %v353, %v963
        %v965 = vpop.f32.mrb[0].mxu0
        %v966 = vadd.f32 %v349, %v965
        %v967 = vpop.f32.mrb[0].mxu0
        %v968 = vadd.f32 %v353, %v967
        %969 = vmatprep.mubr.bf16.mxu0 0
        %970 = vmatmul.mubr.bf16.gmra.mrb[0].mxu0 %v435
        %v971 = vpop.f32.mrb[0].mxu0
        %v972 = vadd.f32 %v349, %v971
        %v973 = vpop.f32.mrb[0].mxu0
        %v974 = vadd.f32 %v353, %v973
        %v975 = vpop.f32.mrb[0].mxu0
        %v976 = vadd.f32 %v349, %v975
        %v977 = vpop.f32.mrb[0].mxu0
        %v978 = vadd.f32 %v353, %v977
        %979 = vmatprep.mubr.bf16.mxu0 0
        %980 = vmatmul.mubr.bf16.gmra.mrb[0].mxu0 %v436
        %v981 = vpop.f32.mrb[0].mxu0
        %v982 = vadd.f32 %v349, %v981
        %v983 = vpop.f32.mrb[0].mxu0
        %v984 = vadd.f32 %v353, %v983
        %v985 = vpop.f32.mrb[0].mxu0
        %v986 = vadd.f32 %v349, %v985
        %v987 = vpop.f32.mrb[0].mxu0
        %v988 = vadd.f32 %v353, %v987
        %989 = vmatprep.mubr.bf16.mxu0 0
        %990 = vmatmul.mubr.bf16.gmra.mrb[0].mxu0 %v437
        %v991 = vpop.f32.mrb[0].mxu0
        %v992 = vadd.f32 %v349, %v991
        %v993 = vpop.f32.mrb[0].mxu0
        %v994 = vadd.f32 %v353, %v993
        %v995 = vpop.f32.mrb[0].mxu0
        %v996 = vadd.f32 %v349, %v995
        %v997 = vpop.f32.mrb[0].mxu0
        %v998 = vadd.f32 %v353, %v997
        %999 = vdwg.mxu0
        %v1000 = vmul.f32 %v649, 0.5
        %v1001 = vmul.f32 %v651, 0.5
        %v1002 = vmul.f32 %v842, 0.5
        %v1003 = vmul.f32 %v844, 0.5
        %v1004 = vmul.f32 %v653, 0.5
        %v1005 = vmul.f32 %v655, 0.5
        %v1006 = vmul.f32 %v846, 0.5
        %v1007 = vmul.f32 %v848, 0.5
        %v1008 = vmul.f32 %v659, 0.5
        %v1009 = vmul.f32 %v661, 0.5
        %v1010 = vmul.f32 %v852, 0.5
        %v1011 = vmul.f32 %v854, 0.5
        %v1012 = vmul.f32 %v663, 0.5
        %v1013 = vmul.f32 %v665, 0.5
        %v1014 = vmul.f32 %v856, 0.5
        %v1015 = vmul.f32 %v858, 0.5
        %v1016 = vmul.f32 %v669, 0.5
        %v1017 = vmul.f32 %v671, 0.5
        %v1018 = vmul.f32 %v862, 0.5
        %v1019 = vmul.f32 %v864, 0.5
        %v1020 = vmul.f32 %v673, 0.5
        %v1021 = vmul.f32 %v675, 0.5
        %v1022 = vmul.f32 %v866, 0.5
        %v1023 = vmul.f32 %v868, 0.5
        %v1024 = vmul.f32 %v679, 0.5
        %v1025 = vmul.f32 %v681, 0.5
        %v1026 = vmul.f32 %v872, 0.5
        %v1027 = vmul.f32 %v874, 0.5
        %v1028 = vmul.f32 %v683, 0.5
        %v1029 = vmul.f32 %v685, 0.5
        %v1030 = vmul.f32 %v876, 0.5
        %v1031 = vmul.f32 %v878, 0.5
        %v1032 = vmul.f32 %v689, 0.5
        %v1033 = vmul.f32 %v691, 0.5
        %v1034 = vmul.f32 %v882, 0.5
        %v1035 = vmul.f32 %v884, 0.5
        %v1036 = vmul.f32 %v693, 0.5
        %v1037 = vmul.f32 %v695, 0.5
        %v1038 = vmul.f32 %v886, 0.5
        %v1039 = vmul.f32 %v888, 0.5
        %v1040 = vmul.f32 %v699, 0.5
        %v1041 = vmul.f32 %v701, 0.5
        %v1042 = vmul.f32 %v892, 0.5
        %v1043 = vmul.f32 %v894, 0.5
        %v1044 = vmul.f32 %v703, 0.5
        %v1045 = vmul.f32 %v705, 0.5
        %v1046 = vmul.f32 %v896, 0.5
        %v1047 = vmul.f32 %v898, 0.5
        %v1048 = vmul.f32 %v709, 0.5
        %v1049 = vmul.f32 %v711, 0.5
        %v1050 = vmul.f32 %v902, 0.5
        %v1051 = vmul.f32 %v904, 0.5
        %v1052 = vmul.f32 %v713, 0.5
        %v1053 = vmul.f32 %v715, 0.5
        %v1054 = vmul.f32 %v906, 0.5
        %v1055 = vmul.f32 %v908, 0.5
        %v1056 = vmul.f32 %v719, 0.5
        %v1057 = vmul.f32 %v721, 0.5
        %v1058 = vmul.f32 %v912, 0.5
        %v1059 = vmul.f32 %v914, 0.5
        %v1060 = vmul.f32 %v723, 0.5
        %v1061 = vmul.f32 %v725, 0.5
        %v1062 = vmul.f32 %v916, 0.5
        %v1063 = vmul.f32 %v918, 0.5
        %v1064 = vmul.f32 %v729, 0.5
        %v1065 = vmul.f32 %v731, 0.5
        %v1066 = vmul.f32 %v922, 0.5
        %v1067 = vmul.f32 %v924, 0.5
        %v1068 = vmul.f32 %v733, 0.5
        %v1069 = vmul.f32 %v735, 0.5
        %v1070 = vmul.f32 %v926, 0.5
        %v1071 = vmul.f32 %v928, 0.5
        %v1072 = vmul.f32 %v739, 0.5
        %v1073 = vmul.f32 %v741, 0.5
        %v1074 = vmul.f32 %v932, 0.5
        %v1075 = vmul.f32 %v934, 0.5
        %v1076 = vmul.f32 %v743, 0.5
        %v1077 = vmul.f32 %v745, 0.5
        %v1078 = vmul.f32 %v936, 0.5
        %v1079 = vmul.f32 %v938, 0.5
        %v1080 = vmul.f32 %v749, 0.5
        %v1081 = vmul.f32 %v751, 0.5
        %v1082 = vmul.f32 %v942, 0.5
        %v1083 = vmul.f32 %v944, 0.5
        %v1084 = vmul.f32 %v753, 0.5
        %v1085 = vmul.f32 %v755, 0.5
        %v1086 = vmul.f32 %v946, 0.5
        %v1087 = vmul.f32 %v948, 0.5
        %v1088 = vmul.f32 %v759, 0.5
        %v1089 = vmul.f32 %v761, 0.5
        %v1090 = vmul.f32 %v952, 0.5
        %v1091 = vmul.f32 %v954, 0.5
        %v1092 = vmul.f32 %v763, 0.5
        %v1093 = vmul.f32 %v765, 0.5
        %v1094 = vmul.f32 %v956, 0.5
        %v1095 = vmul.f32 %v958, 0.5
        %v1096 = vmul.f32 %v769, 0.5
        %v1097 = vmul.f32 %v771, 0.5
        %v1098 = vmul.f32 %v962, 0.5
        %v1099 = vmul.f32 %v964, 0.5
        %v1100 = vmul.f32 %v773, 0.5
        %v1101 = vmul.f32 %v775, 0.5
        %v1102 = vmul.f32 %v966, 0.5
        %v1103 = vmul.f32 %v968, 0.5
        %v1104 = vmul.f32 %v779, 0.5
        %v1105 = vmul.f32 %v781, 0.5
        %v1106 = vmul.f32 %v972, 0.5
        %v1107 = vmul.f32 %v974, 0.5
        %v1108 = vmul.f32 %v783, 0.5
        %v1109 = vmul.f32 %v785, 0.5
        %v1110 = vmul.f32 %v976, 0.5
        %v1111 = vmul.f32 %v978, 0.5
        %v1112 = vmul.f32 %v789, 0.5
        %v1113 = vmul.f32 %v791, 0.5
        %v1114 = vmul.f32 %v982, 0.5
        %v1115 = vmul.f32 %v984, 0.5
        %v1116 = vmul.f32 %v793, 0.5
        %v1117 = vmul.f32 %v795, 0.5
        %v1118 = vmul.f32 %v986, 0.5
        %v1119 = vmul.f32 %v988, 0.5
        %v1120 = vmul.f32 %v799, 0.5
        %v1121 = vmul.f32 %v801, 0.5
        %v1122 = vmul.f32 %v992, 0.5
        %v1123 = vmul.f32 %v994, 0.5
        %v1124 = vmul.f32 %v803, 0.5
        %v1125 = vmul.f32 %v805, 0.5
        %v1126 = vmul.f32 %v996, 0.5
        %v1127 = vmul.f32 %v998, 0.5
        %v1128 = vmul.f32 %v649, 0.70710677
        %v1129 = vmul.f32 %v651, 0.70710677
        %v1130 = vmul.f32 %v842, 0.70710677
        %v1131 = vmul.f32 %v844, 0.70710677
        %v1132 = vmul.f32 %v653, 0.70710677
        %v1133 = vmul.f32 %v655, 0.70710677
        %v1134 = vmul.f32 %v846, 0.70710677
        %v1135 = vmul.f32 %v848, 0.70710677
        %v1136 = vmul.f32 %v659, 0.70710677
        %v1137 = vmul.f32 %v661, 0.70710677
        %v1138 = vmul.f32 %v852, 0.70710677
        %v1139 = vmul.f32 %v854, 0.70710677
        %v1140 = vmul.f32 %v663, 0.70710677
        %v1141 = vmul.f32 %v665, 0.70710677
        %v1142 = vmul.f32 %v856, 0.70710677
        %v1143 = vmul.f32 %v858, 0.70710677
        %v1144 = vmul.f32 %v669, 0.70710677
        %v1145 = vmul.f32 %v671, 0.70710677
        %v1146 = vmul.f32 %v862, 0.70710677
        %v1147 = vmul.f32 %v864, 0.70710677
        %v1148 = vmul.f32 %v673, 0.70710677
        %v1149 = vmul.f32 %v675, 0.70710677
        %v1150 = vmul.f32 %v866, 0.70710677
        %v1151 = vmul.f32 %v868, 0.70710677
        %v1152 = vmul.f32 %v679, 0.70710677
        %v1153 = vmul.f32 %v681, 0.70710677
        %v1154 = vmul.f32 %v872, 0.70710677
        %v1155 = vmul.f32 %v874, 0.70710677
        %v1156 = vmul.f32 %v683, 0.70710677
        %v1157 = vmul.f32 %v685, 0.70710677
        %v1158 = vmul.f32 %v876, 0.70710677
        %v1159 = vmul.f32 %v878, 0.70710677
        %v1160 = vmul.f32 %v689, 0.70710677
        %v1161 = vmul.f32 %v691, 0.70710677
        %v1162 = vmul.f32 %v882, 0.70710677
        %v1163 = vmul.f32 %v884, 0.70710677
        %v1164 = vmul.f32 %v693, 0.70710677
        %v1165 = vmul.f32 %v695, 0.70710677
        %v1166 = vmul.f32 %v886, 0.70710677
        %v1167 = vmul.f32 %v888, 0.70710677
        %v1168 = vmul.f32 %v699, 0.70710677
        %v1169 = vmul.f32 %v701, 0.70710677
        %v1170 = vmul.f32 %v892, 0.70710677
        %v1171 = vmul.f32 %v894, 0.70710677
        %v1172 = vmul.f32 %v703, 0.70710677
        %v1173 = vmul.f32 %v705, 0.70710677
        %v1174 = vmul.f32 %v896, 0.70710677
        %v1175 = vmul.f32 %v898, 0.70710677
        %v1176 = vmul.f32 %v709, 0.70710677
        %v1177 = vmul.f32 %v711, 0.70710677
        %v1178 = vmul.f32 %v902, 0.70710677
        %v1179 = vmul.f32 %v904, 0.70710677
        %v1180 = vmul.f32 %v713, 0.70710677
        %v1181 = vmul.f32 %v715, 0.70710677
        %v1182 = vmul.f32 %v906, 0.70710677
        %v1183 = vmul.f32 %v908, 0.70710677
        %v1184 = vmul.f32 %v719, 0.70710677
        %v1185 = vmul.f32 %v721, 0.70710677
        %v1186 = vmul.f32 %v912, 0.70710677
        %v1187 = vmul.f32 %v914, 0.70710677
        %v1188 = vmul.f32 %v723, 0.70710677
        %v1189 = vmul.f32 %v725, 0.70710677
        %v1190 = vmul.f32 %v916, 0.70710677
        %v1191 = vmul.f32 %v918, 0.70710677
        %v1192 = vmul.f32 %v729, 0.70710677
        %v1193 = vmul.f32 %v731, 0.70710677
        %v1194 = vmul.f32 %v922, 0.70710677
        %v1195 = vmul.f32 %v924, 0.70710677
        %v1196 = vmul.f32 %v733, 0.70710677
        %v1197 = vmul.f32 %v735, 0.70710677
        %v1198 = vmul.f32 %v926, 0.70710677
        %v1199 = vmul.f32 %v928, 0.70710677
        %v1200 = vmul.f32 %v739, 0.70710677
        %v1201 = vmul.f32 %v741, 0.70710677
        %v1202 = vmul.f32 %v932, 0.70710677
        %v1203 = vmul.f32 %v934, 0.70710677
        %v1204 = vmul.f32 %v743, 0.70710677
        %v1205 = vmul.f32 %v745, 0.70710677
        %v1206 = vmul.f32 %v936, 0.70710677
        %v1207 = vmul.f32 %v938, 0.70710677
        %v1208 = vmul.f32 %v749, 0.70710677
        %v1209 = vmul.f32 %v751, 0.70710677
        %v1210 = vmul.f32 %v942, 0.70710677
        %v1211 = vmul.f32 %v944, 0.70710677
        %v1212 = vmul.f32 %v753, 0.70710677
        %v1213 = vmul.f32 %v755, 0.70710677
        %v1214 = vmul.f32 %v946, 0.70710677
        %v1215 = vmul.f32 %v948, 0.70710677
        %v1216 = vmul.f32 %v759, 0.70710677
        %v1217 = vmul.f32 %v761, 0.70710677
        %v1218 = vmul.f32 %v952, 0.70710677
        %v1219 = vmul.f32 %v954, 0.70710677
        %v1220 = vmul.f32 %v763, 0.70710677
        %v1221 = vmul.f32 %v765, 0.70710677
        %v1222 = vmul.f32 %v956, 0.70710677
        %v1223 = vmul.f32 %v958, 0.70710677
        %v1224 = vmul.f32 %v769, 0.70710677
        %v1225 = vmul.f32 %v771, 0.70710677
        %v1226 = vmul.f32 %v962, 0.70710677
        %v1227 = vmul.f32 %v964, 0.70710677
        %v1228 = vmul.f32 %v773, 0.70710677
        %v1229 = vmul.f32 %v775, 0.70710677
        %v1230 = vmul.f32 %v966, 0.70710677
        %v1231 = vmul.f32 %v968, 0.70710677
        %v1232 = vmul.f32 %v779, 0.70710677
        %v1233 = vmul.f32 %v781, 0.70710677
        %v1234 = vmul.f32 %v972, 0.70710677
        %v1235 = vmul.f32 %v974, 0.70710677
        %v1236 = vmul.f32 %v783, 0.70710677
        %v1237 = vmul.f32 %v785, 0.70710677
        %v1238 = vmul.f32 %v976, 0.70710677
        %v1239 = vmul.f32 %v978, 0.70710677
        %v1240 = vmul.f32 %v789, 0.70710677
        %v1241 = vmul.f32 %v791, 0.70710677
        %v1242 = vmul.f32 %v982, 0.70710677
        %v1243 = vmul.f32 %v984, 0.70710677
        %v1244 = vmul.f32 %v793, 0.70710677
        %v1245 = vmul.f32 %v795, 0.70710677
        %v1246 = vmul.f32 %v986, 0.70710677
        %v1247 = vmul.f32 %v988, 0.70710677
        %v1248 = vmul.f32 %v799, 0.70710677
        %v1249 = vmul.f32 %v801, 0.70710677
        %v1250 = vmul.f32 %v992, 0.70710677
        %v1251 = vmul.f32 %v994, 0.70710677
        %v1252 = vmul.f32 %v803, 0.70710677
        %v1253 = vmul.f32 %v805, 0.70710677
        %v1254 = vmul.f32 %v996, 0.70710677
        %v1255 = vmul.f32 %v998, 0.70710677
        %v1256 = verf.f32.pop %v1128
        %v1257 = verf.f32.pop %v1129
        %v1258 = verf.f32.pop %v1130
        %v1259 = verf.f32.pop %v1131
        %v1260 = verf.f32.pop %v1132
        %v1261 = verf.f32.pop %v1133
        %v1262 = verf.f32.pop %v1134
        %v1263 = verf.f32.pop %v1135
        %v1264 = verf.f32.pop %v1136
        %v1265 = verf.f32.pop %v1137
        %v1266 = verf.f32.pop %v1138
        %v1267 = verf.f32.pop %v1139
        %v1268 = verf.f32.pop %v1140
        %v1269 = verf.f32.pop %v1141
        %v1270 = verf.f32.pop %v1142
        %v1271 = verf.f32.pop %v1143
        %v1272 = verf.f32.pop %v1144
        %v1273 = verf.f32.pop %v1145
        %v1274 = verf.f32.pop %v1146
        %v1275 = verf.f32.pop %v1147
        %v1276 = verf.f32.pop %v1148
        %v1277 = verf.f32.pop %v1149
        %v1278 = verf.f32.pop %v1150
        %v1279 = verf.f32.pop %v1151
        %v1280 = verf.f32.pop %v1152
        %v1281 = verf.f32.pop %v1153
        %v1282 = verf.f32.pop %v1154
        %v1283 = verf.f32.pop %v1155
        %v1284 = verf.f32.pop %v1156
        %v1285 = verf.f32.pop %v1157
        %v1286 = verf.f32.pop %v1158
        %v1287 = verf.f32.pop %v1159
        %v1288 = verf.f32.pop %v1160
        %v1289 = verf.f32.pop %v1161
        %v1290 = verf.f32.pop %v1162
        %v1291 = verf.f32.pop %v1163
        %v1292 = verf.f32.pop %v1164
        %v1293 = verf.f32.pop %v1165
        %v1294 = verf.f32.pop %v1166
        %v1295 = verf.f32.pop %v1167
        %v1296 = verf.f32.pop %v1168
        %v1297 = verf.f32.pop %v1169
        %v1298 = verf.f32.pop %v1170
        %v1299 = verf.f32.pop %v1171
        %v1300 = verf.f32.pop %v1172
        %v1301 = verf.f32.pop %v1173
        %v1302 = verf.f32.pop %v1174
        %v1303 = verf.f32.pop %v1175
        %v1304 = verf.f32.pop %v1176
        %v1305 = verf.f32.pop %v1177
        %v1306 = verf.f32.pop %v1178
        %v1307 = verf.f32.pop %v1179
        %v1308 = verf.f32.pop %v1180
        %v1309 = verf.f32.pop %v1181
        %v1310 = verf.f32.pop %v1182
        %v1311 = verf.f32.pop %v1183
        %v1312 = verf.f32.pop %v1184
        %v1313 = verf.f32.pop %v1185
        %v1314 = verf.f32.pop %v1186
        %v1315 = verf.f32.pop %v1187
        %v1316 = verf.f32.pop %v1188
        %v1317 = verf.f32.pop %v1189
        %v1318 = verf.f32.pop %v1190
        %v1319 = verf.f32.pop %v1191
        %v1320 = verf.f32.pop %v1192
        %v1321 = verf.f32.pop %v1193
        %v1322 = verf.f32.pop %v1194
        %v1323 = verf.f32.pop %v1195
        %v1324 = verf.f32.pop %v1196
        %v1325 = verf.f32.pop %v1197
        %v1326 = verf.f32.pop %v1198
        %v1327 = verf.f32.pop %v1199
        %v1328 = verf.f32.pop %v1200
        %v1329 = verf.f32.pop %v1201
        %v1330 = verf.f32.pop %v1202
        %v1331 = verf.f32.pop %v1203
        %v1332 = verf.f32.pop %v1204
        %v1333 = verf.f32.pop %v1205
        %v1334 = verf.f32.pop %v1206
        %v1335 = verf.f32.pop %v1207
        %v1336 = verf.f32.pop %v1208
        %v1337 = verf.f32.pop %v1209
        %v1338 = verf.f32.pop %v1210
        %v1339 = verf.f32.pop %v1211
        %v1340 = verf.f32.pop %v1212
        %v1341 = verf.f32.pop %v1213
        %v1342 = verf.f32.pop %v1214
        %v1343 = verf.f32.pop %v1215
        %v1344 = verf.f32.pop %v1216
        %v1345 = verf.f32.pop %v1217
        %v1346 = verf.f32.pop %v1218
        %v1347 = verf.f32.pop %v1219
        %v1348 = verf.f32.pop %v1220
        %v1349 = verf.f32.pop %v1221
        %v1350 = verf.f32.pop %v1222
        %v1351 = verf.f32.pop %v1223
        %v1352 = verf.f32.pop %v1224
        %v1353 = verf.f32.pop %v1225
        %v1354 = verf.f32.pop %v1226
        %v1355 = verf.f32.pop %v1227
        %v1356 = verf.f32.pop %v1228
        %v1357 = verf.f32.pop %v1229
        %v1358 = verf.f32.pop %v1230
        %v1359 = verf.f32.pop %v1231
        %v1360 = verf.f32.pop %v1232
        %v1361 = verf.f32.pop %v1233
        %v1362 = verf.f32.pop %v1234
        %v1363 = verf.f32.pop %v1235
        %v1364 = verf.f32.pop %v1236
        %v1365 = verf.f32.pop %v1237
        %v1366 = verf.f32.pop %v1238
        %v1367 = verf.f32.pop %v1239
        %v1368 = verf.f32.pop %v1240
        %v1369 = verf.f32.pop %v1241
        %v1370 = verf.f32.pop %v1242
        %v1371 = verf.f32.pop %v1243
        %v1372 = verf.f32.pop %v1244
        %v1373 = verf.f32.pop %v1245
        %v1374 = verf.f32.pop %v1246
        %v1375 = verf.f32.pop %v1247
        %v1376 = verf.f32.pop %v1248
        %v1377 = verf.f32.pop %v1249
        %v1378 = verf.f32.pop %v1250
        %v1379 = verf.f32.pop %v1251
        %v1380 = verf.f32.pop %v1252
        %v1381 = verf.f32.pop %v1253
        %v1382 = verf.f32.pop %v1254
        %v1383 = verf.f32.pop %v1255
        %v1384 = vadd.f32 %v1256, 1.0
        %v1385 = vadd.f32 %v1257, 1.0
        %v1386 = vadd.f32 %v1258, 1.0
        %v1387 = vadd.f32 %v1259, 1.0
        %v1388 = vadd.f32 %v1260, 1.0
        %v1389 = vadd.f32 %v1261, 1.0
        %v1390 = vadd.f32 %v1262, 1.0
        %v1391 = vadd.f32 %v1263, 1.0
        %v1392 = vadd.f32 %v1264, 1.0
        %v1393 = vadd.f32 %v1265, 1.0
        %v1394 = vadd.f32 %v1266, 1.0
        %v1395 = vadd.f32 %v1267, 1.0
        %v1396 = vadd.f32 %v1268, 1.0
        %v1397 = vadd.f32 %v1269, 1.0
        %v1398 = vadd.f32 %v1270, 1.0
        %v1399 = vadd.f32 %v1271, 1.0
        %v1400 = vadd.f32 %v1272, 1.0
        %v1401 = vadd.f32 %v1273, 1.0
        %v1402 = vadd.f32 %v1274, 1.0
        %v1403 = vadd.f32 %v1275, 1.0
        %v1404 = vadd.f32 %v1276, 1.0
        %v1405 = vadd.f32 %v1277, 1.0
        %v1406 = vadd.f32 %v1278, 1.0
        %v1407 = vadd.f32 %v1279, 1.0
        %v1408 = vadd.f32 %v1280, 1.0
        %v1409 = vadd.f32 %v1281, 1.0
        %v1410 = vadd.f32 %v1282, 1.0
        %v1411 = vadd.f32 %v1283, 1.0
        %v1412 = vadd.f32 %v1284, 1.0
        %v1413 = vadd.f32 %v1285, 1.0
        %v1414 = vadd.f32 %v1286, 1.0
        %v1415 = vadd.f32 %v1287, 1.0
        %v1416 = vadd.f32 %v1288, 1.0
        %v1417 = vadd.f32 %v1289, 1.0
        %v1418 = vadd.f32 %v1290, 1.0
        %v1419 = vadd.f32 %v1291, 1.0
        %v1420 = vadd.f32 %v1292, 1.0
        %v1421 = vadd.f32 %v1293, 1.0
        %v1422 = vadd.f32 %v1294, 1.0
        %v1423 = vadd.f32 %v1295, 1.0
        %v1424 = vadd.f32 %v1296, 1.0
        %v1425 = vadd.f32 %v1297, 1.0
        %v1426 = vadd.f32 %v1298, 1.0
        %v1427 = vadd.f32 %v1299, 1.0
        %v1428 = vadd.f32 %v1300, 1.0
        %v1429 = vadd.f32 %v1301, 1.0
        %v1430 = vadd.f32 %v1302, 1.0
        %v1431 = vadd.f32 %v1303, 1.0
        %v1432 = vadd.f32 %v1304, 1.0
        %v1433 = vadd.f32 %v1305, 1.0
        %v1434 = vadd.f32 %v1306, 1.0
        %v1435 = vadd.f32 %v1307, 1.0
        %v1436 = vadd.f32 %v1308, 1.0
        %v1437 = vadd.f32 %v1309, 1.0
        %v1438 = vadd.f32 %v1310, 1.0
        %v1439 = vadd.f32 %v1311, 1.0
        %v1440 = vadd.f32 %v1312, 1.0
        %v1441 = vadd.f32 %v1313, 1.0
        %v1442 = vadd.f32 %v1314, 1.0
        %v1443 = vadd.f32 %v1315, 1.0
        %v1444 = vadd.f32 %v1316, 1.0
        %v1445 = vadd.f32 %v1317, 1.0
        %v1446 = vadd.f32 %v1318, 1.0
        %v1447 = vadd.f32 %v1319, 1.0
        %v1448 = vadd.f32 %v1320, 1.0
        %v1449 = vadd.f32 %v1321, 1.0
        %v1450 = vadd.f32 %v1322, 1.0
        %v1451 = vadd.f32 %v1323, 1.0
        %v1452 = vadd.f32 %v1324, 1.0
        %v1453 = vadd.f32 %v1325, 1.0
        %v1454 = vadd.f32 %v1326, 1.0
        %v1455 = vadd.f32 %v1327, 1.0
        %v1456 = vadd.f32 %v1328, 1.0
        %v1457 = vadd.f32 %v1329, 1.0
        %v1458 = vadd.f32 %v1330, 1.0
        %v1459 = vadd.f32 %v1331, 1.0
        %v1460 = vadd.f32 %v1332, 1.0
        %v1461 = vadd.f32 %v1333, 1.0
        %v1462 = vadd.f32 %v1334, 1.0
        %v1463 = vadd.f32 %v1335, 1.0
        %v1464 = vadd.f32 %v1336, 1.0
        %v1465 = vadd.f32 %v1337, 1.0
        %v1466 = vadd.f32 %v1338, 1.0
        %v1467 = vadd.f32 %v1339, 1.0
        %v1468 = vadd.f32 %v1340, 1.0
        %v1469 = vadd.f32 %v1341, 1.0
        %v1470 = vadd.f32 %v1342, 1.0
        %v1471 = vadd.f32 %v1343, 1.0
        %v1472 = vadd.f32 %v1344, 1.0
        %v1473 = vadd.f32 %v1345, 1.0
        %v1474 = vadd.f32 %v1346, 1.0
        %v1475 = vadd.f32 %v1347, 1.0
        %v1476 = vadd.f32 %v1348, 1.0
        %v1477 = vadd.f32 %v1349, 1.0
        %v1478 = vadd.f32 %v1350, 1.0
        %v1479 = vadd.f32 %v1351, 1.0
        %v1480 = vadd.f32 %v1352, 1.0
        %v1481 = vadd.f32 %v1353, 1.0
        %v1482 = vadd.f32 %v1354, 1.0
        %v1483 = vadd.f32 %v1355, 1.0
        %v1484 = vadd.f32 %v1356, 1.0
        %v1485 = vadd.f32 %v1357, 1.0
        %v1486 = vadd.f32 %v1358, 1.0
        %v1487 = vadd.f32 %v1359, 1.0
        %v1488 = vadd.f32 %v1360, 1.0
        %v1489 = vadd.f32 %v1361, 1.0
        %v1490 = vadd.f32 %v1362, 1.0
        %v1491 = vadd.f32 %v1363, 1.0
        %v1492 = vadd.f32 %v1364, 1.0
        %v1493 = vadd.f32 %v1365, 1.0
        %v1494 = vadd.f32 %v1366, 1.0
        %v1495 = vadd.f32 %v1367, 1.0
        %v1496 = vadd.f32 %v1368, 1.0
        %v1497 = vadd.f32 %v1369, 1.0
        %v1498 = vadd.f32 %v1370, 1.0
        %v1499 = vadd.f32 %v1371, 1.0
        %v1500 = vadd.f32 %v1372, 1.0
        %v1501 = vadd.f32 %v1373, 1.0
        %v1502 = vadd.f32 %v1374, 1.0
        %v1503 = vadd.f32 %v1375, 1.0
        %v1504 = vadd.f32 %v1376, 1.0
        %v1505 = vadd.f32 %v1377, 1.0
        %v1506 = vadd.f32 %v1378, 1.0
        %v1507 = vadd.f32 %v1379, 1.0
        %v1508 = vadd.f32 %v1380, 1.0
        %v1509 = vadd.f32 %v1381, 1.0
        %v1510 = vadd.f32 %v1382, 1.0
        %v1511 = vadd.f32 %v1383, 1.0
        %v1512 = vmul.f32 %v1000, %v1384
        %v1513 = vmul.f32 %v1001, %v1385
        %v1514 = vmul.f32 %v1002, %v1386
        %v1515 = vmul.f32 %v1003, %v1387
        %v1516 = vmul.f32 %v1004, %v1388
        %v1517 = vmul.f32 %v1005, %v1389
        %v1518 = vmul.f32 %v1006, %v1390
        %v1519 = vmul.f32 %v1007, %v1391
        %v1520 = vmul.f32 %v1008, %v1392
        %v1521 = vmul.f32 %v1009, %v1393
        %v1522 = vmul.f32 %v1010, %v1394
        %v1523 = vmul.f32 %v1011, %v1395
        %v1524 = vmul.f32 %v1012, %v1396
        %v1525 = vmul.f32 %v1013, %v1397
        %v1526 = vmul.f32 %v1014, %v1398
        %v1527 = vmul.f32 %v1015, %v1399
        %v1528 = vmul.f32 %v1016, %v1400
        %v1529 = vmul.f32 %v1017, %v1401
        %v1530 = vmul.f32 %v1018, %v1402
        %v1531 = vmul.f32 %v1019, %v1403
        %v1532 = vmul.f32 %v1020, %v1404
        %v1533 = vmul.f32 %v1021, %v1405
        %v1534 = vmul.f32 %v1022, %v1406
        %v1535 = vmul.f32 %v1023, %v1407
        %v1536 = vmul.f32 %v1024, %v1408
        %v1537 = vmul.f32 %v1025, %v1409
        %v1538 = vmul.f32 %v1026, %v1410
        %v1539 = vmul.f32 %v1027, %v1411
        %v1540 = vmul.f32 %v1028, %v1412
        %v1541 = vmul.f32 %v1029, %v1413
        %v1542 = vmul.f32 %v1030, %v1414
        %v1543 = vmul.f32 %v1031, %v1415
        %v1544 = vmul.f32 %v1032, %v1416
        %v1545 = vmul.f32 %v1033, %v1417
        %v1546 = vmul.f32 %v1034, %v1418
        %v1547 = vmul.f32 %v1035, %v1419
        %v1548 = vmul.f32 %v1036, %v1420
        %v1549 = vmul.f32 %v1037, %v1421
        %v1550 = vmul.f32 %v1038, %v1422
        %v1551 = vmul.f32 %v1039, %v1423
        %v1552 = vmul.f32 %v1040, %v1424
        %v1553 = vmul.f32 %v1041, %v1425
        %v1554 = vmul.f32 %v1042, %v1426
        %v1555 = vmul.f32 %v1043, %v1427
        %v1556 = vmul.f32 %v1044, %v1428
        %v1557 = vmul.f32 %v1045, %v1429
        %v1558 = vmul.f32 %v1046, %v1430
        %v1559 = vmul.f32 %v1047, %v1431
        %v1560 = vmul.f32 %v1048, %v1432
        %v1561 = vmul.f32 %v1049, %v1433
        %v1562 = vmul.f32 %v1050, %v1434
        %v1563 = vmul.f32 %v1051, %v1435
        %v1564 = vmul.f32 %v1052, %v1436
        %v1565 = vmul.f32 %v1053, %v1437
        %v1566 = vmul.f32 %v1054, %v1438
        %v1567 = vmul.f32 %v1055, %v1439
        %v1568 = vmul.f32 %v1056, %v1440
        %v1569 = vmul.f32 %v1057, %v1441
        %v1570 = vmul.f32 %v1058, %v1442
        %v1571 = vmul.f32 %v1059, %v1443
        %v1572 = vmul.f32 %v1060, %v1444
        %v1573 = vmul.f32 %v1061, %v1445
        %v1574 = vmul.f32 %v1062, %v1446
        %v1575 = vmul.f32 %v1063, %v1447
        %v1576 = vmul.f32 %v1064, %v1448
        %v1577 = vmul.f32 %v1065, %v1449
        %v1578 = vmul.f32 %v1066, %v1450
        %v1579 = vmul.f32 %v1067, %v1451
        %v1580 = vmul.f32 %v1068, %v1452
        %v1581 = vmul.f32 %v1069, %v1453
        %v1582 = vmul.f32 %v1070, %v1454
        %v1583 = vmul.f32 %v1071, %v1455
        %v1584 = vmul.f32 %v1072, %v1456
        %v1585 = vmul.f32 %v1073, %v1457
        %v1586 = vmul.f32 %v1074, %v1458
        %v1587 = vmul.f32 %v1075, %v1459
        %v1588 = vmul.f32 %v1076, %v1460
        %v1589 = vmul.f32 %v1077, %v1461
        %v1590 = vmul.f32 %v1078, %v1462
        %v1591 = vmul.f32 %v1079, %v1463
        %v1592 = vmul.f32 %v1080, %v1464
        %v1593 = vmul.f32 %v1081, %v1465
        %v1594 = vmul.f32 %v1082, %v1466
        %v1595 = vmul.f32 %v1083, %v1467
        %v1596 = vmul.f32 %v1084, %v1468
        %v1597 = vmul.f32 %v1085, %v1469
        %v1598 = vmul.f32 %v1086, %v1470
        %v1599 = vmul.f32 %v1087, %v1471
        %v1600 = vmul.f32 %v1088, %v1472
        %v1601 = vmul.f32 %v1089, %v1473
        %v1602 = vmul.f32 %v1090, %v1474
        %v1603 = vmul.f32 %v1091, %v1475
        %v1604 = vmul.f32 %v1092, %v1476
        %v1605 = vmul.f32 %v1093, %v1477
        %v1606 = vmul.f32 %v1094, %v1478
        %v1607 = vmul.f32 %v1095, %v1479
        %v1608 = vmul.f32 %v1096, %v1480
        %v1609 = vmul.f32 %v1097, %v1481
        %v1610 = vmul.f32 %v1098, %v1482
        %v1611 = vmul.f32 %v1099, %v1483
        %v1612 = vmul.f32 %v1100, %v1484
        %v1613 = vmul.f32 %v1101, %v1485
        %v1614 = vmul.f32 %v1102, %v1486
        %v1615 = vmul.f32 %v1103, %v1487
        %v1616 = vmul.f32 %v1104, %v1488
        %v1617 = vmul.f32 %v1105, %v1489
        %v1618 = vmul.f32 %v1106, %v1490
        %v1619 = vmul.f32 %v1107, %v1491
        %v1620 = vmul.f32 %v1108, %v1492
        %v1621 = vmul.f32 %v1109, %v1493
        %v1622 = vmul.f32 %v1110, %v1494
        %v1623 = vmul.f32 %v1111, %v1495
        %v1624 = vmul.f32 %v1112, %v1496
        %v1625 = vmul.f32 %v1113, %v1497
        %v1626 = vmul.f32 %v1114, %v1498
        %v1627 = vmul.f32 %v1115, %v1499
        %v1628 = vmul.f32 %v1116, %v1500
        %v1629 = vmul.f32 %v1117, %v1501
        %v1630 = vmul.f32 %v1118, %v1502
        %v1631 = vmul.f32 %v1119, %v1503
        %v1632 = vmul.f32 %v1120, %v1504
        %v1633 = vmul.f32 %v1121, %v1505
        %v1634 = vmul.f32 %v1122, %v1506
        %v1635 = vmul.f32 %v1123, %v1507
        %v1636 = vmul.f32 %v1124, %v1508
        %v1637 = vmul.f32 %v1125, %v1509
        %v1638 = vmul.f32 %v1126, %v1510
        %v1639 = vmul.f32 %v1127, %v1511
        %v1640 = vld [vmem:[#allocation7] sm:$0xff]
        %v1641 = vld [vmem:[#allocation7 + $0x8] sm:$0xff]
        %v1642 = vpack.c.bf16 %v1516, %v1512
        %v1643 = vpack.c.bf16 %v1517, %v1513
        %v1644 = vpack.c.bf16 %v1518, %v1514
        %v1645 = vpack.c.bf16 %v1519, %v1515
        %v1646 = vpack.c.bf16 %v1524, %v1520
        %v1647 = vpack.c.bf16 %v1525, %v1521
        %v1648 = vpack.c.bf16 %v1526, %v1522
        %v1649 = vpack.c.bf16 %v1527, %v1523
        %v1650 = vpack.c.bf16 %v1532, %v1528
        %v1651 = vpack.c.bf16 %v1533, %v1529
        %v1652 = vpack.c.bf16 %v1534, %v1530
        %v1653 = vpack.c.bf16 %v1535, %v1531
        %v1654 = vpack.c.bf16 %v1540, %v1536
        %v1655 = vpack.c.bf16 %v1541, %v1537
        %v1656 = vpack.c.bf16 %v1542, %v1538
        %v1657 = vpack.c.bf16 %v1543, %v1539
        %v1658 = vpack.c.bf16 %v1548, %v1544
        %v1659 = vpack.c.bf16 %v1549, %v1545
        %v1660 = vpack.c.bf16 %v1550, %v1546
        %v1661 = vpack.c.bf16 %v1551, %v1547
        %v1662 = vpack.c.bf16 %v1556, %v1552
        %v1663 = vpack.c.bf16 %v1557, %v1553
        %v1664 = vpack.c.bf16 %v1558, %v1554
        %v1665 = vpack.c.bf16 %v1559, %v1555
        %v1666 = vpack.c.bf16 %v1564, %v1560
        %v1667 = vpack.c.bf16 %v1565, %v1561
        %v1668 = vpack.c.bf16 %v1566, %v1562
        %v1669 = vpack.c.bf16 %v1567, %v1563
        %v1670 = vpack.c.bf16 %v1572, %v1568
        %v1671 = vpack.c.bf16 %v1573, %v1569
        %v1672 = vpack.c.bf16 %v1574, %v1570
        %v1673 = vpack.c.bf16 %v1575, %v1571
        %v1674 = vpack.c.bf16 %v1580, %v1576
        %v1675 = vpack.c.bf16 %v1581, %v1577
        %v1676 = vpack.c.bf16 %v1582, %v1578
        %v1677 = vpack.c.bf16 %v1583, %v1579
        %v1678 = vpack.c.bf16 %v1588, %v1584
        %v1679 = vpack.c.bf16 %v1589, %v1585
        %v1680 = vpack.c.bf16 %v1590, %v1586
        %v1681 = vpack.c.bf16 %v1591, %v1587
        %v1682 = vpack.c.bf16 %v1596, %v1592
        %v1683 = vpack.c.bf16 %v1597, %v1593
        %v1684 = vpack.c.bf16 %v1598, %v1594
        %v1685 = vpack.c.bf16 %v1599, %v1595
        %v1686 = vpack.c.bf16 %v1604, %v1600
        %v1687 = vpack.c.bf16 %v1605, %v1601
        %v1688 = vpack.c.bf16 %v1606, %v1602
        %v1689 = vpack.c.bf16 %v1607, %v1603
        %v1690 = vpack.c.bf16 %v1612, %v1608
        %v1691 = vpack.c.bf16 %v1613, %v1609
        %v1692 = vpack.c.bf16 %v1614, %v1610
        %v1693 = vpack.c.bf16 %v1615, %v1611
        %v1694 = vpack.c.bf16 %v1620, %v1616
        %v1695 = vpack.c.bf16 %v1621, %v1617
        %v1696 = vpack.c.bf16 %v1622, %v1618
        %v1697 = vpack.c.bf16 %v1623, %v1619
        %v1698 = vpack.c.bf16 %v1628, %v1624
        %v1699 = vpack.c.bf16 %v1629, %v1625
        %v1700 = vpack.c.bf16 %v1630, %v1626
        %v1701 = vpack.c.bf16 %v1631, %v1627
        %v1702 = vpack.c.bf16 %v1636, %v1632
        %v1703 = vpack.c.bf16 %v1637, %v1633
        %v1704 = vpack.c.bf16 %v1638, %v1634
        %v1705 = vpack.c.bf16 %v1639, %v1635
        %v1706 = vld [vmem:[#allocation5 + $0x10] sm:$0xff]
        %v1707 = vld [vmem:[#allocation5 + $0x18] sm:$0xff]
        %v1708 = vld [vmem:[#allocation5 + $0x50] sm:$0xff]
        %v1709 = vld [vmem:[#allocation5 + $0x58] sm:$0xff]
        %v1710 = vld [vmem:[#allocation5 + $0x90] sm:$0xff]
        %v1711 = vld [vmem:[#allocation5 + $0x98] sm:$0xff]
        %v1712 = vld [vmem:[#allocation5 + $0xd0] sm:$0xff]
        %v1713 = vld [vmem:[#allocation5 + $0xd8] sm:$0xff]
        %v1714 = vld [vmem:[#allocation5 + $0x110] sm:$0xff]
        %v1715 = vld [vmem:[#allocation5 + $0x118] sm:$0xff]
        %v1716 = vld [vmem:[#allocation5 + $0x150] sm:$0xff]
        %v1717 = vld [vmem:[#allocation5 + $0x158] sm:$0xff]
        %v1718 = vld [vmem:[#allocation5 + $0x190] sm:$0xff]
        %v1719 = vld [vmem:[#allocation5 + $0x198] sm:$0xff]
        %v1720 = vld [vmem:[#allocation5 + $0x1d0] sm:$0xff]
        %v1721 = vld [vmem:[#allocation5 + $0x1d8] sm:$0xff]
        %v1722 = vld [vmem:[#allocation5 + $0x210] sm:$0xff]
        %v1723 = vld [vmem:[#allocation5 + $0x218] sm:$0xff]
        %v1724 = vld [vmem:[#allocation5 + $0x250] sm:$0xff]
        %v1725 = vld [vmem:[#allocation5 + $0x258] sm:$0xff]
        %v1726 = vld [vmem:[#allocation5 + $0x290] sm:$0xff]
        %v1727 = vld [vmem:[#allocation5 + $0x298] sm:$0xff]
        %v1728 = vld [vmem:[#allocation5 + $0x2d0] sm:$0xff]
        %v1729 = vld [vmem:[#allocation5 + $0x2d8] sm:$0xff]
        %v1730 = vld [vmem:[#allocation5 + $0x310] sm:$0xff]
        %v1731 = vld [vmem:[#allocation5 + $0x318] sm:$0xff]
        %v1732 = vld [vmem:[#allocation5 + $0x350] sm:$0xff]
        %v1733 = vld [vmem:[#allocation5 + $0x358] sm:$0xff]
        %v1734 = vld [vmem:[#allocation5 + $0x390] sm:$0xff]
        %v1735 = vld [vmem:[#allocation5 + $0x398] sm:$0xff]
        %v1736 = vld [vmem:[#allocation5 + $0x3d0] sm:$0xff]
        %v1737 = vld [vmem:[#allocation5 + $0x3d8] sm:$0xff]
        %v1738 = vld [vmem:[%s2 + $0x4] sm:$0xf]
        %v1740 = vlaneseq
        %v1741 = vshrl.u32 %v1740, 7
        %v1742 = vsub.s32 0, %v1741
        %v1743 = vrot.slane %v1738, %v1742
        %v1744 = vlaneseq
        %v1745 = vshrl.u32 %v1744, 7
        %v1746 = vsub.s32 1, %v1745
        %v1747 = vrot.slane %v1738, %v1746
        %v1748 = vlaneseq
        %v1749 = vshrl.u32 %v1748, 7
        %v1750 = vsub.s32 2, %v1749
        %v1751 = vrot.slane %v1738, %v1750
        %v1752 = vlaneseq
        %v1753 = vshrl.u32 %v1752, 7
        %v1754 = vsub.s32 3, %v1753
        %v1755 = vrot.slane %v1738, %v1754
        %v1792 = vunpack.c.l.b16 %v1706
        %v1793 = vunpack.c.h.b16 %v1706
        %v1794 = vunpack.c.l.b16 %v1707
        %v1795 = vunpack.c.h.b16 %v1707
        %v1796 = vunpack.c.l.b16 %v1708
        %v1797 = vunpack.c.h.b16 %v1708
        %v1798 = vunpack.c.l.b16 %v1709
        %v1799 = vunpack.c.h.b16 %v1709
        %v1800 = vunpack.c.l.b16 %v1710
        %v1801 = vunpack.c.h.b16 %v1710
        %v1802 = vunpack.c.l.b16 %v1711
        %v1803 = vunpack.c.h.b16 %v1711
        %v1804 = vunpack.c.l.b16 %v1712
        %v1805 = vunpack.c.h.b16 %v1712
        %v1806 = vunpack.c.l.b16 %v1713
        %v1807 = vunpack.c.h.b16 %v1713
        %v1808 = vunpack.c.l.b16 %v1714
        %v1809 = vunpack.c.h.b16 %v1714
        %v1810 = vunpack.c.l.b16 %v1715
        %v1811 = vunpack.c.h.b16 %v1715
        %v1812 = vunpack.c.l.b16 %v1716
        %v1813 = vunpack.c.h.b16 %v1716
        %v1814 = vunpack.c.l.b16 %v1717
        %v1815 = vunpack.c.h.b16 %v1717
        %v1816 = vunpack.c.l.b16 %v1718
        %v1817 = vunpack.c.h.b16 %v1718
        %v1818 = vunpack.c.l.b16 %v1719
        %v1819 = vunpack.c.h.b16 %v1719
        %v1820 = vunpack.c.l.b16 %v1720
        %v1821 = vunpack.c.h.b16 %v1720
        %v1822 = vunpack.c.l.b16 %v1721
        %v1823 = vunpack.c.h.b16 %v1721
        %v1824 = vunpack.c.l.b16 %v1722
        %v1825 = vunpack.c.h.b16 %v1722
        %v1826 = vunpack.c.l.b16 %v1723
        %v1827 = vunpack.c.h.b16 %v1723
        %v1828 = vunpack.c.l.b16 %v1724
        %v1829 = vunpack.c.h.b16 %v1724
        %v1830 = vunpack.c.l.b16 %v1725
        %v1831 = vunpack.c.h.b16 %v1725
        %v1832 = vunpack.c.l.b16 %v1726
        %v1833 = vunpack.c.h.b16 %v1726
        %v1834 = vunpack.c.l.b16 %v1727
        %v1835 = vunpack.c.h.b16 %v1727
        %v1836 = vunpack.c.l.b16 %v1728
        %v1837 = vunpack.c.h.b16 %v1728
        %v1838 = vunpack.c.l.b16 %v1729
        %v1839 = vunpack.c.h.b16 %v1729
        %v1840 = vunpack.c.l.b16 %v1730
        %v1841 = vunpack.c.h.b16 %v1730
        %v1842 = vunpack.c.l.b16 %v1731
        %v1843 = vunpack.c.h.b16 %v1731
        %v1844 = vunpack.c.l.b16 %v1732
        %v1845 = vunpack.c.h.b16 %v1732
        %v1846 = vunpack.c.l.b16 %v1733
        %v1847 = vunpack.c.h.b16 %v1733
        %v1848 = vunpack.c.l.b16 %v1734
        %v1849 = vunpack.c.h.b16 %v1734
        %v1850 = vunpack.c.l.b16 %v1735
        %v1851 = vunpack.c.h.b16 %v1735
        %v1852 = vunpack.c.l.b16 %v1736
        %v1853 = vunpack.c.h.b16 %v1736
        %v1854 = vunpack.c.l.b16 %v1737
        %v1855 = vunpack.c.h.b16 %v1737
        %v1856 = vpack.c.b16 %v1796, %v1792
        %v1857 = vpack.c.b16 %v1797, %v1793
        %v1858 = vpack.c.b16 %v1798, %v1794
        %v1859 = vpack.c.b16 %v1799, %v1795
        %v1860 = vpack.c.b16 %v1804, %v1800
        %v1861 = vpack.c.b16 %v1805, %v1801
        %v1862 = vpack.c.b16 %v1806, %v1802
        %v1863 = vpack.c.b16 %v1807, %v1803
        %v1864 = vpack.c.b16 %v1812, %v1808
        %v1865 = vpack.c.b16 %v1813, %v1809
        %v1866 = vpack.c.b16 %v1814, %v1810
        %v1867 = vpack.c.b16 %v1815, %v1811
        %v1868 = vpack.c.b16 %v1820, %v1816
        %v1869 = vpack.c.b16 %v1821, %v1817
        %v1870 = vpack.c.b16 %v1822, %v1818
        %v1871 = vpack.c.b16 %v1823, %v1819
        %v1872 = vpack.c.b16 %v1828, %v1824
        %v1873 = vpack.c.b16 %v1829, %v1825
        %v1874 = vpack.c.b16 %v1830, %v1826
        %v1875 = vpack.c.b16 %v1831, %v1827
        %v1876 = vpack.c.b16 %v1836, %v1832
        %v1877 = vpack.c.b16 %v1837, %v1833
        %v1878 = vpack.c.b16 %v1838, %v1834
        %v1879 = vpack.c.b16 %v1839, %v1835
        %v1880 = vpack.c.b16 %v1844, %v1840
        %v1881 = vpack.c.b16 %v1845, %v1841
        %v1882 = vpack.c.b16 %v1846, %v1842
        %v1883 = vpack.c.b16 %v1847, %v1843
        %v1884 = vpack.c.b16 %v1852, %v1848
        %v1885 = vpack.c.b16 %v1853, %v1849
        %v1886 = vpack.c.b16 %v1854, %v1850
        %v1887 = vpack.c.b16 %v1855, %v1851
        %1920 = vmatprep.subr.bf16.mxu0 %v1857
        %1921 = vmatpush1.bf16.msra.mxu0 %v1856
        %1922 = vmatprep.subr.bf16.mxu0 %v1861
        %1923 = vmatpush1.bf16.msra.mxu0 %v1860
        %1924 = vmatprep.subr.bf16.mxu0 %v1865
        %1925 = vmatpush1.bf16.msra.mxu0 %v1864
        %1926 = vmatprep.subr.bf16.mxu0 %v1869
        %1927 = vmatpush1.bf16.msra.mxu0 %v1868
        %1928 = vmatprep.subr.bf16.mxu0 %v1873
        %1929 = vmatpush1.bf16.msra.mxu0 %v1872
        %1930 = vmatprep.subr.bf16.mxu0 %v1877
        %1931 = vmatpush1.bf16.msra.mxu0 %v1876
        %1932 = vmatprep.subr.bf16.mxu0 %v1881
        %1933 = vmatpush1.bf16.msra.mxu0 %v1880
        %1934 = vmatprep.subr.bf16.mxu0 %v1885
        %1935 = vmatpush1.bf16.msra.mxu0 %v1884
        %1936 = vmatprep.subr.bf16.mxu0 0
        %1937 = vmatpush1.bf16.msra.mxu0 0
        %1938 = vmatprep.subr.bf16.mxu0 0
        %1939 = vmatpush1.bf16.msra.mxu0 0
        %1940 = vmatprep.subr.bf16.mxu0 0
        %1941 = vmatpush1.bf16.msra.mxu0 0
        %1942 = vmatprep.subr.bf16.mxu0 0
        %1943 = vmatpush1.bf16.msra.mxu0 0
        %1944 = vmatprep.subr.bf16.mxu0 0
        %1945 = vmatpush1.bf16.msra.mxu0 0
        %1946 = vmatprep.subr.bf16.mxu0 0
        %1947 = vmatpush1.bf16.msra.mxu0 0
        %1948 = vmatprep.subr.bf16.mxu0 0
        %1949 = vmatpush1.bf16.msra.mxu0 0
        %1950 = vmatprep.subr.bf16.mxu0 0
        %1951 = vmatpush1.bf16.msra.mxu0 0
        %1952 = vmatprep.mubr.bf16.mxu0 0
        %1953 = vmatmul.mubr.bf16.gmra.mrb[0].mxu0 %v422
        %v1954 = vpop.f32.mrb[0].mxu0
        %v1955 = vadd.f32 %v1743, %v1954
        %v1956 = vpop.f32.mrb[0].mxu0
        %v1957 = vadd.f32 %v1747, %v1956
        %v1958 = vpop.f32.mrb[0].mxu0
        %v1959 = vadd.f32 %v1743, %v1958
        %v1960 = vpop.f32.mrb[0].mxu0
        %v1961 = vadd.f32 %v1747, %v1960
        %1962 = vmatprep.mubr.bf16.mxu0 0
        %1963 = vmatmul.mubr.bf16.gmra.mrb[0].mxu0 %v423
        %v1964 = vpop.f32.mrb[0].mxu0
        %v1965 = vadd.f32 %v1743, %v1964
        %v1966 = vpop.f32.mrb[0].mxu0
        %v1967 = vadd.f32 %v1747, %v1966
        %v1968 = vpop.f32.mrb[0].mxu0
        %v1969 = vadd.f32 %v1743, %v1968
        %v1970 = vpop.f32.mrb[0].mxu0
        %v1971 = vadd.f32 %v1747, %v1970
        %1972 = vmatprep.mubr.bf16.mxu0 0
        %1973 = vmatmul.mubr.bf16.gmra.mrb[0].mxu0 %v424
        %v1974 = vpop.f32.mrb[0].mxu0
        %v1975 = vadd.f32 %v1743, %v1974
        %v1976 = vpop.f32.mrb[0].mxu0
        %v1977 = vadd.f32 %v1747, %v1976
        %v1978 = vpop.f32.mrb[0].mxu0
        %v1979 = vadd.f32 %v1743, %v1978
        %v1980 = vpop.f32.mrb[0].mxu0
        %v1981 = vadd.f32 %v1747, %v1980
        %1982 = vmatprep.mubr.bf16.mxu0 0
        %1983 = vmatmul.mubr.bf16.gmra.mrb[0].mxu0 %v425
        %v1984 = vpop.f32.mrb[0].mxu0
        %v1985 = vadd.f32 %v1743, %v1984
        %v1986 = vpop.f32.mrb[0].mxu0
        %v1987 = vadd.f32 %v1747, %v1986
        %v1988 = vpop.f32.mrb[0].mxu0
        %v1989 = vadd.f32 %v1743, %v1988
        %v1990 = vpop.f32.mrb[0].mxu0
        %v1991 = vadd.f32 %v1747, %v1990
        %1992 = vmatprep.mubr.bf16.mxu0 0
        %1993 = vmatmul.mubr.bf16.gmra.mrb[0].mxu0 %v426
        %v1994 = vpop.f32.mrb[0].mxu0
        %v1995 = vadd.f32 %v1743, %v1994
        %v1996 = vpop.f32.mrb[0].mxu0
        %v1997 = vadd.f32 %v1747, %v1996
        %v1998 = vpop.f32.mrb[0].mxu0
        %v1999 = vadd.f32 %v1743, %v1998
        %v2000 = vpop.f32.mrb[0].mxu0
        %v2001 = vadd.f32 %v1747, %v2000
        %2002 = vmatprep.mubr.bf16.mxu0 0
        %2003 = vmatmul.mubr.bf16.gmra.mrb[0].mxu0 %v427
        %v2004 = vpop.f32.mrb[0].mxu0
        %v2005 = vadd.f32 %v1743, %v2004
        %v2006 = vpop.f32.mrb[0].mxu0
        %v2007 = vadd.f32 %v1747, %v2006
        %v2008 = vpop.f32.mrb[0].mxu0
        %v2009 = vadd.f32 %v1743, %v2008
        %v2010 = vpop.f32.mrb[0].mxu0
        %v2011 = vadd.f32 %v1747, %v2010
        %2012 = vmatprep.mubr.bf16.mxu0 0
        %2013 = vmatmul.mubr.bf16.gmra.mrb[0].mxu0 %v428
        %v2014 = vpop.f32.mrb[0].mxu0
        %v2015 = vadd.f32 %v1743, %v2014
        %v2016 = vpop.f32.mrb[0].mxu0
        %v2017 = vadd.f32 %v1747, %v2016
        %v2018 = vpop.f32.mrb[0].mxu0
        %v2019 = vadd.f32 %v1743, %v2018
        %v2020 = vpop.f32.mrb[0].mxu0
        %v2021 = vadd.f32 %v1747, %v2020
        %2022 = vmatprep.mubr.bf16.mxu0 0
        %2023 = vmatmul.mubr.bf16.gmra.mrb[0].mxu0 %v429
        %v2024 = vpop.f32.mrb[0].mxu0
        %v2025 = vadd.f32 %v1743, %v2024
        %v2026 = vpop.f32.mrb[0].mxu0
        %v2027 = vadd.f32 %v1747, %v2026
        %v2028 = vpop.f32.mrb[0].mxu0
        %v2029 = vadd.f32 %v1743, %v2028
        %v2030 = vpop.f32.mrb[0].mxu0
        %v2031 = vadd.f32 %v1747, %v2030
        %2032 = vmatprep.mubr.bf16.mxu0 0
        %2033 = vmatmul.mubr.bf16.gmra.mrb[0].mxu0 %v430
        %v2034 = vpop.f32.mrb[0].mxu0
        %v2035 = vadd.f32 %v1743, %v2034
        %v2036 = vpop.f32.mrb[0].mxu0
        %v2037 = vadd.f32 %v1747, %v2036
        %v2038 = vpop.f32.mrb[0].mxu0
        %v2039 = vadd.f32 %v1743, %v2038
        %v2040 = vpop.f32.mrb[0].mxu0
        %v2041 = vadd.f32 %v1747, %v2040
        %2042 = vmatprep.mubr.bf16.mxu0 0
        %2043 = vmatmul.mubr.bf16.gmra.mrb[0].mxu0 %v431
        %v2044 = vpop.f32.mrb[0].mxu0
        %v2045 = vadd.f32 %v1743, %v2044
        %v2046 = vpop.f32.mrb[0].mxu0
        %v2047 = vadd.f32 %v1747, %v2046
        %v2048 = vpop.f32.mrb[0].mxu0
        %v2049 = vadd.f32 %v1743, %v2048
        %v2050 = vpop.f32.mrb[0].mxu0
        %v2051 = vadd.f32 %v1747, %v2050
        %2052 = vmatprep.mubr.bf16.mxu0 0
        %2053 = vmatmul.mubr.bf16.gmra.mrb[0].mxu0 %v432
        %v2054 = vpop.f32.mrb[0].mxu0
        %v2055 = vadd.f32 %v1743, %v2054
        %v2056 = vpop.f32.mrb[0].mxu0
        %v2057 = vadd.f32 %v1747, %v2056
        %v2058 = vpop.f32.mrb[0].mxu0
        %v2059 = vadd.f32 %v1743, %v2058
        %v2060 = vpop.f32.mrb[0].mxu0
        %v2061 = vadd.f32 %v1747, %v2060
        %2062 = vmatprep.mubr.bf16.mxu0 0
        %2063 = vmatmul.mubr.bf16.gmra.mrb[0].mxu0 %v433
        %v2064 = vpop.f32.mrb[0].mxu0
        %v2065 = vadd.f32 %v1743, %v2064
        %v2066 = vpop.f32.mrb[0].mxu0
        %v2067 = vadd.f32 %v1747, %v2066
        %v2068 = vpop.f32.mrb[0].mxu0
        %v2069 = vadd.f32 %v1743, %v2068
        %v2070 = vpop.f32.mrb[0].mxu0
        %v2071 = vadd.f32 %v1747, %v2070
        %2072 = vmatprep.mubr.bf16.mxu0 0
        %2073 = vmatmul.mubr.bf16.gmra.mrb[0].mxu0 %v434
        %v2074 = vpop.f32.mrb[0].mxu0
        %v2075 = vadd.f32 %v1743, %v2074
        %v2076 = vpop.f32.mrb[0].mxu0
        %v2077 = vadd.f32 %v1747, %v2076
        %v2078 = vpop.f32.mrb[0].mxu0
        %v2079 = vadd.f32 %v1743, %v2078
        %v2080 = vpop.f32.mrb[0].mxu0
        %v2081 = vadd.f32 %v1747, %v2080
        %2082 = vmatprep.mubr.bf16.mxu0 0
        %2083 = vmatmul.mubr.bf16.gmra.mrb[0].mxu0 %v435
        %v2084 = vpop.f32.mrb[0].mxu0
        %v2085 = vadd.f32 %v1743, %v2084
        %v2086 = vpop.f32.mrb[0].mxu0
        %v2087 = vadd.f32 %v1747, %v2086
        %v2088 = vpop.f32.mrb[0].mxu0
        %v2089 = vadd.f32 %v1743, %v2088
        %v2090 = vpop.f32.mrb[0].mxu0
        %v2091 = vadd.f32 %v1747, %v2090
        %2092 = vmatprep.mubr.bf16.mxu0 0
        %2093 = vmatmul.mubr.bf16.gmra.mrb[0].mxu0 %v436
        %v2094 = vpop.f32.mrb[0].mxu0
        %v2095 = vadd.f32 %v1743, %v2094
        %v2096 = vpop.f32.mrb[0].mxu0
        %v2097 = vadd.f32 %v1747, %v2096
        %v2098 = vpop.f32.mrb[0].mxu0
        %v2099 = vadd.f32 %v1743, %v2098
        %v2100 = vpop.f32.mrb[0].mxu0
        %v2101 = vadd.f32 %v1747, %v2100
        %2102 = vmatprep.mubr.bf16.mxu0 0
        %2103 = vmatmul.mubr.bf16.gmra.mrb[0].mxu0 %v437
        %v2104 = vpop.f32.mrb[0].mxu0
        %v2105 = vadd.f32 %v1743, %v2104
        %v2106 = vpop.f32.mrb[0].mxu0
        %v2107 = vadd.f32 %v1747, %v2106
        %v2108 = vpop.f32.mrb[0].mxu0
        %v2109 = vadd.f32 %v1743, %v2108
        %v2110 = vpop.f32.mrb[0].mxu0
        %v2111 = vadd.f32 %v1747, %v2110
        %2112 = vdwg.mxu0
        %2113 = vmatprep.subr.bf16.mxu0 %v1859
        %2114 = vmatpush1.bf16.msra.mxu0 %v1858
        %2115 = vmatprep.subr.bf16.mxu0 %v1863
        %2116 = vmatpush1.bf16.msra.mxu0 %v1862
        %2117 = vmatprep.subr.bf16.mxu0 %v1867
        %2118 = vmatpush1.bf16.msra.mxu0 %v1866
        %2119 = vmatprep.subr.bf16.mxu0 %v1871
        %2120 = vmatpush1.bf16.msra.mxu0 %v1870
        %2121 = vmatprep.subr.bf16.mxu0 %v1875
        %2122 = vmatpush1.bf16.msra.mxu0 %v1874
        %2123 = vmatprep.subr.bf16.mxu0 %v1879
        %2124 = vmatpush1.bf16.msra.mxu0 %v1878
        %2125 = vmatprep.subr.bf16.mxu0 %v1883
        %2126 = vmatpush1.bf16.msra.mxu0 %v1882
        %2127 = vmatprep.subr.bf16.mxu0 %v1887
        %2128 = vmatpush1.bf16.msra.mxu0 %v1886
        %2129 = vmatprep.subr.bf16.mxu0 0
        %2130 = vmatpush1.bf16.msra.mxu0 0
        %2131 = vmatprep.subr.bf16.mxu0 0
        %2132 = vmatpush1.bf16.msra.mxu0 0
        %2133 = vmatprep.subr.bf16.mxu0 0
        %2134 = vmatpush1.bf16.msra.mxu0 0
        %2135 = vmatprep.subr.bf16.mxu0 0
        %2136 = vmatpush1.bf16.msra.mxu0 0
        %2137 = vmatprep.subr.bf16.mxu0 0
        %2138 = vmatpush1.bf16.msra.mxu0 0
        %2139 = vmatprep.subr.bf16.mxu0 0
        %2140 = vmatpush1.bf16.msra.mxu0 0
        %2141 = vmatprep.subr.bf16.mxu0 0
        %2142 = vmatpush1.bf16.msra.mxu0 0
        %2143 = vmatprep.subr.bf16.mxu0 0
        %2144 = vmatpush1.bf16.msra.mxu0 0
        %2145 = vmatprep.mubr.bf16.mxu0 0
        %2146 = vmatmul.mubr.bf16.gmra.mrb[0].mxu0 %v422
        %v2147 = vpop.f32.mrb[0].mxu0
        %v2148 = vadd.f32 %v1751, %v2147
        %v2149 = vpop.f32.mrb[0].mxu0
        %v2150 = vadd.f32 %v1755, %v2149
        %v2151 = vpop.f32.mrb[0].mxu0
        %v2152 = vadd.f32 %v1751, %v2151
        %v2153 = vpop.f32.mrb[0].mxu0
        %v2154 = vadd.f32 %v1755, %v2153
        %2155 = vmatprep.mubr.bf16.mxu0 0
        %2156 = vmatmul.mubr.bf16.gmra.mrb[0].mxu0 %v423
        %v2157 = vpop.f32.mrb[0].mxu0
        %v2158 = vadd.f32 %v1751, %v2157
        %v2159 = vpop.f32.mrb[0].mxu0
        %v2160 = vadd.f32 %v1755, %v2159
        %v2161 = vpop.f32.mrb[0].mxu0
        %v2162 = vadd.f32 %v1751, %v2161
        %v2163 = vpop.f32.mrb[0].mxu0
        %v2164 = vadd.f32 %v1755, %v2163
        %2165 = vmatprep.mubr.bf16.mxu0 0
        %2166 = vmatmul.mubr.bf16.gmra.mrb[0].mxu0 %v424
        %v2167 = vpop.f32.mrb[0].mxu0
        %v2168 = vadd.f32 %v1751, %v2167
        %v2169 = vpop.f32.mrb[0].mxu0
        %v2170 = vadd.f32 %v1755, %v2169
        %v2171 = vpop.f32.mrb[0].mxu0
        %v2172 = vadd.f32 %v1751, %v2171
        %v2173 = vpop.f32.mrb[0].mxu0
        %v2174 = vadd.f32 %v1755, %v2173
        %2175 = vmatprep.mubr.bf16.mxu0 0
        %2176 = vmatmul.mubr.bf16.gmra.mrb[0].mxu0 %v425
        %v2177 = vpop.f32.mrb[0].mxu0
        %v2178 = vadd.f32 %v1751, %v2177
        %v2179 = vpop.f32.mrb[0].mxu0
        %v2180 = vadd.f32 %v1755, %v2179
        %v2181 = vpop.f32.mrb[0].mxu0
        %v2182 = vadd.f32 %v1751, %v2181
        %v2183 = vpop.f32.mrb[0].mxu0
        %v2184 = vadd.f32 %v1755, %v2183
        %2185 = vmatprep.mubr.bf16.mxu0 0
        %2186 = vmatmul.mubr.bf16.gmra.mrb[0].mxu0 %v426
        %v2187 = vpop.f32.mrb[0].mxu0
        %v2188 = vadd.f32 %v1751, %v2187
        %v2189 = vpop.f32.mrb[0].mxu0
        %v2190 = vadd.f32 %v1755, %v2189
        %v2191 = vpop.f32.mrb[0].mxu0
        %v2192 = vadd.f32 %v1751, %v2191
        %v2193 = vpop.f32.mrb[0].mxu0
        %v2194 = vadd.f32 %v1755, %v2193
        %2195 = vmatprep.mubr.bf16.mxu0 0
        %2196 = vmatmul.mubr.bf16.gmra.mrb[0].mxu0 %v427
        %v2197 = vpop.f32.mrb[0].mxu0
        %v2198 = vadd.f32 %v1751, %v2197
        %v2199 = vpop.f32.mrb[0].mxu0
        %v2200 = vadd.f32 %v1755, %v2199
        %v2201 = vpop.f32.mrb[0].mxu0
        %v2202 = vadd.f32 %v1751, %v2201
        %v2203 = vpop.f32.mrb[0].mxu0
        %v2204 = vadd.f32 %v1755, %v2203
        %2205 = vmatprep.mubr.bf16.mxu0 0
        %2206 = vmatmul.mubr.bf16.gmra.mrb[0].mxu0 %v428
        %v2207 = vpop.f32.mrb[0].mxu0
        %v2208 = vadd.f32 %v1751, %v2207
        %v2209 = vpop.f32.mrb[0].mxu0
        %v2210 = vadd.f32 %v1755, %v2209
        %v2211 = vpop.f32.mrb[0].mxu0
        %v2212 = vadd.f32 %v1751, %v2211
        %v2213 = vpop.f32.mrb[0].mxu0
        %v2214 = vadd.f32 %v1755, %v2213
        %2215 = vmatprep.mubr.bf16.mxu0 0
        %2216 = vmatmul.mubr.bf16.gmra.mrb[0].mxu0 %v429
        %v2217 = vpop.f32.mrb[0].mxu0
        %v2218 = vadd.f32 %v1751, %v2217
        %v2219 = vpop.f32.mrb[0].mxu0
        %v2220 = vadd.f32 %v1755, %v2219
        %v2221 = vpop.f32.mrb[0].mxu0
        %v2222 = vadd.f32 %v1751, %v2221
        %v2223 = vpop.f32.mrb[0].mxu0
        %v2224 = vadd.f32 %v1755, %v2223
        %2225 = vmatprep.mubr.bf16.mxu0 0
        %2226 = vmatmul.mubr.bf16.gmra.mrb[0].mxu0 %v430
        %v2227 = vpop.f32.mrb[0].mxu0
        %v2228 = vadd.f32 %v1751, %v2227
        %v2229 = vpop.f32.mrb[0].mxu0
        %v2230 = vadd.f32 %v1755, %v2229
        %v2231 = vpop.f32.mrb[0].mxu0
        %v2232 = vadd.f32 %v1751, %v2231
        %v2233 = vpop.f32.mrb[0].mxu0
        %v2234 = vadd.f32 %v1755, %v2233
        %2235 = vmatprep.mubr.bf16.mxu0 0
        %2236 = vmatmul.mubr.bf16.gmra.mrb[0].mxu0 %v431
        %v2237 = vpop.f32.mrb[0].mxu0
        %v2238 = vadd.f32 %v1751, %v2237
        %v2239 = vpop.f32.mrb[0].mxu0
        %v2240 = vadd.f32 %v1755, %v2239
        %v2241 = vpop.f32.mrb[0].mxu0
        %v2242 = vadd.f32 %v1751, %v2241
        %v2243 = vpop.f32.mrb[0].mxu0
        %v2244 = vadd.f32 %v1755, %v2243
        %2245 = vmatprep.mubr.bf16.mxu0 0
        %2246 = vmatmul.mubr.bf16.gmra.mrb[0].mxu0 %v432
        %v2247 = vpop.f32.mrb[0].mxu0
        %v2248 = vadd.f32 %v1751, %v2247
        %v2249 = vpop.f32.mrb[0].mxu0
        %v2250 = vadd.f32 %v1755, %v2249
        %v2251 = vpop.f32.mrb[0].mxu0
        %v2252 = vadd.f32 %v1751, %v2251
        %v2253 = vpop.f32.mrb[0].mxu0
        %v2254 = vadd.f32 %v1755, %v2253
        %2255 = vmatprep.mubr.bf16.mxu0 0
        %2256 = vmatmul.mubr.bf16.gmra.mrb[0].mxu0 %v433
        %v2257 = vpop.f32.mrb[0].mxu0
        %v2258 = vadd.f32 %v1751, %v2257
        %v2259 = vpop.f32.mrb[0].mxu0
        %v2260 = vadd.f32 %v1755, %v2259
        %v2261 = vpop.f32.mrb[0].mxu0
        %v2262 = vadd.f32 %v1751, %v2261
        %v2263 = vpop.f32.mrb[0].mxu0
        %v2264 = vadd.f32 %v1755, %v2263
        %2265 = vmatprep.mubr.bf16.mxu0 0
        %2266 = vmatmul.mubr.bf16.gmra.mrb[0].mxu0 %v434
        %v2267 = vpop.f32.mrb[0].mxu0
        %v2268 = vadd.f32 %v1751, %v2267
        %v2269 = vpop.f32.mrb[0].mxu0
        %v2270 = vadd.f32 %v1755, %v2269
        %v2271 = vpop.f32.mrb[0].mxu0
        %v2272 = vadd.f32 %v1751, %v2271
        %v2273 = vpop.f32.mrb[0].mxu0
        %v2274 = vadd.f32 %v1755, %v2273
        %2275 = vmatprep.mubr.bf16.mxu0 0
        %2276 = vmatmul.mubr.bf16.gmra.mrb[0].mxu0 %v435
        %v2277 = vpop.f32.mrb[0].mxu0
        %v2278 = vadd.f32 %v1751, %v2277
        %v2279 = vpop.f32.mrb[0].mxu0
        %v2280 = vadd.f32 %v1755, %v2279
        %v2281 = vpop.f32.mrb[0].mxu0
        %v2282 = vadd.f32 %v1751, %v2281
        %v2283 = vpop.f32.mrb[0].mxu0
        %v2284 = vadd.f32 %v1755, %v2283
        %2285 = vmatprep.mubr.bf16.mxu0 0
        %2286 = vmatmul.mubr.bf16.gmra.mrb[0].mxu0 %v436
        %v2287 = vpop.f32.mrb[0].mxu0
        %v2288 = vadd.f32 %v1751, %v2287
        %v2289 = vpop.f32.mrb[0].mxu0
        %v2290 = vadd.f32 %v1755, %v2289
        %v2291 = vpop.f32.mrb[0].mxu0
        %v2292 = vadd.f32 %v1751, %v2291
        %v2293 = vpop.f32.mrb[0].mxu0
        %v2294 = vadd.f32 %v1755, %v2293
        %2295 = vmatprep.mubr.bf16.mxu0 0
        %2296 = vmatmul.mubr.bf16.gmra.mrb[0].mxu0 %v437
        %v2297 = vpop.f32.mrb[0].mxu0
        %v2298 = vadd.f32 %v1751, %v2297
        %v2299 = vpop.f32.mrb[0].mxu0
        %v2300 = vadd.f32 %v1755, %v2299
        %v2301 = vpop.f32.mrb[0].mxu0
        %v2302 = vadd.f32 %v1751, %v2301
        %v2303 = vpop.f32.mrb[0].mxu0
        %v2304 = vadd.f32 %v1755, %v2303
        %2305 = vdwg.mxu0
        %v2306 = vmul.f32 %v1955, 0.5
        %v2307 = vmul.f32 %v1957, 0.5
        %v2308 = vmul.f32 %v2148, 0.5
        %v2309 = vmul.f32 %v2150, 0.5
        %v2310 = vmul.f32 %v1959, 0.5
        %v2311 = vmul.f32 %v1961, 0.5
        %v2312 = vmul.f32 %v2152, 0.5
        %v2313 = vmul.f32 %v2154, 0.5
        %v2314 = vmul.f32 %v1965, 0.5
        %v2315 = vmul.f32 %v1967, 0.5
        %v2316 = vmul.f32 %v2158, 0.5
        %v2317 = vmul.f32 %v2160, 0.5
        %v2318 = vmul.f32 %v1969, 0.5
        %v2319 = vmul.f32 %v1971, 0.5
        %v2320 = vmul.f32 %v2162, 0.5
        %v2321 = vmul.f32 %v2164, 0.5
        %v2322 = vmul.f32 %v1975, 0.5
        %v2323 = vmul.f32 %v1977, 0.5
        %v2324 = vmul.f32 %v2168, 0.5
        %v2325 = vmul.f32 %v2170, 0.5
        %v2326 = vmul.f32 %v1979, 0.5
        %v2327 = vmul.f32 %v1981, 0.5
        %v2328 = vmul.f32 %v2172, 0.5
        %v2329 = vmul.f32 %v2174, 0.5
        %v2330 = vmul.f32 %v1985, 0.5
        %v2331 = vmul.f32 %v1987, 0.5
        %v2332 = vmul.f32 %v2178, 0.5
        %v2333 = vmul.f32 %v2180, 0.5
        %v2334 = vmul.f32 %v1989, 0.5
        %v2335 = vmul.f32 %v1991, 0.5
        %v2336 = vmul.f32 %v2182, 0.5
        %v2337 = vmul.f32 %v2184, 0.5
        %v2338 = vmul.f32 %v1995, 0.5
        %v2339 = vmul.f32 %v1997, 0.5
        %v2340 = vmul.f32 %v2188, 0.5
        %v2341 = vmul.f32 %v2190, 0.5
        %v2342 = vmul.f32 %v1999, 0.5
        %v2343 = vmul.f32 %v2001, 0.5
        %v2344 = vmul.f32 %v2192, 0.5
        %v2345 = vmul.f32 %v2194, 0.5
        %v2346 = vmul.f32 %v2005, 0.5
        %v2347 = vmul.f32 %v2007, 0.5
        %v2348 = vmul.f32 %v2198, 0.5
        %v2349 = vmul.f32 %v2200, 0.5
        %v2350 = vmul.f32 %v2009, 0.5
        %v2351 = vmul.f32 %v2011, 0.5
        %v2352 = vmul.f32 %v2202, 0.5
        %v2353 = vmul.f32 %v2204, 0.5
        %v2354 = vmul.f32 %v2015, 0.5
        %v2355 = vmul.f32 %v2017, 0.5
        %v2356 = vmul.f32 %v2208, 0.5
        %v2357 = vmul.f32 %v2210, 0.5
        %v2358 = vmul.f32 %v2019, 0.5
        %v2359 = vmul.f32 %v2021, 0.5
        %v2360 = vmul.f32 %v2212, 0.5
        %v2361 = vmul.f32 %v2214, 0.5
        %v2362 = vmul.f32 %v2025, 0.5
        %v2363 = vmul.f32 %v2027, 0.5
        %v2364 = vmul.f32 %v2218, 0.5
        %v2365 = vmul.f32 %v2220, 0.5
        %v2366 = vmul.f32 %v2029, 0.5
        %v2367 = vmul.f32 %v2031, 0.5
        %v2368 = vmul.f32 %v2222, 0.5
        %v2369 = vmul.f32 %v2224, 0.5
        %v2370 = vmul.f32 %v2035, 0.5
        %v2371 = vmul.f32 %v2037, 0.5
        %v2372 = vmul.f32 %v2228, 0.5
        %v2373 = vmul.f32 %v2230, 0.5
        %v2374 = vmul.f32 %v2039, 0.5
        %v2375 = vmul.f32 %v2041, 0.5
        %v2376 = vmul.f32 %v2232, 0.5
        %v2377 = vmul.f32 %v2234, 0.5
        %v2378 = vmul.f32 %v2045, 0.5
        %v2379 = vmul.f32 %v2047, 0.5
        %v2380 = vmul.f32 %v2238, 0.5
        %v2381 = vmul.f32 %v2240, 0.5
        %v2382 = vmul.f32 %v2049, 0.5
        %v2383 = vmul.f32 %v2051, 0.5
        %v2384 = vmul.f32 %v2242, 0.5
        %v2385 = vmul.f32 %v2244, 0.5
        %v2386 = vmul.f32 %v2055, 0.5
        %v2387 = vmul.f32 %v2057, 0.5
        %v2388 = vmul.f32 %v2248, 0.5
        %v2389 = vmul.f32 %v2250, 0.5
        %v2390 = vmul.f32 %v2059, 0.5
        %v2391 = vmul.f32 %v2061, 0.5
        %v2392 = vmul.f32 %v2252, 0.5
        %v2393 = vmul.f32 %v2254, 0.5
        %v2394 = vmul.f32 %v2065, 0.5
        %v2395 = vmul.f32 %v2067, 0.5
        %v2396 = vmul.f32 %v2258, 0.5
        %v2397 = vmul.f32 %v2260, 0.5
        %v2398 = vmul.f32 %v2069, 0.5
        %v2399 = vmul.f32 %v2071, 0.5
        %v2400 = vmul.f32 %v2262, 0.5
        %v2401 = vmul.f32 %v2264, 0.5
        %v2402 = vmul.f32 %v2075, 0.5
        %v2403 = vmul.f32 %v2077, 0.5
        %v2404 = vmul.f32 %v2268, 0.5
        %v2405 = vmul.f32 %v2270, 0.5
        %v2406 = vmul.f32 %v2079, 0.5
        %v2407 = vmul.f32 %v2081, 0.5
        %v2408 = vmul.f32 %v2272, 0.5
        %v2409 = vmul.f32 %v2274, 0.5
        %v2410 = vmul.f32 %v2085, 0.5
        %v2411 = vmul.f32 %v2087, 0.5
        %v2412 = vmul.f32 %v2278, 0.5
        %v2413 = vmul.f32 %v2280, 0.5
        %v2414 = vmul.f32 %v2089, 0.5
        %v2415 = vmul.f32 %v2091, 0.5
        %v2416 = vmul.f32 %v2282, 0.5
        %v2417 = vmul.f32 %v2284, 0.5
        %v2418 = vmul.f32 %v2095, 0.5
        %v2419 = vmul.f32 %v2097, 0.5
        %v2420 = vmul.f32 %v2288, 0.5
        %v2421 = vmul.f32 %v2290, 0.5
        %v2422 = vmul.f32 %v2099, 0.5
        %v2423 = vmul.f32 %v2101, 0.5
        %v2424 = vmul.f32 %v2292, 0.5
        %v2425 = vmul.f32 %v2294, 0.5
        %v2426 = vmul.f32 %v2105, 0.5
        %v2427 = vmul.f32 %v2107, 0.5
        %v2428 = vmul.f32 %v2298, 0.5
        %v2429 = vmul.f32 %v2300, 0.5
        %v2430 = vmul.f32 %v2109, 0.5
        %v2431 = vmul.f32 %v2111, 0.5
        %v2432 = vmul.f32 %v2302, 0.5
        %v2433 = vmul.f32 %v2304, 0.5
        %v2434 = vmul.f32 %v1955, 0.70710677
        %v2435 = vmul.f32 %v1957, 0.70710677
        %v2436 = vmul.f32 %v2148, 0.70710677
        %v2437 = vmul.f32 %v2150, 0.70710677
        %v2438 = vmul.f32 %v1959, 0.70710677
        %v2439 = vmul.f32 %v1961, 0.70710677
        %v2440 = vmul.f32 %v2152, 0.70710677
        %v2441 = vmul.f32 %v2154, 0.70710677
        %v2442 = vmul.f32 %v1965, 0.70710677
        %v2443 = vmul.f32 %v1967, 0.70710677
        %v2444 = vmul.f32 %v2158, 0.70710677
        %v2445 = vmul.f32 %v2160, 0.70710677
        %v2446 = vmul.f32 %v1969, 0.70710677
        %v2447 = vmul.f32 %v1971, 0.70710677
        %v2448 = vmul.f32 %v2162, 0.70710677
        %v2449 = vmul.f32 %v2164, 0.70710677
        %v2450 = vmul.f32 %v1975, 0.70710677
        %v2451 = vmul.f32 %v1977, 0.70710677
        %v2452 = vmul.f32 %v2168, 0.70710677
        %v2453 = vmul.f32 %v2170, 0.70710677
        %v2454 = vmul.f32 %v1979, 0.70710677
        %v2455 = vmul.f32 %v1981, 0.70710677
        %v2456 = vmul.f32 %v2172, 0.70710677
        %v2457 = vmul.f32 %v2174, 0.70710677
        %v2458 = vmul.f32 %v1985, 0.70710677
        %v2459 = vmul.f32 %v1987, 0.70710677
        %v2460 = vmul.f32 %v2178, 0.70710677
        %v2461 = vmul.f32 %v2180, 0.70710677
        %v2462 = vmul.f32 %v1989, 0.70710677
        %v2463 = vmul.f32 %v1991, 0.70710677
        %v2464 = vmul.f32 %v2182, 0.70710677
        %v2465 = vmul.f32 %v2184, 0.70710677
        %v2466 = vmul.f32 %v1995, 0.70710677
        %v2467 = vmul.f32 %v1997, 0.70710677
        %v2468 = vmul.f32 %v2188, 0.70710677
        %v2469 = vmul.f32 %v2190, 0.70710677
        %v2470 = vmul.f32 %v1999, 0.70710677
        %v2471 = vmul.f32 %v2001, 0.70710677
        %v2472 = vmul.f32 %v2192, 0.70710677
        %v2473 = vmul.f32 %v2194, 0.70710677
        %v2474 = vmul.f32 %v2005, 0.70710677
        %v2475 = vmul.f32 %v2007, 0.70710677
        %v2476 = vmul.f32 %v2198, 0.70710677
        %v2477 = vmul.f32 %v2200, 0.70710677
        %v2478 = vmul.f32 %v2009, 0.70710677
        %v2479 = vmul.f32 %v2011, 0.70710677
        %v2480 = vmul.f32 %v2202, 0.70710677
        %v2481 = vmul.f32 %v2204, 0.70710677
        %v2482 = vmul.f32 %v2015, 0.70710677
        %v2483 = vmul.f32 %v2017, 0.70710677
        %v2484 = vmul.f32 %v2208, 0.70710677
        %v2485 = vmul.f32 %v2210, 0.70710677
        %v2486 = vmul.f32 %v2019, 0.70710677
        %v2487 = vmul.f32 %v2021, 0.70710677
        %v2488 = vmul.f32 %v2212, 0.70710677
        %v2489 = vmul.f32 %v2214, 0.70710677
        %v2490 = vmul.f32 %v2025, 0.70710677
        %v2491 = vmul.f32 %v2027, 0.70710677
        %v2492 = vmul.f32 %v2218, 0.70710677
        %v2493 = vmul.f32 %v2220, 0.70710677
        %v2494 = vmul.f32 %v2029, 0.70710677
        %v2495 = vmul.f32 %v2031, 0.70710677
        %v2496 = vmul.f32 %v2222, 0.70710677
        %v2497 = vmul.f32 %v2224, 0.70710677
        %v2498 = vmul.f32 %v2035, 0.70710677
        %v2499 = vmul.f32 %v2037, 0.70710677
        %v2500 = vmul.f32 %v2228, 0.70710677
        %v2501 = vmul.f32 %v2230, 0.70710677
        %v2502 = vmul.f32 %v2039, 0.70710677
        %v2503 = vmul.f32 %v2041, 0.70710677
        %v2504 = vmul.f32 %v2232, 0.70710677
        %v2505 = vmul.f32 %v2234, 0.70710677
        %v2506 = vmul.f32 %v2045, 0.70710677
        %v2507 = vmul.f32 %v2047, 0.70710677
        %v2508 = vmul.f32 %v2238, 0.70710677
        %v2509 = vmul.f32 %v2240, 0.70710677
        %v2510 = vmul.f32 %v2049, 0.70710677
        %v2511 = vmul.f32 %v2051, 0.70710677
        %v2512 = vmul.f32 %v2242, 0.70710677
        %v2513 = vmul.f32 %v2244, 0.70710677
        %v2514 = vmul.f32 %v2055, 0.70710677
        %v2515 = vmul.f32 %v2057, 0.70710677
        %v2516 = vmul.f32 %v2248, 0.70710677
        %v2517 = vmul.f32 %v2250, 0.70710677
        %v2518 = vmul.f32 %v2059, 0.70710677
        %v2519 = vmul.f32 %v2061, 0.70710677
        %v2520 = vmul.f32 %v2252, 0.70710677
        %v2521 = vmul.f32 %v2254, 0.70710677
        %v2522 = vmul.f32 %v2065, 0.70710677
        %v2523 = vmul.f32 %v2067, 0.70710677
        %v2524 = vmul.f32 %v2258, 0.70710677
        %v2525 = vmul.f32 %v2260, 0.70710677
        %v2526 = vmul.f32 %v2069, 0.70710677
        %v2527 = vmul.f32 %v2071, 0.70710677
        %v2528 = vmul.f32 %v2262, 0.70710677
        %v2529 = vmul.f32 %v2264, 0.70710677
        %v2530 = vmul.f32 %v2075, 0.70710677
        %v2531 = vmul.f32 %v2077, 0.70710677
        %v2532 = vmul.f32 %v2268, 0.70710677
        %v2533 = vmul.f32 %v2270, 0.70710677
        %v2534 = vmul.f32 %v2079, 0.70710677
        %v2535 = vmul.f32 %v2081, 0.70710677
        %v2536 = vmul.f32 %v2272, 0.70710677
        %v2537 = vmul.f32 %v2274, 0.70710677
        %v2538 = vmul.f32 %v2085, 0.70710677
        %v2539 = vmul.f32 %v2087, 0.70710677
        %v2540 = vmul.f32 %v2278, 0.70710677
        %v2541 = vmul.f32 %v2280, 0.70710677
        %v2542 = vmul.f32 %v2089, 0.70710677
        %v2543 = vmul.f32 %v2091, 0.70710677
        %v2544 = vmul.f32 %v2282, 0.70710677
        %v2545 = vmul.f32 %v2284, 0.70710677
        %v2546 = vmul.f32 %v2095, 0.70710677
        %v2547 = vmul.f32 %v2097, 0.70710677
        %v2548 = vmul.f32 %v2288, 0.70710677
        %v2549 = vmul.f32 %v2290, 0.70710677
        %v2550 = vmul.f32 %v2099, 0.70710677
        %v2551 = vmul.f32 %v2101, 0.70710677
        %v2552 = vmul.f32 %v2292, 0.70710677
        %v2553 = vmul.f32 %v2294, 0.70710677
        %v2554 = vmul.f32 %v2105, 0.70710677
        %v2555 = vmul.f32 %v2107, 0.70710677
        %v2556 = vmul.f32 %v2298, 0.70710677
        %v2557 = vmul.f32 %v2300, 0.70710677
        %v2558 = vmul.f32 %v2109, 0.70710677
        %v2559 = vmul.f32 %v2111, 0.70710677
        %v2560 = vmul.f32 %v2302, 0.70710677
        %v2561 = vmul.f32 %v2304, 0.70710677
        %v2562 = verf.f32.pop %v2434
        %v2563 = verf.f32.pop %v2435
        %v2564 = verf.f32.pop %v2436
        %v2565 = verf.f32.pop %v2437
        %v2566 = verf.f32.pop %v2438
        %v2567 = verf.f32.pop %v2439
        %v2568 = verf.f32.pop %v2440
        %v2569 = verf.f32.pop %v2441
        %v2570 = verf.f32.pop %v2442
        %v2571 = verf.f32.pop %v2443
        %v2572 = verf.f32.pop %v2444
        %v2573 = verf.f32.pop %v2445
        %v2574 = verf.f32.pop %v2446
        %v2575 = verf.f32.pop %v2447
        %v2576 = verf.f32.pop %v2448
        %v2577 = verf.f32.pop %v2449
        %v2578 = verf.f32.pop %v2450
        %v2579 = verf.f32.pop %v2451
        %v2580 = verf.f32.pop %v2452
        %v2581 = verf.f32.pop %v2453
        %v2582 = verf.f32.pop %v2454
        %v2583 = verf.f32.pop %v2455
        %v2584 = verf.f32.pop %v2456
        %v2585 = verf.f32.pop %v2457
        %v2586 = verf.f32.pop %v2458
        %v2587 = verf.f32.pop %v2459
        %v2588 = verf.f32.pop %v2460
        %v2589 = verf.f32.pop %v2461
        %v2590 = verf.f32.pop %v2462
        %v2591 = verf.f32.pop %v2463
        %v2592 = verf.f32.pop %v2464
        %v2593 = verf.f32.pop %v2465
        %v2594 = verf.f32.pop %v2466
        %v2595 = verf.f32.pop %v2467
        %v2596 = verf.f32.pop %v2468
        %v2597 = verf.f32.pop %v2469
        %v2598 = verf.f32.pop %v2470
        %v2599 = verf.f32.pop %v2471
        %v2600 = verf.f32.pop %v2472
        %v2601 = verf.f32.pop %v2473
        %v2602 = verf.f32.pop %v2474
        %v2603 = verf.f32.pop %v2475
        %v2604 = verf.f32.pop %v2476
        %v2605 = verf.f32.pop %v2477
        %v2606 = verf.f32.pop %v2478
        %v2607 = verf.f32.pop %v2479
        %v2608 = verf.f32.pop %v2480
        %v2609 = verf.f32.pop %v2481
        %v2610 = verf.f32.pop %v2482
        %v2611 = verf.f32.pop %v2483
        %v2612 = verf.f32.pop %v2484
        %v2613 = verf.f32.pop %v2485
        %v2614 = verf.f32.pop %v2486
        %v2615 = verf.f32.pop %v2487
        %v2616 = verf.f32.pop %v2488
        %v2617 = verf.f32.pop %v2489
        %v2618 = verf.f32.pop %v2490
        %v2619 = verf.f32.pop %v2491
        %v2620 = verf.f32.pop %v2492
        %v2621 = verf.f32.pop %v2493
        %v2622 = verf.f32.pop %v2494
        %v2623 = verf.f32.pop %v2495
        %v2624 = verf.f32.pop %v2496
        %v2625 = verf.f32.pop %v2497
        %v2626 = verf.f32.pop %v2498
        %v2627 = verf.f32.pop %v2499
        %v2628 = verf.f32.pop %v2500
        %v2629 = verf.f32.pop %v2501
        %v2630 = verf.f32.pop %v2502
        %v2631 = verf.f32.pop %v2503
        %v2632 = verf.f32.pop %v2504
        %v2633 = verf.f32.pop %v2505
        %v2634 = verf.f32.pop %v2506
        %v2635 = verf.f32.pop %v2507
        %v2636 = verf.f32.pop %v2508
        %v2637 = verf.f32.pop %v2509
        %v2638 = verf.f32.pop %v2510
        %v2639 = verf.f32.pop %v2511
        %v2640 = verf.f32.pop %v2512
        %v2641 = verf.f32.pop %v2513
        %v2642 = verf.f32.pop %v2514
        %v2643 = verf.f32.pop %v2515
        %v2644 = verf.f32.pop %v2516
        %v2645 = verf.f32.pop %v2517
        %v2646 = verf.f32.pop %v2518
        %v2647 = verf.f32.pop %v2519
        %v2648 = verf.f32.pop %v2520
        %v2649 = verf.f32.pop %v2521
        %v2650 = verf.f32.pop %v2522
        %v2651 = verf.f32.pop %v2523
        %v2652 = verf.f32.pop %v2524
        %v2653 = verf.f32.pop %v2525
        %v2654 = verf.f32.pop %v2526
        %v2655 = verf.f32.pop %v2527
        %v2656 = verf.f32.pop %v2528
        %v2657 = verf.f32.pop %v2529
        %v2658 = verf.f32.pop %v2530
        %v2659 = verf.f32.pop %v2531
        %v2660 = verf.f32.pop %v2532
        %v2661 = verf.f32.pop %v2533
        %v2662 = verf.f32.pop %v2534
        %v2663 = verf.f32.pop %v2535
        %v2664 = verf.f32.pop %v2536
        %v2665 = verf.f32.pop %v2537
        %v2666 = verf.f32.pop %v2538
        %v2667 = verf.f32.pop %v2539
        %v2668 = verf.f32.pop %v2540
        %v2669 = verf.f32.pop %v2541
        %v2670 = verf.f32.pop %v2542
        %v2671 = verf.f32.pop %v2543
        %v2672 = verf.f32.pop %v2544
        %v2673 = verf.f32.pop %v2545
        %v2674 = verf.f32.pop %v2546
        %v2675 = verf.f32.pop %v2547
        %v2676 = verf.f32.pop %v2548
        %v2677 = verf.f32.pop %v2549
        %v2678 = verf.f32.pop %v2550
        %v2679 = verf.f32.pop %v2551
        %v2680 = verf.f32.pop %v2552
        %v2681 = verf.f32.pop %v2553
        %v2682 = verf.f32.pop %v2554
        %v2683 = verf.f32.pop %v2555
        %v2684 = verf.f32.pop %v2556
        %v2685 = verf.f32.pop %v2557
        %v2686 = verf.f32.pop %v2558
        %v2687 = verf.f32.pop %v2559
        %v2688 = verf.f32.pop %v2560
        %v2689 = verf.f32.pop %v2561
        %v2690 = vadd.f32 %v2562, 1.0
        %v2691 = vadd.f32 %v2563, 1.0
        %v2692 = vadd.f32 %v2564, 1.0
        %v2693 = vadd.f32 %v2565, 1.0
        %v2694 = vadd.f32 %v2566, 1.0
        %v2695 = vadd.f32 %v2567, 1.0
        %v2696 = vadd.f32 %v2568, 1.0
        %v2697 = vadd.f32 %v2569, 1.0
        %v2698 = vadd.f32 %v2570, 1.0
        %v2699 = vadd.f32 %v2571, 1.0
        %v2700 = vadd.f32 %v2572, 1.0
        %v2701 = vadd.f32 %v2573, 1.0
        %v2702 = vadd.f32 %v2574, 1.0
        %v2703 = vadd.f32 %v2575, 1.0
        %v2704 = vadd.f32 %v2576, 1.0
        %v2705 = vadd.f32 %v2577, 1.0
        %v2706 = vadd.f32 %v2578, 1.0
        %v2707 = vadd.f32 %v2579, 1.0
        %v2708 = vadd.f32 %v2580, 1.0
        %v2709 = vadd.f32 %v2581, 1.0
        %v2710 = vadd.f32 %v2582, 1.0
        %v2711 = vadd.f32 %v2583, 1.0
        %v2712 = vadd.f32 %v2584, 1.0
        %v2713 = vadd.f32 %v2585, 1.0
        %v2714 = vadd.f32 %v2586, 1.0
        %v2715 = vadd.f32 %v2587, 1.0
        %v2716 = vadd.f32 %v2588, 1.0
        %v2717 = vadd.f32 %v2589, 1.0
        %v2718 = vadd.f32 %v2590, 1.0
        %v2719 = vadd.f32 %v2591, 1.0
        %v2720 = vadd.f32 %v2592, 1.0
        %v2721 = vadd.f32 %v2593, 1.0
        %v2722 = vadd.f32 %v2594, 1.0
        %v2723 = vadd.f32 %v2595, 1.0
        %v2724 = vadd.f32 %v2596, 1.0
        %v2725 = vadd.f32 %v2597, 1.0
        %v2726 = vadd.f32 %v2598, 1.0
        %v2727 = vadd.f32 %v2599, 1.0
        %v2728 = vadd.f32 %v2600, 1.0
        %v2729 = vadd.f32 %v2601, 1.0
        %v2730 = vadd.f32 %v2602, 1.0
        %v2731 = vadd.f32 %v2603, 1.0
        %v2732 = vadd.f32 %v2604, 1.0
        %v2733 = vadd.f32 %v2605, 1.0
        %v2734 = vadd.f32 %v2606, 1.0
        %v2735 = vadd.f32 %v2607, 1.0
        %v2736 = vadd.f32 %v2608, 1.0
        %v2737 = vadd.f32 %v2609, 1.0
        %v2738 = vadd.f32 %v2610, 1.0
        %v2739 = vadd.f32 %v2611, 1.0
        %v2740 = vadd.f32 %v2612, 1.0
        %v2741 = vadd.f32 %v2613, 1.0
        %v2742 = vadd.f32 %v2614, 1.0
        %v2743 = vadd.f32 %v2615, 1.0
        %v2744 = vadd.f32 %v2616, 1.0
        %v2745 = vadd.f32 %v2617, 1.0
        %v2746 = vadd.f32 %v2618, 1.0
        %v2747 = vadd.f32 %v2619, 1.0
        %v2748 = vadd.f32 %v2620, 1.0
        %v2749 = vadd.f32 %v2621, 1.0
        %v2750 = vadd.f32 %v2622, 1.0
        %v2751 = vadd.f32 %v2623, 1.0
        %v2752 = vadd.f32 %v2624, 1.0
        %v2753 = vadd.f32 %v2625, 1.0
        %v2754 = vadd.f32 %v2626, 1.0
        %v2755 = vadd.f32 %v2627, 1.0
        %v2756 = vadd.f32 %v2628, 1.0
        %v2757 = vadd.f32 %v2629, 1.0
        %v2758 = vadd.f32 %v2630, 1.0
        %v2759 = vadd.f32 %v2631, 1.0
        %v2760 = vadd.f32 %v2632, 1.0
        %v2761 = vadd.f32 %v2633, 1.0
        %v2762 = vadd.f32 %v2634, 1.0
        %v2763 = vadd.f32 %v2635, 1.0
        %v2764 = vadd.f32 %v2636, 1.0
        %v2765 = vadd.f32 %v2637, 1.0
        %v2766 = vadd.f32 %v2638, 1.0
        %v2767 = vadd.f32 %v2639, 1.0
        %v2768 = vadd.f32 %v2640, 1.0
        %v2769 = vadd.f32 %v2641, 1.0
        %v2770 = vadd.f32 %v2642, 1.0
        %v2771 = vadd.f32 %v2643, 1.0
        %v2772 = vadd.f32 %v2644, 1.0
        %v2773 = vadd.f32 %v2645, 1.0
        %v2774 = vadd.f32 %v2646, 1.0
        %v2775 = vadd.f32 %v2647, 1.0
        %v2776 = vadd.f32 %v2648, 1.0
        %v2777 = vadd.f32 %v2649, 1.0
        %v2778 = vadd.f32 %v2650, 1.0
        %v2779 = vadd.f32 %v2651, 1.0
        %v2780 = vadd.f32 %v2652, 1.0
        %v2781 = vadd.f32 %v2653, 1.0
        %v2782 = vadd.f32 %v2654, 1.0
        %v2783 = vadd.f32 %v2655, 1.0
        %v2784 = vadd.f32 %v2656, 1.0
        %v2785 = vadd.f32 %v2657, 1.0
        %v2786 = vadd.f32 %v2658, 1.0
        %v2787 = vadd.f32 %v2659, 1.0
        %v2788 = vadd.f32 %v2660, 1.0
        %v2789 = vadd.f32 %v2661, 1.0
        %v2790 = vadd.f32 %v2662, 1.0
        %v2791 = vadd.f32 %v2663, 1.0
        %v2792 = vadd.f32 %v2664, 1.0
        %v2793 = vadd.f32 %v2665, 1.0
        %v2794 = vadd.f32 %v2666, 1.0
        %v2795 = vadd.f32 %v2667, 1.0
        %v2796 = vadd.f32 %v2668, 1.0
        %v2797 = vadd.f32 %v2669, 1.0
        %v2798 = vadd.f32 %v2670, 1.0
        %v2799 = vadd.f32 %v2671, 1.0
        %v2800 = vadd.f32 %v2672, 1.0
        %v2801 = vadd.f32 %v2673, 1.0
        %v2802 = vadd.f32 %v2674, 1.0
        %v2803 = vadd.f32 %v2675, 1.0
        %v2804 = vadd.f32 %v2676, 1.0
        %v2805 = vadd.f32 %v2677, 1.0
        %v2806 = vadd.f32 %v2678, 1.0
        %v2807 = vadd.f32 %v2679, 1.0
        %v2808 = vadd.f32 %v2680, 1.0
        %v2809 = vadd.f32 %v2681, 1.0
        %v2810 = vadd.f32 %v2682, 1.0
        %v2811 = vadd.f32 %v2683, 1.0
        %v2812 = vadd.f32 %v2684, 1.0
        %v2813 = vadd.f32 %v2685, 1.0
        %v2814 = vadd.f32 %v2686, 1.0
        %v2815 = vadd.f32 %v2687, 1.0
        %v2816 = vadd.f32 %v2688, 1.0
        %v2817 = vadd.f32 %v2689, 1.0
        %v2818 = vmul.f32 %v2306, %v2690
        %v2819 = vmul.f32 %v2307, %v2691
        %v2820 = vmul.f32 %v2308, %v2692
        %v2821 = vmul.f32 %v2309, %v2693
        %v2822 = vmul.f32 %v2310, %v2694
        %v2823 = vmul.f32 %v2311, %v2695
        %v2824 = vmul.f32 %v2312, %v2696
        %v2825 = vmul.f32 %v2313, %v2697
        %v2826 = vmul.f32 %v2314, %v2698
        %v2827 = vmul.f32 %v2315, %v2699
        %v2828 = vmul.f32 %v2316, %v2700
        %v2829 = vmul.f32 %v2317, %v2701
        %v2830 = vmul.f32 %v2318, %v2702
        %v2831 = vmul.f32 %v2319, %v2703
        %v2832 = vmul.f32 %v2320, %v2704
        %v2833 = vmul.f32 %v2321, %v2705
        %v2834 = vmul.f32 %v2322, %v2706
        %v2835 = vmul.f32 %v2323, %v2707
        %v2836 = vmul.f32 %v2324, %v2708
        %v2837 = vmul.f32 %v2325, %v2709
        %v2838 = vmul.f32 %v2326, %v2710
        %v2839 = vmul.f32 %v2327, %v2711
        %v2840 = vmul.f32 %v2328, %v2712
        %v2841 = vmul.f32 %v2329, %v2713
        %v2842 = vmul.f32 %v2330, %v2714
        %v2843 = vmul.f32 %v2331, %v2715
        %v2844 = vmul.f32 %v2332, %v2716
        %v2845 = vmul.f32 %v2333, %v2717
        %v2846 = vmul.f32 %v2334, %v2718
        %v2847 = vmul.f32 %v2335, %v2719
        %v2848 = vmul.f32 %v2336, %v2720
        %v2849 = vmul.f32 %v2337, %v2721
        %v2850 = vmul.f32 %v2338, %v2722
        %v2851 = vmul.f32 %v2339, %v2723
        %v2852 = vmul.f32 %v2340, %v2724
        %v2853 = vmul.f32 %v2341, %v2725
        %v2854 = vmul.f32 %v2342, %v2726
        %v2855 = vmul.f32 %v2343, %v2727
        %v2856 = vmul.f32 %v2344, %v2728
        %v2857 = vmul.f32 %v2345, %v2729
        %v2858 = vmul.f32 %v2346, %v2730
        %v2859 = vmul.f32 %v2347, %v2731
        %v2860 = vmul.f32 %v2348, %v2732
        %v2861 = vmul.f32 %v2349, %v2733
        %v2862 = vmul.f32 %v2350, %v2734
        %v2863 = vmul.f32 %v2351, %v2735
        %v2864 = vmul.f32 %v2352, %v2736
        %v2865 = vmul.f32 %v2353, %v2737
        %v2866 = vmul.f32 %v2354, %v2738
        %v2867 = vmul.f32 %v2355, %v2739
        %v2868 = vmul.f32 %v2356, %v2740
        %v2869 = vmul.f32 %v2357, %v2741
        %v2870 = vmul.f32 %v2358, %v2742
        %v2871 = vmul.f32 %v2359, %v2743
        %v2872 = vmul.f32 %v2360, %v2744
        %v2873 = vmul.f32 %v2361, %v2745
        %v2874 = vmul.f32 %v2362, %v2746
        %v2875 = vmul.f32 %v2363, %v2747
        %v2876 = vmul.f32 %v2364, %v2748
        %v2877 = vmul.f32 %v2365, %v2749
        %v2878 = vmul.f32 %v2366, %v2750
        %v2879 = vmul.f32 %v2367, %v2751
        %v2880 = vmul.f32 %v2368, %v2752
        %v2881 = vmul.f32 %v2369, %v2753
        %v2882 = vmul.f32 %v2370, %v2754
        %v2883 = vmul.f32 %v2371, %v2755
        %v2884 = vmul.f32 %v2372, %v2756
        %v2885 = vmul.f32 %v2373, %v2757
        %v2886 = vmul.f32 %v2374, %v2758
        %v2887 = vmul.f32 %v2375, %v2759
        %v2888 = vmul.f32 %v2376, %v2760
        %v2889 = vmul.f32 %v2377, %v2761
        %v2890 = vmul.f32 %v2378, %v2762
        %v2891 = vmul.f32 %v2379, %v2763
        %v2892 = vmul.f32 %v2380, %v2764
        %v2893 = vmul.f32 %v2381, %v2765
        %v2894 = vmul.f32 %v2382, %v2766
        %v2895 = vmul.f32 %v2383, %v2767
        %v2896 = vmul.f32 %v2384, %v2768
        %v2897 = vmul.f32 %v2385, %v2769
        %v2898 = vmul.f32 %v2386, %v2770
        %v2899 = vmul.f32 %v2387, %v2771
        %v2900 = vmul.f32 %v2388, %v2772
        %v2901 = vmul.f32 %v2389, %v2773
        %v2902 = vmul.f32 %v2390, %v2774
        %v2903 = vmul.f32 %v2391, %v2775
        %v2904 = vmul.f32 %v2392, %v2776
        %v2905 = vmul.f32 %v2393, %v2777
        %v2906 = vmul.f32 %v2394, %v2778
        %v2907 = vmul.f32 %v2395, %v2779
        %v2908 = vmul.f32 %v2396, %v2780
        %v2909 = vmul.f32 %v2397, %v2781
        %v2910 = vmul.f32 %v2398, %v2782
        %v2911 = vmul.f32 %v2399, %v2783
        %v2912 = vmul.f32 %v2400, %v2784
        %v2913 = vmul.f32 %v2401, %v2785
        %v2914 = vmul.f32 %v2402, %v2786
        %v2915 = vmul.f32 %v2403, %v2787
        %v2916 = vmul.f32 %v2404, %v2788
        %v2917 = vmul.f32 %v2405, %v2789
        %v2918 = vmul.f32 %v2406, %v2790
        %v2919 = vmul.f32 %v2407, %v2791
        %v2920 = vmul.f32 %v2408, %v2792
        %v2921 = vmul.f32 %v2409, %v2793
        %v2922 = vmul.f32 %v2410, %v2794
        %v2923 = vmul.f32 %v2411, %v2795
        %v2924 = vmul.f32 %v2412, %v2796
        %v2925 = vmul.f32 %v2413, %v2797
        %v2926 = vmul.f32 %v2414, %v2798
        %v2927 = vmul.f32 %v2415, %v2799
        %v2928 = vmul.f32 %v2416, %v2800
        %v2929 = vmul.f32 %v2417, %v2801
        %v2930 = vmul.f32 %v2418, %v2802
        %v2931 = vmul.f32 %v2419, %v2803
        %v2932 = vmul.f32 %v2420, %v2804
        %v2933 = vmul.f32 %v2421, %v2805
        %v2934 = vmul.f32 %v2422, %v2806
        %v2935 = vmul.f32 %v2423, %v2807
        %v2936 = vmul.f32 %v2424, %v2808
        %v2937 = vmul.f32 %v2425, %v2809
        %v2938 = vmul.f32 %v2426, %v2810
        %v2939 = vmul.f32 %v2427, %v2811
        %v2940 = vmul.f32 %v2428, %v2812
        %v2941 = vmul.f32 %v2429, %v2813
        %v2942 = vmul.f32 %v2430, %v2814
        %v2943 = vmul.f32 %v2431, %v2815
        %v2944 = vmul.f32 %v2432, %v2816
        %v2945 = vmul.f32 %v2433, %v2817
        %v2946 = vld [vmem:[#allocation7 + $0x10] sm:$0xff]
        %v2947 = vld [vmem:[#allocation7 + $0x18] sm:$0xff]
        %v2948 = vpack.c.bf16 %v2822, %v2818
        %v2949 = vpack.c.bf16 %v2823, %v2819
        %v2950 = vpack.c.bf16 %v2824, %v2820
        %v2951 = vpack.c.bf16 %v2825, %v2821
        %v2952 = vpack.c.bf16 %v2830, %v2826
        %v2953 = vpack.c.bf16 %v2831, %v2827
        %v2954 = vpack.c.bf16 %v2832, %v2828
        %v2955 = vpack.c.bf16 %v2833, %v2829
        %v2956 = vpack.c.bf16 %v2838, %v2834
        %v2957 = vpack.c.bf16 %v2839, %v2835
        %v2958 = vpack.c.bf16 %v2840, %v2836
        %v2959 = vpack.c.bf16 %v2841, %v2837
        %v2960 = vpack.c.bf16 %v2846, %v2842
        %v2961 = vpack.c.bf16 %v2847, %v2843
        %v2962 = vpack.c.bf16 %v2848, %v2844
        %v2963 = vpack.c.bf16 %v2849, %v2845
        %v2964 = vpack.c.bf16 %v2854, %v2850
        %v2965 = vpack.c.bf16 %v2855, %v2851
        %v2966 = vpack.c.bf16 %v2856, %v2852
        %v2967 = vpack.c.bf16 %v2857, %v2853
        %v2968 = vpack.c.bf16 %v2862, %v2858
        %v2969 = vpack.c.bf16 %v2863, %v2859
        %v2970 = vpack.c.bf16 %v2864, %v2860
        %v2971 = vpack.c.bf16 %v2865, %v2861
        %v2972 = vpack.c.bf16 %v2870, %v2866
        %v2973 = vpack.c.bf16 %v2871, %v2867
        %v2974 = vpack.c.bf16 %v2872, %v2868
        %v2975 = vpack.c.bf16 %v2873, %v2869
        %v2976 = vpack.c.bf16 %v2878, %v2874
        %v2977 = vpack.c.bf16 %v2879, %v2875
        %v2978 = vpack.c.bf16 %v2880, %v2876
        %v2979 = vpack.c.bf16 %v2881, %v2877
        %v2980 = vpack.c.bf16 %v2886, %v2882
        %v2981 = vpack.c.bf16 %v2887, %v2883
        %v2982 = vpack.c.bf16 %v2888, %v2884
        %v2983 = vpack.c.bf16 %v2889, %v2885
        %v2984 = vpack.c.bf16 %v2894, %v2890
        %v2985 = vpack.c.bf16 %v2895, %v2891
        %v2986 = vpack.c.bf16 %v2896, %v2892
        %v2987 = vpack.c.bf16 %v2897, %v2893
        %v2988 = vpack.c.bf16 %v2902, %v2898
        %v2989 = vpack.c.bf16 %v2903, %v2899
        %v2990 = vpack.c.bf16 %v2904, %v2900
        %v2991 = vpack.c.bf16 %v2905, %v2901
        %v2992 = vpack.c.bf16 %v2910, %v2906
        %v2993 = vpack.c.bf16 %v2911, %v2907
        %v2994 = vpack.c.bf16 %v2912, %v2908
        %v2995 = vpack.c.bf16 %v2913, %v2909
        %v2996 = vpack.c.bf16 %v2918, %v2914
        %v2997 = vpack.c.bf16 %v2919, %v2915
        %v2998 = vpack.c.bf16 %v2920, %v2916
        %v2999 = vpack.c.bf16 %v2921, %v2917
        %v3000 = vpack.c.bf16 %v2926, %v2922
        %v3001 = vpack.c.bf16 %v2927, %v2923
        %v3002 = vpack.c.bf16 %v2928, %v2924
        %v3003 = vpack.c.bf16 %v2929, %v2925
        %v3004 = vpack.c.bf16 %v2934, %v2930
        %v3005 = vpack.c.bf16 %v2935, %v2931
        %v3006 = vpack.c.bf16 %v2936, %v2932
        %v3007 = vpack.c.bf16 %v2937, %v2933
        %v3008 = vpack.c.bf16 %v2942, %v2938
        %v3009 = vpack.c.bf16 %v2943, %v2939
        %v3010 = vpack.c.bf16 %v2944, %v2940
        %v3011 = vpack.c.bf16 %v2945, %v2941
        %v3014 = vunpack.c.l.b16 %v2946
        %v3015 = vunpack.c.h.b16 %v2946
        %v3016 = vunpack.c.l.b16 %v2947
        %v3017 = vunpack.c.h.b16 %v2947
        %v3018 = vpack.c.b16 %v3014, %v3014
        %v3019 = vpack.c.b16 %v3015, %v3015
        %v3020 = vpack.c.b16 %v3016, %v3016
        %v3021 = vpack.c.b16 %v3017, %v3017
        %3026 = vmatprep.subr.bf16.mxu0 %v2949
        %3027 = vmatpush1.bf16.xpose.msra.mxu0 %v2948
        %3028 = vmatprep.subr.bf16.mxu0 %v2953
        %3029 = vmatpush1.bf16.xpose.msra.mxu0 %v2952
        %3030 = vmatprep.subr.bf16.mxu0 %v2957
        %3031 = vmatpush1.bf16.xpose.msra.mxu0 %v2956
        %3032 = vmatprep.subr.bf16.mxu0 %v2961
        %3033 = vmatpush1.bf16.xpose.msra.mxu0 %v2960
        %3034 = vmatprep.subr.bf16.mxu0 %v2965
        %3035 = vmatpush1.bf16.xpose.msra.mxu0 %v2964
        %3036 = vmatprep.subr.bf16.mxu0 %v2969
        %3037 = vmatpush1.bf16.xpose.msra.mxu0 %v2968
        %3038 = vmatprep.subr.bf16.mxu0 %v2973
        %3039 = vmatpush1.bf16.xpose.msra.mxu0 %v2972
        %3040 = vmatprep.subr.bf16.mxu0 %v2977
        %3041 = vmatpush1.bf16.xpose.msra.mxu0 %v2976
        %3042 = vmatprep.subr.bf16.mxu0 %v2981
        %3043 = vmatpush1.bf16.xpose.msra.mxu0 %v2980
        %3044 = vmatprep.subr.bf16.mxu0 %v2985
        %3045 = vmatpush1.bf16.xpose.msra.mxu0 %v2984
        %3046 = vmatprep.subr.bf16.mxu0 %v2989
        %3047 = vmatpush1.bf16.xpose.msra.mxu0 %v2988
        %3048 = vmatprep.subr.bf16.mxu0 %v2993
        %3049 = vmatpush1.bf16.xpose.msra.mxu0 %v2992
        %3050 = vmatprep.subr.bf16.mxu0 %v2997
        %3051 = vmatpush1.bf16.xpose.msra.mxu0 %v2996
        %3052 = vmatprep.subr.bf16.mxu0 %v3001
        %3053 = vmatpush1.bf16.xpose.msra.mxu0 %v3000
        %3054 = vmatprep.subr.bf16.mxu0 %v3005
        %3055 = vmatpush1.bf16.xpose.msra.mxu0 %v3004
        %3056 = vmatprep.subr.bf16.mxu0 %v3009
        %3057 = vmatpush1.bf16.xpose.msra.mxu0 %v3008
        %3058 = vmatprep.mubr.bf16.mxu0 %v3019
        %3059 = vmatmul.mubr.bf16.gmra.mrb[0].mxu0 %v3018
        %v3060 = vpop.f32.mrb[0].mxu0
        %v3061 = vadd.f32 0.0, %v3060
        %v3062 = vpop.f32.mrb[0].mxu0
        %v3063 = vadd.f32 0.0, %v3062
        %v3064 = vpop.f32.mrb[0].mxu0
        %v3065 = vpop.f32.mrb[0].mxu0
        %3066 = vdwg.mxu0
        %3067 = vmatprep.subr.bf16.mxu0 %v2951
        %3068 = vmatpush1.bf16.xpose.msra.mxu0 %v2950
        %3069 = vmatprep.subr.bf16.mxu0 %v2955
        %3070 = vmatpush1.bf16.xpose.msra.mxu0 %v2954
        %3071 = vmatprep.subr.bf16.mxu0 %v2959
        %3072 = vmatpush1.bf16.xpose.msra.mxu0 %v2958
        %3073 = vmatprep.subr.bf16.mxu0 %v2963
        %3074 = vmatpush1.bf16.xpose.msra.mxu0 %v2962
        %3075 = vmatprep.subr.bf16.mxu0 %v2967
        %3076 = vmatpush1.bf16.xpose.msra.mxu0 %v2966
        %3077 = vmatprep.subr.bf16.mxu0 %v2971
        %3078 = vmatpush1.bf16.xpose.msra.mxu0 %v2970
        %3079 = vmatprep.subr.bf16.mxu0 %v2975
        %3080 = vmatpush1.bf16.xpose.msra.mxu0 %v2974
        %3081 = vmatprep.subr.bf16.mxu0 %v2979
        %3082 = vmatpush1.bf16.xpose.msra.mxu0 %v2978
        %3083 = vmatprep.subr.bf16.mxu0 %v2983
        %3084 = vmatpush1.bf16.xpose.msra.mxu0 %v2982
        %3085 = vmatprep.subr.bf16.mxu0 %v2987
        %3086 = vmatpush1.bf16.xpose.msra.mxu0 %v2986
        %3087 = vmatprep.subr.bf16.mxu0 %v2991
        %3088 = vmatpush1.bf16.xpose.msra.mxu0 %v2990
        %3089 = vmatprep.subr.bf16.mxu0 %v2995
        %3090 = vmatpush1.bf16.xpose.msra.mxu0 %v2994
        %3091 = vmatprep.subr.bf16.mxu0 %v2999
        %3092 = vmatpush1.bf16.xpose.msra.mxu0 %v2998
        %3093 = vmatprep.subr.bf16.mxu0 %v3003
        %3094 = vmatpush1.bf16.xpose.msra.mxu0 %v3002
        %3095 = vmatprep.subr.bf16.mxu0 %v3007
        %3096 = vmatpush1.bf16.xpose.msra.mxu0 %v3006
        %3097 = vmatprep.subr.bf16.mxu0 %v3011
        %3098 = vmatpush1.bf16.xpose.msra.mxu0 %v3010
        %3099 = vmatprep.mubr.bf16.mxu0 %v3021
        %3100 = vmatmul.mubr.bf16.gmra.mrb[0].mxu0 %v3020
        %v3101 = vpop.f32.mrb[0].mxu0
        %v3102 = vadd.f32 %v3061, %v3101
        %v3103 = vpop.f32.mrb[0].mxu0
        %v3104 = vadd.f32 %v3063, %v3103
        %v3105 = vpop.f32.mrb[0].mxu0
        %v3106 = vpop.f32.mrb[0].mxu0
        %3107 = vdwg.mxu0
        %v3110 = vunpack.c.l.b16 %v1640
        %v3111 = vunpack.c.h.b16 %v1640
        %v3112 = vunpack.c.l.b16 %v1641
        %v3113 = vunpack.c.h.b16 %v1641
        %v3114 = vpack.c.b16 %v3110, %v3110
        %v3115 = vpack.c.b16 %v3111, %v3111
        %v3116 = vpack.c.b16 %v3112, %v3112
        %v3117 = vpack.c.b16 %v3113, %v3113
        %3122 = vmatprep.subr.bf16.mxu0 %v1643
        %3123 = vmatpush1.bf16.xpose.msra.mxu0 %v1642
        %3124 = vmatprep.subr.bf16.mxu0 %v1647
        %3125 = vmatpush1.bf16.xpose.msra.mxu0 %v1646
        %3126 = vmatprep.subr.bf16.mxu0 %v1651
        %3127 = vmatpush1.bf16.xpose.msra.mxu0 %v1650
        %3128 = vmatprep.subr.bf16.mxu0 %v1655
        %3129 = vmatpush1.bf16.xpose.msra.mxu0 %v1654
        %3130 = vmatprep.subr.bf16.mxu0 %v1659
        %3131 = vmatpush1.bf16.xpose.msra.mxu0 %v1658
        %3132 = vmatprep.subr.bf16.mxu0 %v1663
        %3133 = vmatpush1.bf16.xpose.msra.mxu0 %v1662
        %3134 = vmatprep.subr.bf16.mxu0 %v1667
        %3135 = vmatpush1.bf16.xpose.msra.mxu0 %v1666
        %3136 = vmatprep.subr.bf16.mxu0 %v1671
        %3137 = vmatpush1.bf16.xpose.msra.mxu0 %v1670
        %3138 = vmatprep.subr.bf16.mxu0 %v1675
        %3139 = vmatpush1.bf16.xpose.msra.mxu0 %v1674
        %3140 = vmatprep.subr.bf16.mxu0 %v1679
        %3141 = vmatpush1.bf16.xpose.msra.mxu0 %v1678
        %3142 = vmatprep.subr.bf16.mxu0 %v1683
        %3143 = vmatpush1.bf16.xpose.msra.mxu0 %v1682
        %3144 = vmatprep.subr.bf16.mxu0 %v1687
        %3145 = vmatpush1.bf16.xpose.msra.mxu0 %v1686
        %3146 = vmatprep.subr.bf16.mxu0 %v1691
        %3147 = vmatpush1.bf16.xpose.msra.mxu0 %v1690
        %3148 = vmatprep.subr.bf16.mxu0 %v1695
        %3149 = vmatpush1.bf16.xpose.msra.mxu0 %v1694
        %3150 = vmatprep.subr.bf16.mxu0 %v1699
        %3151 = vmatpush1.bf16.xpose.msra.mxu0 %v1698
        %3152 = vmatprep.subr.bf16.mxu0 %v1703
        %3153 = vmatpush1.bf16.xpose.msra.mxu0 %v1702
        %3154 = vmatprep.mubr.bf16.mxu0 %v3115
        %3155 = vmatmul.mubr.bf16.gmra.mrb[0].mxu0 %v3114
        %v3156 = vpop.f32.mrb[0].mxu0
        %v3157 = vadd.f32 %v3102, %v3156
        %v3158 = vpop.f32.mrb[0].mxu0
        %v3159 = vadd.f32 %v3104, %v3158
        %v3160 = vpop.f32.mrb[0].mxu0
        %v3161 = vpop.f32.mrb[0].mxu0
        %3162 = vdwg.mxu0
        %3163 = vmatprep.subr.bf16.mxu0 %v1645
        %3164 = vmatpush1.bf16.xpose.msra.mxu0 %v1644
        %3165 = vmatprep.subr.bf16.mxu0 %v1649
        %3166 = vmatpush1.bf16.xpose.msra.mxu0 %v1648
        %3167 = vmatprep.subr.bf16.mxu0 %v1653
        %3168 = vmatpush1.bf16.xpose.msra.mxu0 %v1652
        %3169 = vmatprep.subr.bf16.mxu0 %v1657
        %3170 = vmatpush1.bf16.xpose.msra.mxu0 %v1656
        %3171 = vmatprep.subr.bf16.mxu0 %v1661
        %3172 = vmatpush1.bf16.xpose.msra.mxu0 %v1660
        %3173 = vmatprep.subr.bf16.mxu0 %v1665
        %3174 = vmatpush1.bf16.xpose.msra.mxu0 %v1664
        %3175 = vmatprep.subr.bf16.mxu0 %v1669
        %3176 = vmatpush1.bf16.xpose.msra.mxu0 %v1668
        %3177 = vmatprep.subr.bf16.mxu0 %v1673
        %3178 = vmatpush1.bf16.xpose.msra.mxu0 %v1672
        %3179 = vmatprep.subr.bf16.mxu0 %v1677
        %3180 = vmatpush1.bf16.xpose.msra.mxu0 %v1676
        %3181 = vmatprep.subr.bf16.mxu0 %v1681
        %3182 = vmatpush1.bf16.xpose.msra.mxu0 %v1680
        %3183 = vmatprep.subr.bf16.mxu0 %v1685
        %3184 = vmatpush1.bf16.xpose.msra.mxu0 %v1684
        %3185 = vmatprep.subr.bf16.mxu0 %v1689
        %3186 = vmatpush1.bf16.xpose.msra.mxu0 %v1688
        %3187 = vmatprep.subr.bf16.mxu0 %v1693
        %3188 = vmatpush1.bf16.xpose.msra.mxu0 %v1692
        %3189 = vmatprep.subr.bf16.mxu0 %v1697
        %3190 = vmatpush1.bf16.xpose.msra.mxu0 %v1696
        %3191 = vmatprep.subr.bf16.mxu0 %v1701
        %3192 = vmatpush1.bf16.xpose.msra.mxu0 %v1700
        %3193 = vmatprep.subr.bf16.mxu0 %v1705
        %3194 = vmatpush1.bf16.xpose.msra.mxu0 %v1704
        %3195 = vmatprep.mubr.bf16.mxu0 %v3117
        %3196 = vmatmul.mubr.bf16.gmra.mrb[0].mxu0 %v3116
        %v3197 = vpop.f32.mrb[0].mxu0
        %v3198 = vadd.f32 %v3157, %v3197
        %v3199 = vpop.f32.mrb[0].mxu0
        %v3200 = vadd.f32 %v3159, %v3199
        %v3201 = vpop.f32.mrb[0].mxu0
        %v3202 = vpop.f32.mrb[0].mxu0
        %3203 = vdwg.mxu0
        %v3204 = vld [vmem:[#allocation5 + $0x20] sm:$0xff]
        %v3205 = vld [vmem:[#allocation5 + $0x28] sm:$0xff]
        %v3206 = vld [vmem:[#allocation5 + $0x60] sm:$0xff]
        %v3207 = vld [vmem:[#allocation5 + $0x68] sm:$0xff]
        %v3208 = vld [vmem:[#allocation5 + $0xa0] sm:$0xff]
        %v3209 = vld [vmem:[#allocation5 + $0xa8] sm:$0xff]
        %v3210 = vld [vmem:[#allocation5 + $0xe0] sm:$0xff]
        %v3211 = vld [vmem:[#allocation5 + $0xe8] sm:$0xff]
        %v3212 = vld [vmem:[#allocation5 + $0x120] sm:$0xff]
        %v3213 = vld [vmem:[#allocation5 + $0x128] sm:$0xff]
        %v3214 = vld [vmem:[#allocation5 + $0x160] sm:$0xff]
        %v3215 = vld [vmem:[#allocation5 + $0x168] sm:$0xff]
        %v3216 = vld [vmem:[#allocation5 + $0x1a0] sm:$0xff]
        %v3217 = vld [vmem:[#allocation5 + $0x1a8] sm:$0xff]
        %v3218 = vld [vmem:[#allocation5 + $0x1e0] sm:$0xff]
        %v3219 = vld [vmem:[#allocation5 + $0x1e8] sm:$0xff]
        %v3220 = vld [vmem:[#allocation5 + $0x220] sm:$0xff]
        %v3221 = vld [vmem:[#allocation5 + $0x228] sm:$0xff]
        %v3222 = vld [vmem:[#allocation5 + $0x260] sm:$0xff]
        %v3223 = vld [vmem:[#allocation5 + $0x268] sm:$0xff]
        %v3224 = vld [vmem:[#allocation5 + $0x2a0] sm:$0xff]
        %v3225 = vld [vmem:[#allocation5 + $0x2a8] sm:$0xff]
        %v3226 = vld [vmem:[#allocation5 + $0x2e0] sm:$0xff]
        %v3227 = vld [vmem:[#allocation5 + $0x2e8] sm:$0xff]
        %v3228 = vld [vmem:[#allocation5 + $0x320] sm:$0xff]
        %v3229 = vld [vmem:[#allocation5 + $0x328] sm:$0xff]
        %v3230 = vld [vmem:[#allocation5 + $0x360] sm:$0xff]
        %v3231 = vld [vmem:[#allocation5 + $0x368] sm:$0xff]
        %v3232 = vld [vmem:[#allocation5 + $0x3a0] sm:$0xff]
        %v3233 = vld [vmem:[#allocation5 + $0x3a8] sm:$0xff]
        %v3234 = vld [vmem:[#allocation5 + $0x3e0] sm:$0xff]
        %v3235 = vld [vmem:[#allocation5 + $0x3e8] sm:$0xff]
        %v3236 = vld [vmem:[%s2 + $0x8] sm:$0xf]
        %v3238 = vlaneseq
        %v3239 = vshrl.u32 %v3238, 7
        %v3240 = vsub.s32 0, %v3239
        %v3241 = vrot.slane %v3236, %v3240
        %v3242 = vlaneseq
        %v3243 = vshrl.u32 %v3242, 7
        %v3244 = vsub.s32 1, %v3243
        %v3245 = vrot.slane %v3236, %v3244
        %v3246 = vlaneseq
        %v3247 = vshrl.u32 %v3246, 7
        %v3248 = vsub.s32 2, %v3247
        %v3249 = vrot.slane %v3236, %v3248
        %v3250 = vlaneseq
        %v3251 = vshrl.u32 %v3250, 7
        %v3252 = vsub.s32 3, %v3251
        %v3253 = vrot.slane %v3236, %v3252
        %v3290 = vunpack.c.l.b16 %v3204
        %v3291 = vunpack.c.h.b16 %v3204
        %v3292 = vunpack.c.l.b16 %v3205
        %v3293 = vunpack.c.h.b16 %v3205
        %v3294 = vunpack.c.l.b16 %v3206
        %v3295 = vunpack.c.h.b16 %v3206
        %v3296 = vunpack.c.l.b16 %v3207
        %v3297 = vunpack.c.h.b16 %v3207
        %v3298 = vunpack.c.l.b16 %v3208
        %v3299 = vunpack.c.h.b16 %v3208
        %v3300 = vunpack.c.l.b16 %v3209
        %v3301 = vunpack.c.h.b16 %v3209
        %v3302 = vunpack.c.l.b16 %v3210
        %v3303 = vunpack.c.h.b16 %v3210
        %v3304 = vunpack.c.l.b16 %v3211
        %v3305 = vunpack.c.h.b16 %v3211
        %v3306 = vunpack.c.l.b16 %v3212
        %v3307 = vunpack.c.h.b16 %v3212
        %v3308 = vunpack.c.l.b16 %v3213
        %v3309 = vunpack.c.h.b16 %v3213
        %v3310 = vunpack.c.l.b16 %v3214
        %v3311 = vunpack.c.h.b16 %v3214
        %v3312 = vunpack.c.l.b16 %v3215
        %v3313 = vunpack.c.h.b16 %v3215
        %v3314 = vunpack.c.l.b16 %v3216
        %v3315 = vunpack.c.h.b16 %v3216
        %v3316 = vunpack.c.l.b16 %v3217
        %v3317 = vunpack.c.h.b16 %v3217
        %v3318 = vunpack.c.l.b16 %v3218
        %v3319 = vunpack.c.h.b16 %v3218
        %v3320 = vunpack.c.l.b16 %v3219
        %v3321 = vunpack.c.h.b16 %v3219
        %v3322 = vunpack.c.l.b16 %v3220
        %v3323 = vunpack.c.h.b16 %v3220
        %v3324 = vunpack.c.l.b16 %v3221
        %v3325 = vunpack.c.h.b16 %v3221
        %v3326 = vunpack.c.l.b16 %v3222
        %v3327 = vunpack.c.h.b16 %v3222
        %v3328 = vunpack.c.l.b16 %v3223
        %v3329 = vunpack.c.h.b16 %v3223
        %v3330 = vunpack.c.l.b16 %v3224
        %v3331 = vunpack.c.h.b16 %v3224
        %v3332 = vunpack.c.l.b16 %v3225
        %v3333 = vunpack.c.h.b16 %v3225
        %v3334 = vunpack.c.l.b16 %v3226
        %v3335 = vunpack.c.h.b16 %v3226
        %v3336 = vunpack.c.l.b16 %v3227
        %v3337 = vunpack.c.h.b16 %v3227
        %v3338 = vunpack.c.l.b16 %v3228
        %v3339 = vunpack.c.h.b16 %v3228
        %v3340 = vunpack.c.l.b16 %v3229
        %v3341 = vunpack.c.h.b16 %v3229
        %v3342 = vunpack.c.l.b16 %v3230
        %v3343 = vunpack.c.h.b16 %v3230
        %v3344 = vunpack.c.l.b16 %v3231
        %v3345 = vunpack.c.h.b16 %v3231
        %v3346 = vunpack.c.l.b16 %v3232
        %v3347 = vunpack.c.h.b16 %v3232
        %v3348 = vunpack.c.l.b16 %v3233
        %v3349 = vunpack.c.h.b16 %v3233
        %v3350 = vunpack.c.l.b16 %v3234
        %v3351 = vunpack.c.h.b16 %v3234
        %v3352 = vunpack.c.l.b16 %v3235
        %v3353 = vunpack.c.h.b16 %v3235
        %v3354 = vpack.c.b16 %v3294, %v3290
        %v3355 = vpack.c.b16 %v3295, %v3291
        %v3356 = vpack.c.b16 %v3296, %v3292
        %v3357 = vpack.c.b16 %v3297, %v3293
        %v3358 = vpack.c.b16 %v3302, %v3298
        %v3359 = vpack.c.b16 %v3303, %v3299
        %v3360 = vpack.c.b16 %v3304, %v3300
        %v3361 = vpack.c.b16 %v3305, %v3301
        %v3362 = vpack.c.b16 %v3310, %v3306
        %v3363 = vpack.c.b16 %v3311, %v3307
        %v3364 = vpack.c.b16 %v3312, %v3308
        %v3365 = vpack.c.b16 %v3313, %v3309
        %v3366 = vpack.c.b16 %v3318, %v3314
        %v3367 = vpack.c.b16 %v3319, %v3315
        %v3368 = vpack.c.b16 %v3320, %v3316
        %v3369 = vpack.c.b16 %v3321, %v3317
        %v3370 = vpack.c.b16 %v3326, %v3322
        %v3371 = vpack.c.b16 %v3327, %v3323
        %v3372 = vpack.c.b16 %v3328, %v3324
        %v3373 = vpack.c.b16 %v3329, %v3325
        %v3374 = vpack.c.b16 %v3334, %v3330
        %v3375 = vpack.c.b16 %v3335, %v3331
        %v3376 = vpack.c.b16 %v3336, %v3332
        %v3377 = vpack.c.b16 %v3337, %v3333
        %v3378 = vpack.c.b16 %v3342, %v3338
        %v3379 = vpack.c.b16 %v3343, %v3339
        %v3380 = vpack.c.b16 %v3344, %v3340
        %v3381 = vpack.c.b16 %v3345, %v3341
        %v3382 = vpack.c.b16 %v3350, %v3346
        %v3383 = vpack.c.b16 %v3351, %v3347
        %v3384 = vpack.c.b16 %v3352, %v3348
        %v3385 = vpack.c.b16 %v3353, %v3349
        %3418 = vmatprep.subr.bf16.mxu0 %v3355
        %3419 = vmatpush1.bf16.msra.mxu0 %v3354
        %3420 = vmatprep.subr.bf16.mxu0 %v3359
        %3421 = vmatpush1.bf16.msra.mxu0 %v3358
        %3422 = vmatprep.subr.bf16.mxu0 %v3363
        %3423 = vmatpush1.bf16.msra.mxu0 %v3362
        %3424 = vmatprep.subr.bf16.mxu0 %v3367
        %3425 = vmatpush1.bf16.msra.mxu0 %v3366
        %3426 = vmatprep.subr.bf16.mxu0 %v3371
        %3427 = vmatpush1.bf16.msra.mxu0 %v3370
        %3428 = vmatprep.subr.bf16.mxu0 %v3375
        %3429 = vmatpush1.bf16.msra.mxu0 %v3374
        %3430 = vmatprep.subr.bf16.mxu0 %v3379
        %3431 = vmatpush1.bf16.msra.mxu0 %v3378
        %3432 = vmatprep.subr.bf16.mxu0 %v3383
        %3433 = vmatpush1.bf16.msra.mxu0 %v3382
        %3434 = vmatprep.subr.bf16.mxu0 0
        %3435 = vmatpush1.bf16.msra.mxu0 0
        %3436 = vmatprep.subr.bf16.mxu0 0
        %3437 = vmatpush1.bf16.msra.mxu0 0
        %3438 = vmatprep.subr.bf16.mxu0 0
        %3439 = vmatpush1.bf16.msra.mxu0 0
        %3440 = vmatprep.subr.bf16.mxu0 0
        %3441 = vmatpush1.bf16.msra.mxu0 0
        %3442 = vmatprep.subr.bf16.mxu0 0
        %3443 = vmatpush1.bf16.msra.mxu0 0
        %3444 = vmatprep.subr.bf16.mxu0 0
        %3445 = vmatpush1.bf16.msra.mxu0 0
        %3446 = vmatprep.subr.bf16.mxu0 0
        %3447 = vmatpush1.bf16.msra.mxu0 0
        %3448 = vmatprep.subr.bf16.mxu0 0
        %3449 = vmatpush1.bf16.msra.mxu0 0
        %3450 = vmatprep.mubr.bf16.mxu0 0
        %3451 = vmatmul.mubr.bf16.gmra.mrb[0].mxu0 %v422
        %v3452 = vpop.f32.mrb[0].mxu0
        %v3453 = vadd.f32 %v3241, %v3452
        %v3454 = vpop.f32.mrb[0].mxu0
        %v3455 = vadd.f32 %v3245, %v3454
        %v3456 = vpop.f32.mrb[0].mxu0
        %v3457 = vadd.f32 %v3241, %v3456
        %v3458 = vpop.f32.mrb[0].mxu0
        %v3459 = vadd.f32 %v3245, %v3458
        %3460 = vmatprep.mubr.bf16.mxu0 0
        %3461 = vmatmul.mubr.bf16.gmra.mrb[0].mxu0 %v423
        %v3462 = vpop.f32.mrb[0].mxu0
        %v3463 = vadd.f32 %v3241, %v3462
        %v3464 = vpop.f32.mrb[0].mxu0
        %v3465 = vadd.f32 %v3245, %v3464
        %v3466 = vpop.f32.mrb[0].mxu0
        %v3467 = vadd.f32 %v3241, %v3466
        %v3468 = vpop.f32.mrb[0].mxu0
        %v3469 = vadd.f32 %v3245, %v3468
        %3470 = vmatprep.mubr.bf16.mxu0 0
        %3471 = vmatmul.mubr.bf16.gmra.mrb[0].mxu0 %v424
        %v3472 = vpop.f32.mrb[0].mxu0
        %v3473 = vadd.f32 %v3241, %v3472
        %v3474 = vpop.f32.mrb[0].mxu0
        %v3475 = vadd.f32 %v3245, %v3474
        %v3476 = vpop.f32.mrb[0].mxu0
        %v3477 = vadd.f32 %v3241, %v3476
        %v3478 = vpop.f32.mrb[0].mxu0
        %v3479 = vadd.f32 %v3245, %v3478
        %3480 = vmatprep.mubr.bf16.mxu0 0
        %3481 = vmatmul.mubr.bf16.gmra.mrb[0].mxu0 %v425
        %v3482 = vpop.f32.mrb[0].mxu0
        %v3483 = vadd.f32 %v3241, %v3482
        %v3484 = vpop.f32.mrb[0].mxu0
        %v3485 = vadd.f32 %v3245, %v3484
        %v3486 = vpop.f32.mrb[0].mxu0
        %v3487 = vadd.f32 %v3241, %v3486
        %v3488 = vpop.f32.mrb[0].mxu0
        %v3489 = vadd.f32 %v3245, %v3488
        %3490 = vmatprep.mubr.bf16.mxu0 0
        %3491 = vmatmul.mubr.bf16.gmra.mrb[0].mxu0 %v426
        %v3492 = vpop.f32.mrb[0].mxu0
        %v3493 = vadd.f32 %v3241, %v3492
        %v3494 = vpop.f32.mrb[0].mxu0
        %v3495 = vadd.f32 %v3245, %v3494
        %v3496 = vpop.f32.mrb[0].mxu0
        %v3497 = vadd.f32 %v3241, %v3496
        %v3498 = vpop.f32.mrb[0].mxu0
        %v3499 = vadd.f32 %v3245, %v3498
        %3500 = vmatprep.mubr.bf16.mxu0 0
        %3501 = vmatmul.mubr.bf16.gmra.mrb[0].mxu0 %v427
        %v3502 = vpop.f32.mrb[0].mxu0
        %v3503 = vadd.f32 %v3241, %v3502
        %v3504 = vpop.f32.mrb[0].mxu0
        %v3505 = vadd.f32 %v3245, %v3504
        %v3506 = vpop.f32.mrb[0].mxu0
        %v3507 = vadd.f32 %v3241, %v3506
        %v3508 = vpop.f32.mrb[0].mxu0
        %v3509 = vadd.f32 %v3245, %v3508
        %3510 = vmatprep.mubr.bf16.mxu0 0
        %3511 = vmatmul.mubr.bf16.gmra.mrb[0].mxu0 %v428
        %v3512 = vpop.f32.mrb[0].mxu0
        %v3513 = vadd.f32 %v3241, %v3512
        %v3514 = vpop.f32.mrb[0].mxu0
        %v3515 = vadd.f32 %v3245, %v3514
        %v3516 = vpop.f32.mrb[0].mxu0
        %v3517 = vadd.f32 %v3241, %v3516
        %v3518 = vpop.f32.mrb[0].mxu0
        %v3519 = vadd.f32 %v3245, %v3518
        %3520 = vmatprep.mubr.bf16.mxu0 0
        %3521 = vmatmul.mubr.bf16.gmra.mrb[0].mxu0 %v429
        %v3522 = vpop.f32.mrb[0].mxu0
        %v3523 = vadd.f32 %v3241, %v3522
        %v3524 = vpop.f32.mrb[0].mxu0
        %v3525 = vadd.f32 %v3245, %v3524
        %v3526 = vpop.f32.mrb[0].mxu0
        %v3527 = vadd.f32 %v3241, %v3526
        %v3528 = vpop.f32.mrb[0].mxu0
        %v3529 = vadd.f32 %v3245, %v3528
        %3530 = vmatprep.mubr.bf16.mxu0 0
        %3531 = vmatmul.mubr.bf16.gmra.mrb[0].mxu0 %v430
        %v3532 = vpop.f32.mrb[0].mxu0
        %v3533 = vadd.f32 %v3241, %v3532
        %v3534 = vpop.f32.mrb[0].mxu0
        %v3535 = vadd.f32 %v3245, %v3534
        %v3536 = vpop.f32.mrb[0].mxu0
        %v3537 = vadd.f32 %v3241, %v3536
        %v3538 = vpop.f32.mrb[0].mxu0
        %v3539 = vadd.f32 %v3245, %v3538
        %3540 = vmatprep.mubr.bf16.mxu0 0
        %3541 = vmatmul.mubr.bf16.gmra.mrb[0].mxu0 %v431
        %v3542 = vpop.f32.mrb[0].mxu0
        %v3543 = vadd.f32 %v3241, %v3542
        %v3544 = vpop.f32.mrb[0].mxu0
        %v3545 = vadd.f32 %v3245, %v3544
        %v3546 = vpop.f32.mrb[0].mxu0
        %v3547 = vadd.f32 %v3241, %v3546
        %v3548 = vpop.f32.mrb[0].mxu0
        %v3549 = vadd.f32 %v3245, %v3548
        %3550 = vmatprep.mubr.bf16.mxu0 0
        %3551 = vmatmul.mubr.bf16.gmra.mrb[0].mxu0 %v432
        %v3552 = vpop.f32.mrb[0].mxu0
        %v3553 = vadd.f32 %v3241, %v3552
        %v3554 = vpop.f32.mrb[0].mxu0
        %v3555 = vadd.f32 %v3245, %v3554
        %v3556 = vpop.f32.mrb[0].mxu0
        %v3557 = vadd.f32 %v3241, %v3556
        %v3558 = vpop.f32.mrb[0].mxu0
        %v3559 = vadd.f32 %v3245, %v3558
        %3560 = vmatprep.mubr.bf16.mxu0 0
        %3561 = vmatmul.mubr.bf16.gmra.mrb[0].mxu0 %v433
        %v3562 = vpop.f32.mrb[0].mxu0
        %v3563 = vadd.f32 %v3241, %v3562
        %v3564 = vpop.f32.mrb[0].mxu0
        %v3565 = vadd.f32 %v3245, %v3564
        %v3566 = vpop.f32.mrb[0].mxu0
        %v3567 = vadd.f32 %v3241, %v3566
        %v3568 = vpop.f32.mrb[0].mxu0
        %v3569 = vadd.f32 %v3245, %v3568
        %3570 = vmatprep.mubr.bf16.mxu0 0
        %3571 = vmatmul.mubr.bf16.gmra.mrb[0].mxu0 %v434
        %v3572 = vpop.f32.mrb[0].mxu0
        %v3573 = vadd.f32 %v3241, %v3572
        %v3574 = vpop.f32.mrb[0].mxu0
        %v3575 = vadd.f32 %v3245, %v3574
        %v3576 = vpop.f32.mrb[0].mxu0
        %v3577 = vadd.f32 %v3241, %v3576
        %v3578 = vpop.f32.mrb[0].mxu0
        %v3579 = vadd.f32 %v3245, %v3578
        %3580 = vmatprep.mubr.bf16.mxu0 0
        %3581 = vmatmul.mubr.bf16.gmra.mrb[0].mxu0 %v435
        %v3582 = vpop.f32.mrb[0].mxu0
        %v3583 = vadd.f32 %v3241, %v3582
        %v3584 = vpop.f32.mrb[0].mxu0
        %v3585 = vadd.f32 %v3245, %v3584
        %v3586 = vpop.f32.mrb[0].mxu0
        %v3587 = vadd.f32 %v3241, %v3586
        %v3588 = vpop.f32.mrb[0].mxu0
        %v3589 = vadd.f32 %v3245, %v3588
        %3590 = vmatprep.mubr.bf16.mxu0 0
        %3591 = vmatmul.mubr.bf16.gmra.mrb[0].mxu0 %v436
        %v3592 = vpop.f32.mrb[0].mxu0
        %v3593 = vadd.f32 %v3241, %v3592
        %v3594 = vpop.f32.mrb[0].mxu0
        %v3595 = vadd.f32 %v3245, %v3594
        %v3596 = vpop.f32.mrb[0].mxu0
        %v3597 = vadd.f32 %v3241, %v3596
        %v3598 = vpop.f32.mrb[0].mxu0
        %v3599 = vadd.f32 %v3245, %v3598
        %3600 = vmatprep.mubr.bf16.mxu0 0
        %3601 = vmatmul.mubr.bf16.gmra.mrb[0].mxu0 %v437
        %v3602 = vpop.f32.mrb[0].mxu0
        %v3603 = vadd.f32 %v3241, %v3602
        %v3604 = vpop.f32.mrb[0].mxu0
        %v3605 = vadd.f32 %v3245, %v3604
        %v3606 = vpop.f32.mrb[0].mxu0
        %v3607 = vadd.f32 %v3241, %v3606
        %v3608 = vpop.f32.mrb[0].mxu0
        %v3609 = vadd.f32 %v3245, %v3608
        %3610 = vdwg.mxu0
        %3611 = vmatprep.subr.bf16.mxu0 %v3357
        %3612 = vmatpush1.bf16.msra.mxu0 %v3356
        %3613 = vmatprep.subr.bf16.mxu0 %v3361
        %3614 = vmatpush1.bf16.msra.mxu0 %v3360
        %3615 = vmatprep.subr.bf16.mxu0 %v3365
        %3616 = vmatpush1.bf16.msra.mxu0 %v3364
        %3617 = vmatprep.subr.bf16.mxu0 %v3369
        %3618 = vmatpush1.bf16.msra.mxu0 %v3368
        %3619 = vmatprep.subr.bf16.mxu0 %v3373
        %3620 = vmatpush1.bf16.msra.mxu0 %v3372
        %3621 = vmatprep.subr.bf16.mxu0 %v3377
        %3622 = vmatpush1.bf16.msra.mxu0 %v3376
        %3623 = vmatprep.subr.bf16.mxu0 %v3381
        %3624 = vmatpush1.bf16.msra.mxu0 %v3380
        %3625 = vmatprep.subr.bf16.mxu0 %v3385
        %3626 = vmatpush1.bf16.msra.mxu0 %v3384
        %3627 = vmatprep.subr.bf16.mxu0 0
        %3628 = vmatpush1.bf16.msra.mxu0 0
        %3629 = vmatprep.subr.bf16.mxu0 0
        %3630 = vmatpush1.bf16.msra.mxu0 0
        %3631 = vmatprep.subr.bf16.mxu0 0
        %3632 = vmatpush1.bf16.msra.mxu0 0
        %3633 = vmatprep.subr.bf16.mxu0 0
        %3634 = vmatpush1.bf16.msra.mxu0 0
        %3635 = vmatprep.subr.bf16.mxu0 0
        %3636 = vmatpush1.bf16.msra.mxu0 0
        %3637 = vmatprep.subr.bf16.mxu0 0
        %3638 = vmatpush1.bf16.msra.mxu0 0
        %3639 = vmatprep.subr.bf16.mxu0 0
        %3640 = vmatpush1.bf16.msra.mxu0 0
        %3641 = vmatprep.subr.bf16.mxu0 0
        %3642 = vmatpush1.bf16.msra.mxu0 0
        %3643 = vmatprep.mubr.bf16.mxu0 0
        %3644 = vmatmul.mubr.bf16.gmra.mrb[0].mxu0 %v422
        %v3645 = vpop.f32.mrb[0].mxu0
        %v3646 = vadd.f32 %v3249, %v3645
        %v3647 = vpop.f32.mrb[0].mxu0
        %v3648 = vadd.f32 %v3253, %v3647
        %v3649 = vpop.f32.mrb[0].mxu0
        %v3650 = vadd.f32 %v3249, %v3649
        %v3651 = vpop.f32.mrb[0].mxu0
        %v3652 = vadd.f32 %v3253, %v3651
        %3653 = vmatprep.mubr.bf16.mxu0 0
        %3654 = vmatmul.mubr.bf16.gmra.mrb[0].mxu0 %v423
        %v3655 = vpop.f32.mrb[0].mxu0
        %v3656 = vadd.f32 %v3249, %v3655
        %v3657 = vpop.f32.mrb[0].mxu0
        %v3658 = vadd.f32 %v3253, %v3657
        %v3659 = vpop.f32.mrb[0].mxu0
        %v3660 = vadd.f32 %v3249, %v3659
        %v3661 = vpop.f32.mrb[0].mxu0
        %v3662 = vadd.f32 %v3253, %v3661
        %3663 = vmatprep.mubr.bf16.mxu0 0
        %3664 = vmatmul.mubr.bf16.gmra.mrb[0].mxu0 %v424
        %v3665 = vpop.f32.mrb[0].mxu0
        %v3666 = vadd.f32 %v3249, %v3665
        %v3667 = vpop.f32.mrb[0].mxu0
        %v3668 = vadd.f32 %v3253, %v3667
        %v3669 = vpop.f32.mrb[0].mxu0
        %v3670 = vadd.f32 %v3249, %v3669
        %v3671 = vpop.f32.mrb[0].mxu0
        %v3672 = vadd.f32 %v3253, %v3671
        %3673 = vmatprep.mubr.bf16.mxu0 0
        %3674 = vmatmul.mubr.bf16.gmra.mrb[0].mxu0 %v425
        %v3675 = vpop.f32.mrb[0].mxu0
        %v3676 = vadd.f32 %v3249, %v3675
        %v3677 = vpop.f32.mrb[0].mxu0
        %v3678 = vadd.f32 %v3253, %v3677
        %v3679 = vpop.f32.mrb[0].mxu0
        %v3680 = vadd.f32 %v3249, %v3679
        %v3681 = vpop.f32.mrb[0].mxu0
        %v3682 = vadd.f32 %v3253, %v3681
        %3683 = vmatprep.mubr.bf16.mxu0 0
        %3684 = vmatmul.mubr.bf16.gmra.mrb[0].mxu0 %v426
        %v3685 = vpop.f32.mrb[0].mxu0
        %v3686 = vadd.f32 %v3249, %v3685
        %v3687 = vpop.f32.mrb[0].mxu0
        %v3688 = vadd.f32 %v3253, %v3687
        %v3689 = vpop.f32.mrb[0].mxu0
        %v3690 = vadd.f32 %v3249, %v3689
        %v3691 = vpop.f32.mrb[0].mxu0
        %v3692 = vadd.f32 %v3253, %v3691
        %3693 = vmatprep.mubr.bf16.mxu0 0
        %3694 = vmatmul.mubr.bf16.gmra.mrb[0].mxu0 %v427
        %v3695 = vpop.f32.mrb[0].mxu0
        %v3696 = vadd.f32 %v3249, %v3695
        %v3697 = vpop.f32.mrb[0].mxu0
        %v3698 = vadd.f32 %v3253, %v3697
        %v3699 = vpop.f32.mrb[0].mxu0
        %v3700 = vadd.f32 %v3249, %v3699
        %v3701 = vpop.f32.mrb[0].mxu0
        %v3702 = vadd.f32 %v3253, %v3701
        %3703 = vmatprep.mubr.bf16.mxu0 0
        %3704 = vmatmul.mubr.bf16.gmra.mrb[0].mxu0 %v428
        %v3705 = vpop.f32.mrb[0].mxu0
        %v3706 = vadd.f32 %v3249, %v3705
        %v3707 = vpop.f32.mrb[0].mxu0
        %v3708 = vadd.f32 %v3253, %v3707
        %v3709 = vpop.f32.mrb[0].mxu0
        %v3710 = vadd.f32 %v3249, %v3709
        %v3711 = vpop.f32.mrb[0].mxu0
        %v3712 = vadd.f32 %v3253, %v3711
        %3713 = vmatprep.mubr.bf16.mxu0 0
        %3714 = vmatmul.mubr.bf16.gmra.mrb[0].mxu0 %v429
        %v3715 = vpop.f32.mrb[0].mxu0
        %v3716 = vadd.f32 %v3249, %v3715
        %v3717 = vpop.f32.mrb[0].mxu0
        %v3718 = vadd.f32 %v3253, %v3717
        %v3719 = vpop.f32.mrb[0].mxu0
        %v3720 = vadd.f32 %v3249, %v3719
        %v3721 = vpop.f32.mrb[0].mxu0
        %v3722 = vadd.f32 %v3253, %v3721
        %3723 = vmatprep.mubr.bf16.mxu0 0
        %3724 = vmatmul.mubr.bf16.gmra.mrb[0].mxu0 %v430
        %v3725 = vpop.f32.mrb[0].mxu0
        %v3726 = vadd.f32 %v3249, %v3725
        %v3727 = vpop.f32.mrb[0].mxu0
        %v3728 = vadd.f32 %v3253, %v3727
        %v3729 = vpop.f32.mrb[0].mxu0
        %v3730 = vadd.f32 %v3249, %v3729
        %v3731 = vpop.f32.mrb[0].mxu0
        %v3732 = vadd.f32 %v3253, %v3731
        %3733 = vmatprep.mubr.bf16.mxu0 0
        %3734 = vmatmul.mubr.bf16.gmra.mrb[0].mxu0 %v431
        %v3735 = vpop.f32.mrb[0].mxu0
        %v3736 = vadd.f32 %v3249, %v3735
        %v3737 = vpop.f32.mrb[0].mxu0
        %v3738 = vadd.f32 %v3253, %v3737
        %v3739 = vpop.f32.mrb[0].mxu0
        %v3740 = vadd.f32 %v3249, %v3739
        %v3741 = vpop.f32.mrb[0].mxu0
        %v3742 = vadd.f32 %v3253, %v3741
        %3743 = vmatprep.mubr.bf16.mxu0 0
        %3744 = vmatmul.mubr.bf16.gmra.mrb[0].mxu0 %v432
        %v3745 = vpop.f32.mrb[0].mxu0
        %v3746 = vadd.f32 %v3249, %v3745
        %v3747 = vpop.f32.mrb[0].mxu0
        %v3748 = vadd.f32 %v3253, %v3747
        %v3749 = vpop.f32.mrb[0].mxu0
        %v3750 = vadd.f32 %v3249, %v3749
        %v3751 = vpop.f32.mrb[0].mxu0
        %v3752 = vadd.f32 %v3253, %v3751
        %3753 = vmatprep.mubr.bf16.mxu0 0
        %3754 = vmatmul.mubr.bf16.gmra.mrb[0].mxu0 %v433
        %v3755 = vpop.f32.mrb[0].mxu0
        %v3756 = vadd.f32 %v3249, %v3755
        %v3757 = vpop.f32.mrb[0].mxu0
        %v3758 = vadd.f32 %v3253, %v3757
        %v3759 = vpop.f32.mrb[0].mxu0
        %v3760 = vadd.f32 %v3249, %v3759
        %v3761 = vpop.f32.mrb[0].mxu0
        %v3762 = vadd.f32 %v3253, %v3761
        %3763 = vmatprep.mubr.bf16.mxu0 0
        %3764 = vmatmul.mubr.bf16.gmra.mrb[0].mxu0 %v434
        %v3765 = vpop.f32.mrb[0].mxu0
        %v3766 = vadd.f32 %v3249, %v3765
        %v3767 = vpop.f32.mrb[0].mxu0
        %v3768 = vadd.f32 %v3253, %v3767
        %v3769 = vpop.f32.mrb[0].mxu0
        %v3770 = vadd.f32 %v3249, %v3769
        %v3771 = vpop.f32.mrb[0].mxu0
        %v3772 = vadd.f32 %v3253, %v3771
        %3773 = vmatprep.mubr.bf16.mxu0 0
        %3774 = vmatmul.mubr.bf16.gmra.mrb[0].mxu0 %v435
        %v3775 = vpop.f32.mrb[0].mxu0
        %v3776 = vadd.f32 %v3249, %v3775
        %v3777 = vpop.f32.mrb[0].mxu0
        %v3778 = vadd.f32 %v3253, %v3777
        %v3779 = vpop.f32.mrb[0].mxu0
        %v3780 = vadd.f32 %v3249, %v3779
        %v3781 = vpop.f32.mrb[0].mxu0
        %v3782 = vadd.f32 %v3253, %v3781
        %3783 = vmatprep.mubr.bf16.mxu0 0
        %3784 = vmatmul.mubr.bf16.gmra.mrb[0].mxu0 %v436
        %v3785 = vpop.f32.mrb[0].mxu0
        %v3786 = vadd.f32 %v3249, %v3785
        %v3787 = vpop.f32.mrb[0].mxu0
        %v3788 = vadd.f32 %v3253, %v3787
        %v3789 = vpop.f32.mrb[0].mxu0
        %v3790 = vadd.f32 %v3249, %v3789
        %v3791 = vpop.f32.mrb[0].mxu0
        %v3792 = vadd.f32 %v3253, %v3791
        %3793 = vmatprep.mubr.bf16.mxu0 0
        %3794 = vmatmul.mubr.bf16.gmra.mrb[0].mxu0 %v437
        %v3795 = vpop.f32.mrb[0].mxu0
        %v3796 = vadd.f32 %v3249, %v3795
        %v3797 = vpop.f32.mrb[0].mxu0
        %v3798 = vadd.f32 %v3253, %v3797
        %v3799 = vpop.f32.mrb[0].mxu0
        %v3800 = vadd.f32 %v3249, %v3799
        %v3801 = vpop.f32.mrb[0].mxu0
        %v3802 = vadd.f32 %v3253, %v3801
        %3803 = vdwg.mxu0
        %v3804 = vmul.f32 %v3453, 0.5
        %v3805 = vmul.f32 %v3455, 0.5
        %v3806 = vmul.f32 %v3646, 0.5
        %v3807 = vmul.f32 %v3648, 0.5
        %v3808 = vmul.f32 %v3457, 0.5
        %v3809 = vmul.f32 %v3459, 0.5
        %v3810 = vmul.f32 %v3650, 0.5
        %v3811 = vmul.f32 %v3652, 0.5
        %v3812 = vmul.f32 %v3463, 0.5
        %v3813 = vmul.f32 %v3465, 0.5
        %v3814 = vmul.f32 %v3656, 0.5
        %v3815 = vmul.f32 %v3658, 0.5
        %v3816 = vmul.f32 %v3467, 0.5
        %v3817 = vmul.f32 %v3469, 0.5
        %v3818 = vmul.f32 %v3660, 0.5
        %v3819 = vmul.f32 %v3662, 0.5
        %v3820 = vmul.f32 %v3473, 0.5
        %v3821 = vmul.f32 %v3475, 0.5
        %v3822 = vmul.f32 %v3666, 0.5
        %v3823 = vmul.f32 %v3668, 0.5
        %v3824 = vmul.f32 %v3477, 0.5
        %v3825 = vmul.f32 %v3479, 0.5
        %v3826 = vmul.f32 %v3670, 0.5
        %v3827 = vmul.f32 %v3672, 0.5
        %v3828 = vmul.f32 %v3483, 0.5
        %v3829 = vmul.f32 %v3485, 0.5
        %v3830 = vmul.f32 %v3676, 0.5
        %v3831 = vmul.f32 %v3678, 0.5
        %v3832 = vmul.f32 %v3487, 0.5
        %v3833 = vmul.f32 %v3489, 0.5
        %v3834 = vmul.f32 %v3680, 0.5
        %v3835 = vmul.f32 %v3682, 0.5
        %v3836 = vmul.f32 %v3493, 0.5
        %v3837 = vmul.f32 %v3495, 0.5
        %v3838 = vmul.f32 %v3686, 0.5
        %v3839 = vmul.f32 %v3688, 0.5
        %v3840 = vmul.f32 %v3497, 0.5
        %v3841 = vmul.f32 %v3499, 0.5
        %v3842 = vmul.f32 %v3690, 0.5
        %v3843 = vmul.f32 %v3692, 0.5
        %v3844 = vmul.f32 %v3503, 0.5
        %v3845 = vmul.f32 %v3505, 0.5
        %v3846 = vmul.f32 %v3696, 0.5
        %v3847 = vmul.f32 %v3698, 0.5
        %v3848 = vmul.f32 %v3507, 0.5
        %v3849 = vmul.f32 %v3509, 0.5
        %v3850 = vmul.f32 %v3700, 0.5
        %v3851 = vmul.f32 %v3702, 0.5
        %v3852 = vmul.f32 %v3513, 0.5
        %v3853 = vmul.f32 %v3515, 0.5
        %v3854 = vmul.f32 %v3706, 0.5
        %v3855 = vmul.f32 %v3708, 0.5
        %v3856 = vmul.f32 %v3517, 0.5
        %v3857 = vmul.f32 %v3519, 0.5
        %v3858 = vmul.f32 %v3710, 0.5
        %v3859 = vmul.f32 %v3712, 0.5
        %v3860 = vmul.f32 %v3523, 0.5
        %v3861 = vmul.f32 %v3525, 0.5
        %v3862 = vmul.f32 %v3716, 0.5
        %v3863 = vmul.f32 %v3718, 0.5
        %v3864 = vmul.f32 %v3527, 0.5
        %v3865 = vmul.f32 %v3529, 0.5
        %v3866 = vmul.f32 %v3720, 0.5
        %v3867 = vmul.f32 %v3722, 0.5
        %v3868 = vmul.f32 %v3533, 0.5
        %v3869 = vmul.f32 %v3535, 0.5
        %v3870 = vmul.f32 %v3726, 0.5
        %v3871 = vmul.f32 %v3728, 0.5
        %v3872 = vmul.f32 %v3537, 0.5
        %v3873 = vmul.f32 %v3539, 0.5
        %v3874 = vmul.f32 %v3730, 0.5
        %v3875 = vmul.f32 %v3732, 0.5
        %v3876 = vmul.f32 %v3543, 0.5
        %v3877 = vmul.f32 %v3545, 0.5
        %v3878 = vmul.f32 %v3736, 0.5
        %v3879 = vmul.f32 %v3738, 0.5
        %v3880 = vmul.f32 %v3547, 0.5
        %v3881 = vmul.f32 %v3549, 0.5
        %v3882 = vmul.f32 %v3740, 0.5
        %v3883 = vmul.f32 %v3742, 0.5
        %v3884 = vmul.f32 %v3553, 0.5
        %v3885 = vmul.f32 %v3555, 0.5
        %v3886 = vmul.f32 %v3746, 0.5
        %v3887 = vmul.f32 %v3748, 0.5
        %v3888 = vmul.f32 %v3557, 0.5
        %v3889 = vmul.f32 %v3559, 0.5
        %v3890 = vmul.f32 %v3750, 0.5
        %v3891 = vmul.f32 %v3752, 0.5
        %v3892 = vmul.f32 %v3563, 0.5
        %v3893 = vmul.f32 %v3565, 0.5
        %v3894 = vmul.f32 %v3756, 0.5
        %v3895 = vmul.f32 %v3758, 0.5
        %v3896 = vmul.f32 %v3567, 0.5
        %v3897 = vmul.f32 %v3569, 0.5
        %v3898 = vmul.f32 %v3760, 0.5
        %v3899 = vmul.f32 %v3762, 0.5
        %v3900 = vmul.f32 %v3573, 0.5
        %v3901 = vmul.f32 %v3575, 0.5
        %v3902 = vmul.f32 %v3766, 0.5
        %v3903 = vmul.f32 %v3768, 0.5
        %v3904 = vmul.f32 %v3577, 0.5
        %v3905 = vmul.f32 %v3579, 0.5
        %v3906 = vmul.f32 %v3770, 0.5
        %v3907 = vmul.f32 %v3772, 0.5
        %v3908 = vmul.f32 %v3583, 0.5
        %v3909 = vmul.f32 %v3585, 0.5
        %v3910 = vmul.f32 %v3776, 0.5
        %v3911 = vmul.f32 %v3778, 0.5
        %v3912 = vmul.f32 %v3587, 0.5
        %v3913 = vmul.f32 %v3589, 0.5
        %v3914 = vmul.f32 %v3780, 0.5
        %v3915 = vmul.f32 %v3782, 0.5
        %v3916 = vmul.f32 %v3593, 0.5
        %v3917 = vmul.f32 %v3595, 0.5
        %v3918 = vmul.f32 %v3786, 0.5
        %v3919 = vmul.f32 %v3788, 0.5
        %v3920 = vmul.f32 %v3597, 0.5
        %v3921 = vmul.f32 %v3599, 0.5
        %v3922 = vmul.f32 %v3790, 0.5
        %v3923 = vmul.f32 %v3792, 0.5
        %v3924 = vmul.f32 %v3603, 0.5
        %v3925 = vmul.f32 %v3605, 0.5
        %v3926 = vmul.f32 %v3796, 0.5
        %v3927 = vmul.f32 %v3798, 0.5
        %v3928 = vmul.f32 %v3607, 0.5
        %v3929 = vmul.f32 %v3609, 0.5
        %v3930 = vmul.f32 %v3800, 0.5
        %v3931 = vmul.f32 %v3802, 0.5
        %v3932 = vmul.f32 %v3453, 0.70710677
        %v3933 = vmul.f32 %v3455, 0.70710677
        %v3934 = vmul.f32 %v3646, 0.70710677
        %v3935 = vmul.f32 %v3648, 0.70710677
        %v3936 = vmul.f32 %v3457, 0.70710677
        %v3937 = vmul.f32 %v3459, 0.70710677
        %v3938 = vmul.f32 %v3650, 0.70710677
        %v3939 = vmul.f32 %v3652, 0.70710677
        %v3940 = vmul.f32 %v3463, 0.70710677
        %v3941 = vmul.f32 %v3465, 0.70710677
        %v3942 = vmul.f32 %v3656, 0.70710677
        %v3943 = vmul.f32 %v3658, 0.70710677
        %v3944 = vmul.f32 %v3467, 0.70710677
        %v3945 = vmul.f32 %v3469, 0.70710677
        %v3946 = vmul.f32 %v3660, 0.70710677
        %v3947 = vmul.f32 %v3662, 0.70710677
        %v3948 = vmul.f32 %v3473, 0.70710677
        %v3949 = vmul.f32 %v3475, 0.70710677
        %v3950 = vmul.f32 %v3666, 0.70710677
        %v3951 = vmul.f32 %v3668, 0.70710677
        %v3952 = vmul.f32 %v3477, 0.70710677
        %v3953 = vmul.f32 %v3479, 0.70710677
        %v3954 = vmul.f32 %v3670, 0.70710677
        %v3955 = vmul.f32 %v3672, 0.70710677
        %v3956 = vmul.f32 %v3483, 0.70710677
        %v3957 = vmul.f32 %v3485, 0.70710677
        %v3958 = vmul.f32 %v3676, 0.70710677
        %v3959 = vmul.f32 %v3678, 0.70710677
        %v3960 = vmul.f32 %v3487, 0.70710677
        %v3961 = vmul.f32 %v3489, 0.70710677
        %v3962 = vmul.f32 %v3680, 0.70710677
        %v3963 = vmul.f32 %v3682, 0.70710677
        %v3964 = vmul.f32 %v3493, 0.70710677
        %v3965 = vmul.f32 %v3495, 0.70710677
        %v3966 = vmul.f32 %v3686, 0.70710677
        %v3967 = vmul.f32 %v3688, 0.70710677
        %v3968 = vmul.f32 %v3497, 0.70710677
        %v3969 = vmul.f32 %v3499, 0.70710677
        %v3970 = vmul.f32 %v3690, 0.70710677
        %v3971 = vmul.f32 %v3692, 0.70710677
        %v3972 = vmul.f32 %v3503, 0.70710677
        %v3973 = vmul.f32 %v3505, 0.70710677
        %v3974 = vmul.f32 %v3696, 0.70710677
        %v3975 = vmul.f32 %v3698, 0.70710677
        %v3976 = vmul.f32 %v3507, 0.70710677
        %v3977 = vmul.f32 %v3509, 0.70710677
        %v3978 = vmul.f32 %v3700, 0.70710677
        %v3979 = vmul.f32 %v3702, 0.70710677
        %v3980 = vmul.f32 %v3513, 0.70710677
        %v3981 = vmul.f32 %v3515, 0.70710677
        %v3982 = vmul.f32 %v3706, 0.70710677
        %v3983 = vmul.f32 %v3708, 0.70710677
        %v3984 = vmul.f32 %v3517, 0.70710677
        %v3985 = vmul.f32 %v3519, 0.70710677
        %v3986 = vmul.f32 %v3710, 0.70710677
        %v3987 = vmul.f32 %v3712, 0.70710677
        %v3988 = vmul.f32 %v3523, 0.70710677
        %v3989 = vmul.f32 %v3525, 0.70710677
        %v3990 = vmul.f32 %v3716, 0.70710677
        %v3991 = vmul.f32 %v3718, 0.70710677
        %v3992 = vmul.f32 %v3527, 0.70710677
        %v3993 = vmul.f32 %v3529, 0.70710677
        %v3994 = vmul.f32 %v3720, 0.70710677
        %v3995 = vmul.f32 %v3722, 0.70710677
        %v3996 = vmul.f32 %v3533, 0.70710677
        %v3997 = vmul.f32 %v3535, 0.70710677
        %v3998 = vmul.f32 %v3726, 0.70710677
        %v3999 = vmul.f32 %v3728, 0.70710677
        %v4000 = vmul.f32 %v3537, 0.70710677
        %v4001 = vmul.f32 %v3539, 0.70710677
        %v4002 = vmul.f32 %v3730, 0.70710677
        %v4003 = vmul.f32 %v3732, 0.70710677
        %v4004 = vmul.f32 %v3543, 0.70710677
        %v4005 = vmul.f32 %v3545, 0.70710677
        %v4006 = vmul.f32 %v3736, 0.70710677
        %v4007 = vmul.f32 %v3738, 0.70710677
        %v4008 = vmul.f32 %v3547, 0.70710677
        %v4009 = vmul.f32 %v3549, 0.70710677
        %v4010 = vmul.f32 %v3740, 0.70710677
        %v4011 = vmul.f32 %v3742, 0.70710677
        %v4012 = vmul.f32 %v3553, 0.70710677
        %v4013 = vmul.f32 %v3555, 0.70710677
        %v4014 = vmul.f32 %v3746, 0.70710677
        %v4015 = vmul.f32 %v3748, 0.70710677
        %v4016 = vmul.f32 %v3557, 0.70710677
        %v4017 = vmul.f32 %v3559, 0.70710677
        %v4018 = vmul.f32 %v3750, 0.70710677
        %v4019 = vmul.f32 %v3752, 0.70710677
        %v4020 = vmul.f32 %v3563, 0.70710677
        %v4021 = vmul.f32 %v3565, 0.70710677
        %v4022 = vmul.f32 %v3756, 0.70710677
        %v4023 = vmul.f32 %v3758, 0.70710677
        %v4024 = vmul.f32 %v3567, 0.70710677
        %v4025 = vmul.f32 %v3569, 0.70710677
        %v4026 = vmul.f32 %v3760, 0.70710677
        %v4027 = vmul.f32 %v3762, 0.70710677
        %v4028 = vmul.f32 %v3573, 0.70710677
        %v4029 = vmul.f32 %v3575, 0.70710677
        %v4030 = vmul.f32 %v3766, 0.70710677
        %v4031 = vmul.f32 %v3768, 0.70710677
        %v4032 = vmul.f32 %v3577, 0.70710677
        %v4033 = vmul.f32 %v3579, 0.70710677
        %v4034 = vmul.f32 %v3770, 0.70710677
        %v4035 = vmul.f32 %v3772, 0.70710677
        %v4036 = vmul.f32 %v3583, 0.70710677
        %v4037 = vmul.f32 %v3585, 0.70710677
        %v4038 = vmul.f32 %v3776, 0.70710677
        %v4039 = vmul.f32 %v3778, 0.70710677
        %v4040 = vmul.f32 %v3587, 0.70710677
        %v4041 = vmul.f32 %v3589, 0.70710677
        %v4042 = vmul.f32 %v3780, 0.70710677
        %v4043 = vmul.f32 %v3782, 0.70710677
        %v4044 = vmul.f32 %v3593, 0.70710677
        %v4045 = vmul.f32 %v3595, 0.70710677
        %v4046 = vmul.f32 %v3786, 0.70710677
        %v4047 = vmul.f32 %v3788, 0.70710677
        %v4048 = vmul.f32 %v3597, 0.70710677
        %v4049 = vmul.f32 %v3599, 0.70710677
        %v4050 = vmul.f32 %v3790, 0.70710677
        %v4051 = vmul.f32 %v3792, 0.70710677
        %v4052 = vmul.f32 %v3603, 0.70710677
        %v4053 = vmul.f32 %v3605, 0.70710677
        %v4054 = vmul.f32 %v3796, 0.70710677
        %v4055 = vmul.f32 %v3798, 0.70710677
        %v4056 = vmul.f32 %v3607, 0.70710677
        %v4057 = vmul.f32 %v3609, 0.70710677
        %v4058 = vmul.f32 %v3800, 0.70710677
        %v4059 = vmul.f32 %v3802, 0.70710677
        %v4060 = verf.f32.pop %v3932
        %v4061 = verf.f32.pop %v3933
        %v4062 = verf.f32.pop %v3934
        %v4063 = verf.f32.pop %v3935
        %v4064 = verf.f32.pop %v3936
        %v4065 = verf.f32.pop %v3937
        %v4066 = verf.f32.pop %v3938
        %v4067 = verf.f32.pop %v3939
        %v4068 = verf.f32.pop %v3940
        %v4069 = verf.f32.pop %v3941
        %v4070 = verf.f32.pop %v3942
        %v4071 = verf.f32.pop %v3943
        %v4072 = verf.f32.pop %v3944
        %v4073 = verf.f32.pop %v3945
        %v4074 = verf.f32.pop %v3946
        %v4075 = verf.f32.pop %v3947
        %v4076 = verf.f32.pop %v3948
        %v4077 = verf.f32.pop %v3949
        %v4078 = verf.f32.pop %v3950
        %v4079 = verf.f32.pop %v3951
        %v4080 = verf.f32.pop %v3952
        %v4081 = verf.f32.pop %v3953
        %v4082 = verf.f32.pop %v3954
        %v4083 = verf.f32.pop %v3955
        %v4084 = verf.f32.pop %v3956
        %v4085 = verf.f32.pop %v3957
        %v4086 = verf.f32.pop %v3958
        %v4087 = verf.f32.pop %v3959
        %v4088 = verf.f32.pop %v3960
        %v4089 = verf.f32.pop %v3961
        %v4090 = verf.f32.pop %v3962
        %v4091 = verf.f32.pop %v3963
        %v4092 = verf.f32.pop %v3964
        %v4093 = verf.f32.pop %v3965
        %v4094 = verf.f32.pop %v3966
        %v4095 = verf.f32.pop %v3967
        %v4096 = verf.f32.pop %v3968
        %v4097 = verf.f32.pop %v3969
        %v4098 = verf.f32.pop %v3970
        %v4099 = verf.f32.pop %v3971
        %v4100 = verf.f32.pop %v3972
        %v4101 = verf.f32.pop %v3973
        %v4102 = verf.f32.pop %v3974
        %v4103 = verf.f32.pop %v3975
        %v4104 = verf.f32.pop %v3976
        %v4105 = verf.f32.pop %v3977
        %v4106 = verf.f32.pop %v3978
        %v4107 = verf.f32.pop %v3979
        %v4108 = verf.f32.pop %v3980
        %v4109 = verf.f32.pop %v3981
        %v4110 = verf.f32.pop %v3982
        %v4111 = verf.f32.pop %v3983
        %v4112 = verf.f32.pop %v3984
        %v4113 = verf.f32.pop %v3985
        %v4114 = verf.f32.pop %v3986
        %v4115 = verf.f32.pop %v3987
        %v4116 = verf.f32.pop %v3988
        %v4117 = verf.f32.pop %v3989
        %v4118 = verf.f32.pop %v3990
        %v4119 = verf.f32.pop %v3991
        %v4120 = verf.f32.pop %v3992
        %v4121 = verf.f32.pop %v3993
        %v4122 = verf.f32.pop %v3994
        %v4123 = verf.f32.pop %v3995
        %v4124 = verf.f32.pop %v3996
        %v4125 = verf.f32.pop %v3997
        %v4126 = verf.f32.pop %v3998
        %v4127 = verf.f32.pop %v3999
        %v4128 = verf.f32.pop %v4000
        %v4129 = verf.f32.pop %v4001
        %v4130 = verf.f32.pop %v4002
        %v4131 = verf.f32.pop %v4003
        %v4132 = verf.f32.pop %v4004
        %v4133 = verf.f32.pop %v4005
        %v4134 = verf.f32.pop %v4006
        %v4135 = verf.f32.pop %v4007
        %v4136 = verf.f32.pop %v4008
        %v4137 = verf.f32.pop %v4009
        %v4138 = verf.f32.pop %v4010
        %v4139 = verf.f32.pop %v4011
        %v4140 = verf.f32.pop %v4012
        %v4141 = verf.f32.pop %v4013
        %v4142 = verf.f32.pop %v4014
        %v4143 = verf.f32.pop %v4015
        %v4144 = verf.f32.pop %v4016
        %v4145 = verf.f32.pop %v4017
        %v4146 = verf.f32.pop %v4018
        %v4147 = verf.f32.pop %v4019
        %v4148 = verf.f32.pop %v4020
        %v4149 = verf.f32.pop %v4021
        %v4150 = verf.f32.pop %v4022
        %v4151 = verf.f32.pop %v4023
        %v4152 = verf.f32.pop %v4024
        %v4153 = verf.f32.pop %v4025
        %v4154 = verf.f32.pop %v4026
        %v4155 = verf.f32.pop %v4027
        %v4156 = verf.f32.pop %v4028
        %v4157 = verf.f32.pop %v4029
        %v4158 = verf.f32.pop %v4030
        %v4159 = verf.f32.pop %v4031
        %v4160 = verf.f32.pop %v4032
        %v4161 = verf.f32.pop %v4033
        %v4162 = verf.f32.pop %v4034
        %v4163 = verf.f32.pop %v4035
        %v4164 = verf.f32.pop %v4036
        %v4165 = verf.f32.pop %v4037
        %v4166 = verf.f32.pop %v4038
        %v4167 = verf.f32.pop %v4039
        %v4168 = verf.f32.pop %v4040
        %v4169 = verf.f32.pop %v4041
        %v4170 = verf.f32.pop %v4042
        %v4171 = verf.f32.pop %v4043
        %v4172 = verf.f32.pop %v4044
        %v4173 = verf.f32.pop %v4045
        %v4174 = verf.f32.pop %v4046
        %v4175 = verf.f32.pop %v4047
        %v4176 = verf.f32.pop %v4048
        %v4177 = verf.f32.pop %v4049
        %v4178 = verf.f32.pop %v4050
        %v4179 = verf.f32.pop %v4051
        %v4180 = verf.f32.pop %v4052
        %v4181 = verf.f32.pop %v4053
        %v4182 = verf.f32.pop %v4054
        %v4183 = verf.f32.pop %v4055
        %v4184 = verf.f32.pop %v4056
        %v4185 = verf.f32.pop %v4057
        %v4186 = verf.f32.pop %v4058
        %v4187 = verf.f32.pop %v4059
        %v4188 = vadd.f32 %v4060, 1.0
        %v4189 = vadd.f32 %v4061, 1.0
        %v4190 = vadd.f32 %v4062, 1.0
        %v4191 = vadd.f32 %v4063, 1.0
        %v4192 = vadd.f32 %v4064, 1.0
        %v4193 = vadd.f32 %v4065, 1.0
        %v4194 = vadd.f32 %v4066, 1.0
        %v4195 = vadd.f32 %v4067, 1.0
        %v4196 = vadd.f32 %v4068, 1.0
        %v4197 = vadd.f32 %v4069, 1.0
        %v4198 = vadd.f32 %v4070, 1.0
        %v4199 = vadd.f32 %v4071, 1.0
        %v4200 = vadd.f32 %v4072, 1.0
        %v4201 = vadd.f32 %v4073, 1.0
        %v4202 = vadd.f32 %v4074, 1.0
        %v4203 = vadd.f32 %v4075, 1.0
        %v4204 = vadd.f32 %v4076, 1.0
        %v4205 = vadd.f32 %v4077, 1.0
        %v4206 = vadd.f32 %v4078, 1.0
        %v4207 = vadd.f32 %v4079, 1.0
        %v4208 = vadd.f32 %v4080, 1.0
        %v4209 = vadd.f32 %v4081, 1.0
        %v4210 = vadd.f32 %v4082, 1.0
        %v4211 = vadd.f32 %v4083, 1.0
        %v4212 = vadd.f32 %v4084, 1.0
        %v4213 = vadd.f32 %v4085, 1.0
        %v4214 = vadd.f32 %v4086, 1.0
        %v4215 = vadd.f32 %v4087, 1.0
        %v4216 = vadd.f32 %v4088, 1.0
        %v4217 = vadd.f32 %v4089, 1.0
        %v4218 = vadd.f32 %v4090, 1.0
        %v4219 = vadd.f32 %v4091, 1.0
        %v4220 = vadd.f32 %v4092, 1.0
        %v4221 = vadd.f32 %v4093, 1.0
        %v4222 = vadd.f32 %v4094, 1.0
        %v4223 = vadd.f32 %v4095, 1.0
        %v4224 = vadd.f32 %v4096, 1.0
        %v4225 = vadd.f32 %v4097, 1.0
        %v4226 = vadd.f32 %v4098, 1.0
        %v4227 = vadd.f32 %v4099, 1.0
        %v4228 = vadd.f32 %v4100, 1.0
        %v4229 = vadd.f32 %v4101, 1.0
        %v4230 = vadd.f32 %v4102, 1.0
        %v4231 = vadd.f32 %v4103, 1.0
        %v4232 = vadd.f32 %v4104, 1.0
        %v4233 = vadd.f32 %v4105, 1.0
        %v4234 = vadd.f32 %v4106, 1.0
        %v4235 = vadd.f32 %v4107, 1.0
        %v4236 = vadd.f32 %v4108, 1.0
        %v4237 = vadd.f32 %v4109, 1.0
        %v4238 = vadd.f32 %v4110, 1.0
        %v4239 = vadd.f32 %v4111, 1.0
        %v4240 = vadd.f32 %v4112, 1.0
        %v4241 = vadd.f32 %v4113, 1.0
        %v4242 = vadd.f32 %v4114, 1.0
        %v4243 = vadd.f32 %v4115, 1.0
        %v4244 = vadd.f32 %v4116, 1.0
        %v4245 = vadd.f32 %v4117, 1.0
        %v4246 = vadd.f32 %v4118, 1.0
        %v4247 = vadd.f32 %v4119, 1.0
        %v4248 = vadd.f32 %v4120, 1.0
        %v4249 = vadd.f32 %v4121, 1.0
        %v4250 = vadd.f32 %v4122, 1.0
        %v4251 = vadd.f32 %v4123, 1.0
        %v4252 = vadd.f32 %v4124, 1.0
        %v4253 = vadd.f32 %v4125, 1.0
        %v4254 = vadd.f32 %v4126, 1.0
        %v4255 = vadd.f32 %v4127, 1.0
        %v4256 = vadd.f32 %v4128, 1.0
        %v4257 = vadd.f32 %v4129, 1.0
        %v4258 = vadd.f32 %v4130, 1.0
        %v4259 = vadd.f32 %v4131, 1.0
        %v4260 = vadd.f32 %v4132, 1.0
        %v4261 = vadd.f32 %v4133, 1.0
        %v4262 = vadd.f32 %v4134, 1.0
        %v4263 = vadd.f32 %v4135, 1.0
        %v4264 = vadd.f32 %v4136, 1.0
        %v4265 = vadd.f32 %v4137, 1.0
        %v4266 = vadd.f32 %v4138, 1.0
        %v4267 = vadd.f32 %v4139, 1.0
        %v4268 = vadd.f32 %v4140, 1.0
        %v4269 = vadd.f32 %v4141, 1.0
        %v4270 = vadd.f32 %v4142, 1.0
        %v4271 = vadd.f32 %v4143, 1.0
        %v4272 = vadd.f32 %v4144, 1.0
        %v4273 = vadd.f32 %v4145, 1.0
        %v4274 = vadd.f32 %v4146, 1.0
        %v4275 = vadd.f32 %v4147, 1.0
        %v4276 = vadd.f32 %v4148, 1.0
        %v4277 = vadd.f32 %v4149, 1.0
        %v4278 = vadd.f32 %v4150, 1.0
        %v4279 = vadd.f32 %v4151, 1.0
        %v4280 = vadd.f32 %v4152, 1.0
        %v4281 = vadd.f32 %v4153, 1.0
        %v4282 = vadd.f32 %v4154, 1.0
        %v4283 = vadd.f32 %v4155, 1.0
        %v4284 = vadd.f32 %v4156, 1.0
        %v4285 = vadd.f32 %v4157, 1.0
        %v4286 = vadd.f32 %v4158, 1.0
        %v4287 = vadd.f32 %v4159, 1.0
        %v4288 = vadd.f32 %v4160, 1.0
        %v4289 = vadd.f32 %v4161, 1.0
        %v4290 = vadd.f32 %v4162, 1.0
        %v4291 = vadd.f32 %v4163, 1.0
        %v4292 = vadd.f32 %v4164, 1.0
        %v4293 = vadd.f32 %v4165, 1.0
        %v4294 = vadd.f32 %v4166, 1.0
        %v4295 = vadd.f32 %v4167, 1.0
        %v4296 = vadd.f32 %v4168, 1.0
        %v4297 = vadd.f32 %v4169, 1.0
        %v4298 = vadd.f32 %v4170, 1.0
        %v4299 = vadd.f32 %v4171, 1.0
        %v4300 = vadd.f32 %v4172, 1.0
        %v4301 = vadd.f32 %v4173, 1.0
        %v4302 = vadd.f32 %v4174, 1.0
        %v4303 = vadd.f32 %v4175, 1.0
        %v4304 = vadd.f32 %v4176, 1.0
        %v4305 = vadd.f32 %v4177, 1.0
        %v4306 = vadd.f32 %v4178, 1.0
        %v4307 = vadd.f32 %v4179, 1.0
        %v4308 = vadd.f32 %v4180, 1.0
        %v4309 = vadd.f32 %v4181, 1.0
        %v4310 = vadd.f32 %v4182, 1.0
        %v4311 = vadd.f32 %v4183, 1.0
        %v4312 = vadd.f32 %v4184, 1.0
        %v4313 = vadd.f32 %v4185, 1.0
        %v4314 = vadd.f32 %v4186, 1.0
        %v4315 = vadd.f32 %v4187, 1.0
        %v4316 = vmul.f32 %v3804, %v4188
        %v4317 = vmul.f32 %v3805, %v4189
        %v4318 = vmul.f32 %v3806, %v4190
        %v4319 = vmul.f32 %v3807, %v4191
        %v4320 = vmul.f32 %v3808, %v4192
        %v4321 = vmul.f32 %v3809, %v4193
        %v4322 = vmul.f32 %v3810, %v4194
        %v4323 = vmul.f32 %v3811, %v4195
        %v4324 = vmul.f32 %v3812, %v4196
        %v4325 = vmul.f32 %v3813, %v4197
        %v4326 = vmul.f32 %v3814, %v4198
        %v4327 = vmul.f32 %v3815, %v4199
        %v4328 = vmul.f32 %v3816, %v4200
        %v4329 = vmul.f32 %v3817, %v4201
        %v4330 = vmul.f32 %v3818, %v4202
        %v4331 = vmul.f32 %v3819, %v4203
        %v4332 = vmul.f32 %v3820, %v4204
        %v4333 = vmul.f32 %v3821, %v4205
        %v4334 = vmul.f32 %v3822, %v4206
        %v4335 = vmul.f32 %v3823, %v4207
        %v4336 = vmul.f32 %v3824, %v4208
        %v4337 = vmul.f32 %v3825, %v4209
        %v4338 = vmul.f32 %v3826, %v4210
        %v4339 = vmul.f32 %v3827, %v4211
        %v4340 = vmul.f32 %v3828, %v4212
        %v4341 = vmul.f32 %v3829, %v4213
        %v4342 = vmul.f32 %v3830, %v4214
        %v4343 = vmul.f32 %v3831, %v4215
        %v4344 = vmul.f32 %v3832, %v4216
        %v4345 = vmul.f32 %v3833, %v4217
        %v4346 = vmul.f32 %v3834, %v4218
        %v4347 = vmul.f32 %v3835, %v4219
        %v4348 = vmul.f32 %v3836, %v4220
        %v4349 = vmul.f32 %v3837, %v4221
        %v4350 = vmul.f32 %v3838, %v4222
        %v4351 = vmul.f32 %v3839, %v4223
        %v4352 = vmul.f32 %v3840, %v4224
        %v4353 = vmul.f32 %v3841, %v4225
        %v4354 = vmul.f32 %v3842, %v4226
        %v4355 = vmul.f32 %v3843, %v4227
        %v4356 = vmul.f32 %v3844, %v4228
        %v4357 = vmul.f32 %v3845, %v4229
        %v4358 = vmul.f32 %v3846, %v4230
        %v4359 = vmul.f32 %v3847, %v4231
        %v4360 = vmul.f32 %v3848, %v4232
        %v4361 = vmul.f32 %v3849, %v4233
        %v4362 = vmul.f32 %v3850, %v4234
        %v4363 = vmul.f32 %v3851, %v4235
        %v4364 = vmul.f32 %v3852, %v4236
        %v4365 = vmul.f32 %v3853, %v4237
        %v4366 = vmul.f32 %v3854, %v4238
        %v4367 = vmul.f32 %v3855, %v4239
        %v4368 = vmul.f32 %v3856, %v4240
        %v4369 = vmul.f32 %v3857, %v4241
        %v4370 = vmul.f32 %v3858, %v4242
        %v4371 = vmul.f32 %v3859, %v4243
        %v4372 = vmul.f32 %v3860, %v4244
        %v4373 = vmul.f32 %v3861, %v4245
        %v4374 = vmul.f32 %v3862, %v4246
        %v4375 = vmul.f32 %v3863, %v4247
        %v4376 = vmul.f32 %v3864, %v4248
        %v4377 = vmul.f32 %v3865, %v4249
        %v4378 = vmul.f32 %v3866, %v4250
        %v4379 = vmul.f32 %v3867, %v4251
        %v4380 = vmul.f32 %v3868, %v4252
        %v4381 = vmul.f32 %v3869, %v4253
        %v4382 = vmul.f32 %v3870, %v4254
        %v4383 = vmul.f32 %v3871, %v4255
        %v4384 = vmul.f32 %v3872, %v4256
        %v4385 = vmul.f32 %v3873, %v4257
        %v4386 = vmul.f32 %v3874, %v4258
        %v4387 = vmul.f32 %v3875, %v4259
        %v4388 = vmul.f32 %v3876, %v4260
        %v4389 = vmul.f32 %v3877, %v4261
        %v4390 = vmul.f32 %v3878, %v4262
        %v4391 = vmul.f32 %v3879, %v4263
        %v4392 = vmul.f32 %v3880, %v4264
        %v4393 = vmul.f32 %v3881, %v4265
        %v4394 = vmul.f32 %v3882, %v4266
        %v4395 = vmul.f32 %v3883, %v4267
        %v4396 = vmul.f32 %v3884, %v4268
        %v4397 = vmul.f32 %v3885, %v4269
        %v4398 = vmul.f32 %v3886, %v4270
        %v4399 = vmul.f32 %v3887, %v4271
        %v4400 = vmul.f32 %v3888, %v4272
        %v4401 = vmul.f32 %v3889, %v4273
        %v4402 = vmul.f32 %v3890, %v4274
        %v4403 = vmul.f32 %v3891, %v4275
        %v4404 = vmul.f32 %v3892, %v4276
        %v4405 = vmul.f32 %v3893, %v4277
        %v4406 = vmul.f32 %v3894, %v4278
        %v4407 = vmul.f32 %v3895, %v4279
        %v4408 = vmul.f32 %v3896, %v4280
        %v4409 = vmul.f32 %v3897, %v4281
        %v4410 = vmul.f32 %v3898, %v4282
        %v4411 = vmul.f32 %v3899, %v4283
        %v4412 = vmul.f32 %v3900, %v4284
        %v4413 = vmul.f32 %v3901, %v4285
        %v4414 = vmul.f32 %v3902, %v4286
        %v4415 = vmul.f32 %v3903, %v4287
        %v4416 = vmul.f32 %v3904, %v4288
        %v4417 = vmul.f32 %v3905, %v4289
        %v4418 = vmul.f32 %v3906, %v4290
        %v4419 = vmul.f32 %v3907, %v4291
        %v4420 = vmul.f32 %v3908, %v4292
        %v4421 = vmul.f32 %v3909, %v4293
        %v4422 = vmul.f32 %v3910, %v4294
        %v4423 = vmul.f32 %v3911, %v4295
        %v4424 = vmul.f32 %v3912, %v4296
        %v4425 = vmul.f32 %v3913, %v4297
        %v4426 = vmul.f32 %v3914, %v4298
        %v4427 = vmul.f32 %v3915, %v4299
        %v4428 = vmul.f32 %v3916, %v4300
        %v4429 = vmul.f32 %v3917, %v4301
        %v4430 = vmul.f32 %v3918, %v4302
        %v4431 = vmul.f32 %v3919, %v4303
        %v4432 = vmul.f32 %v3920, %v4304
        %v4433 = vmul.f32 %v3921, %v4305
        %v4434 = vmul.f32 %v3922, %v4306
        %v4435 = vmul.f32 %v3923, %v4307
        %v4436 = vmul.f32 %v3924, %v4308
        %v4437 = vmul.f32 %v3925, %v4309
        %v4438 = vmul.f32 %v3926, %v4310
        %v4439 = vmul.f32 %v3927, %v4311
        %v4440 = vmul.f32 %v3928, %v4312
        %v4441 = vmul.f32 %v3929, %v4313
        %v4442 = vmul.f32 %v3930, %v4314
        %v4443 = vmul.f32 %v3931, %v4315
        %v4444 = vld [vmem:[#allocation7 + $0x20] sm:$0xff]
        %v4445 = vld [vmem:[#allocation7 + $0x28] sm:$0xff]
        %v4446 = vpack.c.bf16 %v4320, %v4316
        %v4447 = vpack.c.bf16 %v4321, %v4317
        %v4448 = vpack.c.bf16 %v4322, %v4318
        %v4449 = vpack.c.bf16 %v4323, %v4319
        %v4450 = vpack.c.bf16 %v4328, %v4324
        %v4451 = vpack.c.bf16 %v4329, %v4325
        %v4452 = vpack.c.bf16 %v4330, %v4326
        %v4453 = vpack.c.bf16 %v4331, %v4327
        %v4454 = vpack.c.bf16 %v4336, %v4332
        %v4455 = vpack.c.bf16 %v4337, %v4333
        %v4456 = vpack.c.bf16 %v4338, %v4334
        %v4457 = vpack.c.bf16 %v4339, %v4335
        %v4458 = vpack.c.bf16 %v4344, %v4340
        %v4459 = vpack.c.bf16 %v4345, %v4341
        %v4460 = vpack.c.bf16 %v4346, %v4342
        %v4461 = vpack.c.bf16 %v4347, %v4343
        %v4462 = vpack.c.bf16 %v4352, %v4348
        %v4463 = vpack.c.bf16 %v4353, %v4349
        %v4464 = vpack.c.bf16 %v4354, %v4350
        %v4465 = vpack.c.bf16 %v4355, %v4351
        %v4466 = vpack.c.bf16 %v4360, %v4356
        %v4467 = vpack.c.bf16 %v4361, %v4357
        %v4468 = vpack.c.bf16 %v4362, %v4358
        %v4469 = vpack.c.bf16 %v4363, %v4359
        %v4470 = vpack.c.bf16 %v4368, %v4364
        %v4471 = vpack.c.bf16 %v4369, %v4365
        %v4472 = vpack.c.bf16 %v4370, %v4366
        %v4473 = vpack.c.bf16 %v4371, %v4367
        %v4474 = vpack.c.bf16 %v4376, %v4372
        %v4475 = vpack.c.bf16 %v4377, %v4373
        %v4476 = vpack.c.bf16 %v4378, %v4374
        %v4477 = vpack.c.bf16 %v4379, %v4375
        %v4478 = vpack.c.bf16 %v4384, %v4380
        %v4479 = vpack.c.bf16 %v4385, %v4381
        %v4480 = vpack.c.bf16 %v4386, %v4382
        %v4481 = vpack.c.bf16 %v4387, %v4383
        %v4482 = vpack.c.bf16 %v4392, %v4388
        %v4483 = vpack.c.bf16 %v4393, %v4389
        %v4484 = vpack.c.bf16 %v4394, %v4390
        %v4485 = vpack.c.bf16 %v4395, %v4391
        %v4486 = vpack.c.bf16 %v4400, %v4396
        %v4487 = vpack.c.bf16 %v4401, %v4397
        %v4488 = vpack.c.bf16 %v4402, %v4398
        %v4489 = vpack.c.bf16 %v4403, %v4399
        %v4490 = vpack.c.bf16 %v4408, %v4404
        %v4491 = vpack.c.bf16 %v4409, %v4405
        %v4492 = vpack.c.bf16 %v4410, %v4406
        %v4493 = vpack.c.bf16 %v4411, %v4407
        %v4494 = vpack.c.bf16 %v4416, %v4412
        %v4495 = vpack.c.bf16 %v4417, %v4413
        %v4496 = vpack.c.bf16 %v4418, %v4414
        %v4497 = vpack.c.bf16 %v4419, %v4415
        %v4498 = vpack.c.bf16 %v4424, %v4420
        %v4499 = vpack.c.bf16 %v4425, %v4421
        %v4500 = vpack.c.bf16 %v4426, %v4422
        %v4501 = vpack.c.bf16 %v4427, %v4423
        %v4502 = vpack.c.bf16 %v4432, %v4428
        %v4503 = vpack.c.bf16 %v4433, %v4429
        %v4504 = vpack.c.bf16 %v4434, %v4430
        %v4505 = vpack.c.bf16 %v4435, %v4431
        %v4506 = vpack.c.bf16 %v4440, %v4436
        %v4507 = vpack.c.bf16 %v4441, %v4437
        %v4508 = vpack.c.bf16 %v4442, %v4438
        %v4509 = vpack.c.bf16 %v4443, %v4439
        %v4512 = vunpack.c.l.b16 %v4444
        %v4513 = vunpack.c.h.b16 %v4444
        %v4514 = vunpack.c.l.b16 %v4445
        %v4515 = vunpack.c.h.b16 %v4445
        %v4516 = vpack.c.b16 %v4512, %v4512
        %v4517 = vpack.c.b16 %v4513, %v4513
        %v4518 = vpack.c.b16 %v4514, %v4514
        %v4519 = vpack.c.b16 %v4515, %v4515
        %4524 = vmatprep.subr.bf16.mxu0 %v4447
        %4525 = vmatpush1.bf16.xpose.msra.mxu0 %v4446
        %4526 = vmatprep.subr.bf16.mxu0 %v4451
        %4527 = vmatpush1.bf16.xpose.msra.mxu0 %v4450
        %4528 = vmatprep.subr.bf16.mxu0 %v4455
        %4529 = vmatpush1.bf16.xpose.msra.mxu0 %v4454
        %4530 = vmatprep.subr.bf16.mxu0 %v4459
        %4531 = vmatpush1.bf16.xpose.msra.mxu0 %v4458
        %4532 = vmatprep.subr.bf16.mxu0 %v4463
        %4533 = vmatpush1.bf16.xpose.msra.mxu0 %v4462
        %4534 = vmatprep.subr.bf16.mxu0 %v4467
        %4535 = vmatpush1.bf16.xpose.msra.mxu0 %v4466
        %4536 = vmatprep.subr.bf16.mxu0 %v4471
        %4537 = vmatpush1.bf16.xpose.msra.mxu0 %v4470
        %4538 = vmatprep.subr.bf16.mxu0 %v4475
        %4539 = vmatpush1.bf16.xpose.msra.mxu0 %v4474
        %4540 = vmatprep.subr.bf16.mxu0 %v4479
        %4541 = vmatpush1.bf16.xpose.msra.mxu0 %v4478
        %4542 = vmatprep.subr.bf16.mxu0 %v4483
        %4543 = vmatpush1.bf16.xpose.msra.mxu0 %v4482
        %4544 = vmatprep.subr.bf16.mxu0 %v4487
        %4545 = vmatpush1.bf16.xpose.msra.mxu0 %v4486
        %4546 = vmatprep.subr.bf16.mxu0 %v4491
        %4547 = vmatpush1.bf16.xpose.msra.mxu0 %v4490
        %4548 = vmatprep.subr.bf16.mxu0 %v4495
        %4549 = vmatpush1.bf16.xpose.msra.mxu0 %v4494
        %4550 = vmatprep.subr.bf16.mxu0 %v4499
        %4551 = vmatpush1.bf16.xpose.msra.mxu0 %v4498
        %4552 = vmatprep.subr.bf16.mxu0 %v4503
        %4553 = vmatpush1.bf16.xpose.msra.mxu0 %v4502
        %4554 = vmatprep.subr.bf16.mxu0 %v4507
        %4555 = vmatpush1.bf16.xpose.msra.mxu0 %v4506
        %4556 = vmatprep.mubr.bf16.mxu0 %v4517
        %4557 = vmatmul.mubr.bf16.gmra.mrb[0].mxu0 %v4516
        %v4558 = vpop.f32.mrb[0].mxu0
        %v4559 = vadd.f32 0.0, %v4558
        %v4560 = vpop.f32.mrb[0].mxu0
        %v4561 = vadd.f32 0.0, %v4560
        %v4562 = vpop.f32.mrb[0].mxu0
        %v4563 = vpop.f32.mrb[0].mxu0
        %4564 = vdwg.mxu0
        %4565 = vmatprep.subr.bf16.mxu0 %v4449
        %4566 = vmatpush1.bf16.xpose.msra.mxu0 %v4448
        %4567 = vmatprep.subr.bf16.mxu0 %v4453
        %4568 = vmatpush1.bf16.xpose.msra.mxu0 %v4452
        %4569 = vmatprep.subr.bf16.mxu0 %v4457
        %4570 = vmatpush1.bf16.xpose.msra.mxu0 %v4456
        %4571 = vmatprep.subr.bf16.mxu0 %v4461
        %4572 = vmatpush1.bf16.xpose.msra.mxu0 %v4460
        %4573 = vmatprep.subr.bf16.mxu0 %v4465
        %4574 = vmatpush1.bf16.xpose.msra.mxu0 %v4464
        %4575 = vmatprep.subr.bf16.mxu0 %v4469
        %4576 = vmatpush1.bf16.xpose.msra.mxu0 %v4468
        %4577 = vmatprep.subr.bf16.mxu0 %v4473
        %4578 = vmatpush1.bf16.xpose.msra.mxu0 %v4472
        %4579 = vmatprep.subr.bf16.mxu0 %v4477
        %4580 = vmatpush1.bf16.xpose.msra.mxu0 %v4476
        %4581 = vmatprep.subr.bf16.mxu0 %v4481
        %4582 = vmatpush1.bf16.xpose.msra.mxu0 %v4480
        %4583 = vmatprep.subr.bf16.mxu0 %v4485
        %4584 = vmatpush1.bf16.xpose.msra.mxu0 %v4484
        %4585 = vmatprep.subr.bf16.mxu0 %v4489
        %4586 = vmatpush1.bf16.xpose.msra.mxu0 %v4488
        %4587 = vmatprep.subr.bf16.mxu0 %v4493
        %4588 = vmatpush1.bf16.xpose.msra.mxu0 %v4492
        %4589 = vmatprep.subr.bf16.mxu0 %v4497
        %4590 = vmatpush1.bf16.xpose.msra.mxu0 %v4496
        %4591 = vmatprep.subr.bf16.mxu0 %v4501
        %4592 = vmatpush1.bf16.xpose.msra.mxu0 %v4500
        %4593 = vmatprep.subr.bf16.mxu0 %v4505
        %4594 = vmatpush1.bf16.xpose.msra.mxu0 %v4504
        %4595 = vmatprep.subr.bf16.mxu0 %v4509
        %4596 = vmatpush1.bf16.xpose.msra.mxu0 %v4508
        %4597 = vmatprep.mubr.bf16.mxu0 %v4519
        %4598 = vmatmul.mubr.bf16.gmra.mrb[0].mxu0 %v4518
        %v4599 = vpop.f32.mrb[0].mxu0
        %v4600 = vadd.f32 %v4559, %v4599
        %v4601 = vpop.f32.mrb[0].mxu0
        %v4602 = vadd.f32 %v4561, %v4601
        %v4603 = vpop.f32.mrb[0].mxu0
        %v4604 = vpop.f32.mrb[0].mxu0
        %4605 = vdwg.mxu0
        %v4606 = vadd.f32 %v3198, %v4600
        %v4607 = vadd.f32 %v3200, %v4602
        %v4608 = vld [vmem:[#allocation5 + $0x30] sm:$0xff]
        %v4609 = vld [vmem:[#allocation5 + $0x38] sm:$0xff]
        %v4610 = vld [vmem:[#allocation5 + $0x70] sm:$0xff]
        %v4611 = vld [vmem:[#allocation5 + $0x78] sm:$0xff]
        %v4612 = vld [vmem:[#allocation5 + $0xb0] sm:$0xff]
        %v4613 = vld [vmem:[#allocation5 + $0xb8] sm:$0xff]
        %v4614 = vld [vmem:[#allocation5 + $0xf0] sm:$0xff]
        %v4615 = vld [vmem:[#allocation5 + $0xf8] sm:$0xff]
        %v4616 = vld [vmem:[#allocation5 + $0x130] sm:$0xff]
        %v4617 = vld [vmem:[#allocation5 + $0x138] sm:$0xff]
        %v4618 = vld [vmem:[#allocation5 + $0x170] sm:$0xff]
        %v4619 = vld [vmem:[#allocation5 + $0x178] sm:$0xff]
        %v4620 = vld [vmem:[#allocation5 + $0x1b0] sm:$0xff]
        %v4621 = vld [vmem:[#allocation5 + $0x1b8] sm:$0xff]
        %v4622 = vld [vmem:[#allocation5 + $0x1f0] sm:$0xff]
        %v4623 = vld [vmem:[#allocation5 + $0x1f8] sm:$0xff]
        %v4624 = vld [vmem:[#allocation5 + $0x230] sm:$0xff]
        %v4625 = vld [vmem:[#allocation5 + $0x238] sm:$0xff]
        %v4626 = vld [vmem:[#allocation5 + $0x270] sm:$0xff]
        %v4627 = vld [vmem:[#allocation5 + $0x278] sm:$0xff]
        %v4628 = vld [vmem:[#allocation5 + $0x2b0] sm:$0xff]
        %v4629 = vld [vmem:[#allocation5 + $0x2b8] sm:$0xff]
        %v4630 = vld [vmem:[#allocation5 + $0x2f0] sm:$0xff]
        %v4631 = vld [vmem:[#allocation5 + $0x2f8] sm:$0xff]
        %v4632 = vld [vmem:[#allocation5 + $0x330] sm:$0xff]
        %v4633 = vld [vmem:[#allocation5 + $0x338] sm:$0xff]
        %v4634 = vld [vmem:[#allocation5 + $0x370] sm:$0xff]
        %v4635 = vld [vmem:[#allocation5 + $0x378] sm:$0xff]
        %v4636 = vld [vmem:[#allocation5 + $0x3b0] sm:$0xff]
        %v4637 = vld [vmem:[#allocation5 + $0x3b8] sm:$0xff]
        %v4638 = vld [vmem:[#allocation5 + $0x3f0] sm:$0xff]
        %v4639 = vld [vmem:[#allocation5 + $0x3f8] sm:$0xff]
        %v4640 = vld [vmem:[%s2 + $0xc] sm:$0xf]
        %v4642 = vlaneseq
        %v4643 = vshrl.u32 %v4642, 7
        %v4644 = vsub.s32 0, %v4643
        %v4645 = vrot.slane %v4640, %v4644
        %v4646 = vlaneseq
        %v4647 = vshrl.u32 %v4646, 7
        %v4648 = vsub.s32 1, %v4647
        %v4649 = vrot.slane %v4640, %v4648
        %v4650 = vlaneseq
        %v4651 = vshrl.u32 %v4650, 7
        %v4652 = vsub.s32 2, %v4651
        %v4653 = vrot.slane %v4640, %v4652
        %v4654 = vlaneseq
        %v4655 = vshrl.u32 %v4654, 7
        %v4656 = vsub.s32 3, %v4655
        %v4657 = vrot.slane %v4640, %v4656
        %v4694 = vunpack.c.l.b16 %v4608
        %v4695 = vunpack.c.h.b16 %v4608
        %v4696 = vunpack.c.l.b16 %v4609
        %v4697 = vunpack.c.h.b16 %v4609
        %v4698 = vunpack.c.l.b16 %v4610
        %v4699 = vunpack.c.h.b16 %v4610
        %v4700 = vunpack.c.l.b16 %v4611
        %v4701 = vunpack.c.h.b16 %v4611
        %v4702 = vunpack.c.l.b16 %v4612
        %v4703 = vunpack.c.h.b16 %v4612
        %v4704 = vunpack.c.l.b16 %v4613
        %v4705 = vunpack.c.h.b16 %v4613
        %v4706 = vunpack.c.l.b16 %v4614
        %v4707 = vunpack.c.h.b16 %v4614
        %v4708 = vunpack.c.l.b16 %v4615
        %v4709 = vunpack.c.h.b16 %v4615
        %v4710 = vunpack.c.l.b16 %v4616
        %v4711 = vunpack.c.h.b16 %v4616
        %v4712 = vunpack.c.l.b16 %v4617
        %v4713 = vunpack.c.h.b16 %v4617
        %v4714 = vunpack.c.l.b16 %v4618
        %v4715 = vunpack.c.h.b16 %v4618
        %v4716 = vunpack.c.l.b16 %v4619
        %v4717 = vunpack.c.h.b16 %v4619
        %v4718 = vunpack.c.l.b16 %v4620
        %v4719 = vunpack.c.h.b16 %v4620
        %v4720 = vunpack.c.l.b16 %v4621
        %v4721 = vunpack.c.h.b16 %v4621
        %v4722 = vunpack.c.l.b16 %v4622
        %v4723 = vunpack.c.h.b16 %v4622
        %v4724 = vunpack.c.l.b16 %v4623
        %v4725 = vunpack.c.h.b16 %v4623
        %v4726 = vunpack.c.l.b16 %v4624
        %v4727 = vunpack.c.h.b16 %v4624
        %v4728 = vunpack.c.l.b16 %v4625
        %v4729 = vunpack.c.h.b16 %v4625
        %v4730 = vunpack.c.l.b16 %v4626
        %v4731 = vunpack.c.h.b16 %v4626
        %v4732 = vunpack.c.l.b16 %v4627
        %v4733 = vunpack.c.h.b16 %v4627
        %v4734 = vunpack.c.l.b16 %v4628
        %v4735 = vunpack.c.h.b16 %v4628
        %v4736 = vunpack.c.l.b16 %v4629
        %v4737 = vunpack.c.h.b16 %v4629
        %v4738 = vunpack.c.l.b16 %v4630
        %v4739 = vunpack.c.h.b16 %v4630
        %v4740 = vunpack.c.l.b16 %v4631
        %v4741 = vunpack.c.h.b16 %v4631
        %v4742 = vunpack.c.l.b16 %v4632
        %v4743 = vunpack.c.h.b16 %v4632
        %v4744 = vunpack.c.l.b16 %v4633
        %v4745 = vunpack.c.h.b16 %v4633
        %v4746 = vunpack.c.l.b16 %v4634
        %v4747 = vunpack.c.h.b16 %v4634
        %v4748 = vunpack.c.l.b16 %v4635
        %v4749 = vunpack.c.h.b16 %v4635
        %v4750 = vunpack.c.l.b16 %v4636
        %v4751 = vunpack.c.h.b16 %v4636
        %v4752 = vunpack.c.l.b16 %v4637
        %v4753 = vunpack.c.h.b16 %v4637
        %v4754 = vunpack.c.l.b16 %v4638
        %v4755 = vunpack.c.h.b16 %v4638
        %v4756 = vunpack.c.l.b16 %v4639
        %v4757 = vunpack.c.h.b16 %v4639
        %v4758 = vpack.c.b16 %v4698, %v4694
        %v4759 = vpack.c.b16 %v4699, %v4695
        %v4760 = vpack.c.b16 %v4700, %v4696
        %v4761 = vpack.c.b16 %v4701, %v4697
        %v4762 = vpack.c.b16 %v4706, %v4702
        %v4763 = vpack.c.b16 %v4707, %v4703
        %v4764 = vpack.c.b16 %v4708, %v4704
        %v4765 = vpack.c.b16 %v4709, %v4705
        %v4766 = vpack.c.b16 %v4714, %v4710
        %v4767 = vpack.c.b16 %v4715, %v4711
        %v4768 = vpack.c.b16 %v4716, %v4712
        %v4769 = vpack.c.b16 %v4717, %v4713
        %v4770 = vpack.c.b16 %v4722, %v4718
        %v4771 = vpack.c.b16 %v4723, %v4719
        %v4772 = vpack.c.b16 %v4724, %v4720
        %v4773 = vpack.c.b16 %v4725, %v4721
        %v4774 = vpack.c.b16 %v4730, %v4726
        %v4775 = vpack.c.b16 %v4731, %v4727
        %v4776 = vpack.c.b16 %v4732, %v4728
        %v4777 = vpack.c.b16 %v4733, %v4729
        %v4778 = vpack.c.b16 %v4738, %v4734
        %v4779 = vpack.c.b16 %v4739, %v4735
        %v4780 = vpack.c.b16 %v4740, %v4736
        %v4781 = vpack.c.b16 %v4741, %v4737
        %v4782 = vpack.c.b16 %v4746, %v4742
        %v4783 = vpack.c.b16 %v4747, %v4743
        %v4784 = vpack.c.b16 %v4748, %v4744
        %v4785 = vpack.c.b16 %v4749, %v4745
        %v4786 = vpack.c.b16 %v4754, %v4750
        %v4787 = vpack.c.b16 %v4755, %v4751
        %v4788 = vpack.c.b16 %v4756, %v4752
        %v4789 = vpack.c.b16 %v4757, %v4753
        %4822 = vmatprep.subr.bf16.mxu0 %v4759
        %4823 = vmatpush1.bf16.msra.mxu0 %v4758
        %4824 = vmatprep.subr.bf16.mxu0 %v4763
        %4825 = vmatpush1.bf16.msra.mxu0 %v4762
        %4826 = vmatprep.subr.bf16.mxu0 %v4767
        %4827 = vmatpush1.bf16.msra.mxu0 %v4766
        %4828 = vmatprep.subr.bf16.mxu0 %v4771
        %4829 = vmatpush1.bf16.msra.mxu0 %v4770
        %4830 = vmatprep.subr.bf16.mxu0 %v4775
        %4831 = vmatpush1.bf16.msra.mxu0 %v4774
        %4832 = vmatprep.subr.bf16.mxu0 %v4779
        %4833 = vmatpush1.bf16.msra.mxu0 %v4778
        %4834 = vmatprep.subr.bf16.mxu0 %v4783
        %4835 = vmatpush1.bf16.msra.mxu0 %v4782
        %4836 = vmatprep.subr.bf16.mxu0 %v4787
        %4837 = vmatpush1.bf16.msra.mxu0 %v4786
        %4838 = vmatprep.subr.bf16.mxu0 0
        %4839 = vmatpush1.bf16.msra.mxu0 0
        %4840 = vmatprep.subr.bf16.mxu0 0
        %4841 = vmatpush1.bf16.msra.mxu0 0
        %4842 = vmatprep.subr.bf16.mxu0 0
        %4843 = vmatpush1.bf16.msra.mxu0 0
        %4844 = vmatprep.subr.bf16.mxu0 0
        %4845 = vmatpush1.bf16.msra.mxu0 0
        %4846 = vmatprep.subr.bf16.mxu0 0
        %4847 = vmatpush1.bf16.msra.mxu0 0
        %4848 = vmatprep.subr.bf16.mxu0 0
        %4849 = vmatpush1.bf16.msra.mxu0 0
        %4850 = vmatprep.subr.bf16.mxu0 0
        %4851 = vmatpush1.bf16.msra.mxu0 0
        %4852 = vmatprep.subr.bf16.mxu0 0
        %4853 = vmatpush1.bf16.msra.mxu0 0
        %4854 = vmatprep.mubr.bf16.mxu0 0
        %4855 = vmatmul.mubr.bf16.gmra.mrb[0].mxu0 %v422
        %v4856 = vpop.f32.mrb[0].mxu0
        %v4857 = vadd.f32 %v4645, %v4856
        %v4858 = vpop.f32.mrb[0].mxu0
        %v4859 = vadd.f32 %v4649, %v4858
        %v4860 = vpop.f32.mrb[0].mxu0
        %v4861 = vadd.f32 %v4645, %v4860
        %v4862 = vpop.f32.mrb[0].mxu0
        %v4863 = vadd.f32 %v4649, %v4862
        %4864 = vmatprep.mubr.bf16.mxu0 0
        %4865 = vmatmul.mubr.bf16.gmra.mrb[0].mxu0 %v423
        %v4866 = vpop.f32.mrb[0].mxu0
        %v4867 = vadd.f32 %v4645, %v4866
        %v4868 = vpop.f32.mrb[0].mxu0
        %v4869 = vadd.f32 %v4649, %v4868
        %v4870 = vpop.f32.mrb[0].mxu0
        %v4871 = vadd.f32 %v4645, %v4870
        %v4872 = vpop.f32.mrb[0].mxu0
        %v4873 = vadd.f32 %v4649, %v4872
        %4874 = vmatprep.mubr.bf16.mxu0 0
        %4875 = vmatmul.mubr.bf16.gmra.mrb[0].mxu0 %v424
        %v4876 = vpop.f32.mrb[0].mxu0
        %v4877 = vadd.f32 %v4645, %v4876
        %v4878 = vpop.f32.mrb[0].mxu0
        %v4879 = vadd.f32 %v4649, %v4878
        %v4880 = vpop.f32.mrb[0].mxu0
        %v4881 = vadd.f32 %v4645, %v4880
        %v4882 = vpop.f32.mrb[0].mxu0
        %v4883 = vadd.f32 %v4649, %v4882
        %4884 = vmatprep.mubr.bf16.mxu0 0
        %4885 = vmatmul.mubr.bf16.gmra.mrb[0].mxu0 %v425
        %v4886 = vpop.f32.mrb[0].mxu0
        %v4887 = vadd.f32 %v4645, %v4886
        %v4888 = vpop.f32.mrb[0].mxu0
        %v4889 = vadd.f32 %v4649, %v4888
        %v4890 = vpop.f32.mrb[0].mxu0
        %v4891 = vadd.f32 %v4645, %v4890
        %v4892 = vpop.f32.mrb[0].mxu0
        %v4893 = vadd.f32 %v4649, %v4892
        %4894 = vmatprep.mubr.bf16.mxu0 0
        %4895 = vmatmul.mubr.bf16.gmra.mrb[0].mxu0 %v426
        %v4896 = vpop.f32.mrb[0].mxu0
        %v4897 = vadd.f32 %v4645, %v4896
        %v4898 = vpop.f32.mrb[0].mxu0
        %v4899 = vadd.f32 %v4649, %v4898
        %v4900 = vpop.f32.mrb[0].mxu0
        %v4901 = vadd.f32 %v4645, %v4900
        %v4902 = vpop.f32.mrb[0].mxu0
        %v4903 = vadd.f32 %v4649, %v4902
        %4904 = vmatprep.mubr.bf16.mxu0 0
        %4905 = vmatmul.mubr.bf16.gmra.mrb[0].mxu0 %v427
        %v4906 = vpop.f32.mrb[0].mxu0
        %v4907 = vadd.f32 %v4645, %v4906
        %v4908 = vpop.f32.mrb[0].mxu0
        %v4909 = vadd.f32 %v4649, %v4908
        %v4910 = vpop.f32.mrb[0].mxu0
        %v4911 = vadd.f32 %v4645, %v4910
        %v4912 = vpop.f32.mrb[0].mxu0
        %v4913 = vadd.f32 %v4649, %v4912
        %4914 = vmatprep.mubr.bf16.mxu0 0
        %4915 = vmatmul.mubr.bf16.gmra.mrb[0].mxu0 %v428
        %v4916 = vpop.f32.mrb[0].mxu0
        %v4917 = vadd.f32 %v4645, %v4916
        %v4918 = vpop.f32.mrb[0].mxu0
        %v4919 = vadd.f32 %v4649, %v4918
        %v4920 = vpop.f32.mrb[0].mxu0
        %v4921 = vadd.f32 %v4645, %v4920
        %v4922 = vpop.f32.mrb[0].mxu0
        %v4923 = vadd.f32 %v4649, %v4922
        %4924 = vmatprep.mubr.bf16.mxu0 0
        %4925 = vmatmul.mubr.bf16.gmra.mrb[0].mxu0 %v429
        %v4926 = vpop.f32.mrb[0].mxu0
        %v4927 = vadd.f32 %v4645, %v4926
        %v4928 = vpop.f32.mrb[0].mxu0
        %v4929 = vadd.f32 %v4649, %v4928
        %v4930 = vpop.f32.mrb[0].mxu0
        %v4931 = vadd.f32 %v4645, %v4930
        %v4932 = vpop.f32.mrb[0].mxu0
        %v4933 = vadd.f32 %v4649, %v4932
        %4934 = vmatprep.mubr.bf16.mxu0 0
        %4935 = vmatmul.mubr.bf16.gmra.mrb[0].mxu0 %v430
        %v4936 = vpop.f32.mrb[0].mxu0
        %v4937 = vadd.f32 %v4645, %v4936
        %v4938 = vpop.f32.mrb[0].mxu0
        %v4939 = vadd.f32 %v4649, %v4938
        %v4940 = vpop.f32.mrb[0].mxu0
        %v4941 = vadd.f32 %v4645, %v4940
        %v4942 = vpop.f32.mrb[0].mxu0
        %v4943 = vadd.f32 %v4649, %v4942
        %4944 = vmatprep.mubr.bf16.mxu0 0
        %4945 = vmatmul.mubr.bf16.gmra.mrb[0].mxu0 %v431
        %v4946 = vpop.f32.mrb[0].mxu0
        %v4947 = vadd.f32 %v4645, %v4946
        %v4948 = vpop.f32.mrb[0].mxu0
        %v4949 = vadd.f32 %v4649, %v4948
        %v4950 = vpop.f32.mrb[0].mxu0
        %v4951 = vadd.f32 %v4645, %v4950
        %v4952 = vpop.f32.mrb[0].mxu0
        %v4953 = vadd.f32 %v4649, %v4952
        %4954 = vmatprep.mubr.bf16.mxu0 0
        %4955 = vmatmul.mubr.bf16.gmra.mrb[0].mxu0 %v432
        %v4956 = vpop.f32.mrb[0].mxu0
        %v4957 = vadd.f32 %v4645, %v4956
        %v4958 = vpop.f32.mrb[0].mxu0
        %v4959 = vadd.f32 %v4649, %v4958
        %v4960 = vpop.f32.mrb[0].mxu0
        %v4961 = vadd.f32 %v4645, %v4960
        %v4962 = vpop.f32.mrb[0].mxu0
        %v4963 = vadd.f32 %v4649, %v4962
        %4964 = vmatprep.mubr.bf16.mxu0 0
        %4965 = vmatmul.mubr.bf16.gmra.mrb[0].mxu0 %v433
        %v4966 = vpop.f32.mrb[0].mxu0
        %v4967 = vadd.f32 %v4645, %v4966
        %v4968 = vpop.f32.mrb[0].mxu0
        %v4969 = vadd.f32 %v4649, %v4968
        %v4970 = vpop.f32.mrb[0].mxu0
        %v4971 = vadd.f32 %v4645, %v4970
        %v4972 = vpop.f32.mrb[0].mxu0
        %v4973 = vadd.f32 %v4649, %v4972
        %4974 = vmatprep.mubr.bf16.mxu0 0
        %4975 = vmatmul.mubr.bf16.gmra.mrb[0].mxu0 %v434
        %v4976 = vpop.f32.mrb[0].mxu0
        %v4977 = vadd.f32 %v4645, %v4976
        %v4978 = vpop.f32.mrb[0].mxu0
        %v4979 = vadd.f32 %v4649, %v4978
        %v4980 = vpop.f32.mrb[0].mxu0
        %v4981 = vadd.f32 %v4645, %v4980
        %v4982 = vpop.f32.mrb[0].mxu0
        %v4983 = vadd.f32 %v4649, %v4982
        %4984 = vmatprep.mubr.bf16.mxu0 0
        %4985 = vmatmul.mubr.bf16.gmra.mrb[0].mxu0 %v435
        %v4986 = vpop.f32.mrb[0].mxu0
        %v4987 = vadd.f32 %v4645, %v4986
        %v4988 = vpop.f32.mrb[0].mxu0
        %v4989 = vadd.f32 %v4649, %v4988
        %v4990 = vpop.f32.mrb[0].mxu0
        %v4991 = vadd.f32 %v4645, %v4990
        %v4992 = vpop.f32.mrb[0].mxu0
        %v4993 = vadd.f32 %v4649, %v4992
        %4994 = vmatprep.mubr.bf16.mxu0 0
        %4995 = vmatmul.mubr.bf16.gmra.mrb[0].mxu0 %v436
        %v4996 = vpop.f32.mrb[0].mxu0
        %v4997 = vadd.f32 %v4645, %v4996
        %v4998 = vpop.f32.mrb[0].mxu0
        %v4999 = vadd.f32 %v4649, %v4998
        %v5000 = vpop.f32.mrb[0].mxu0
        %v5001 = vadd.f32 %v4645, %v5000
        %v5002 = vpop.f32.mrb[0].mxu0
        %v5003 = vadd.f32 %v4649, %v5002
        %5004 = vmatprep.mubr.bf16.mxu0 0
        %5005 = vmatmul.mubr.bf16.gmra.mrb[0].mxu0 %v437
        %v5006 = vpop.f32.mrb[0].mxu0
        %v5007 = vadd.f32 %v4645, %v5006
        %v5008 = vpop.f32.mrb[0].mxu0
        %v5009 = vadd.f32 %v4649, %v5008
        %v5010 = vpop.f32.mrb[0].mxu0
        %v5011 = vadd.f32 %v4645, %v5010
        %v5012 = vpop.f32.mrb[0].mxu0
        %v5013 = vadd.f32 %v4649, %v5012
        %5014 = vdwg.mxu0
        %5015 = vmatprep.subr.bf16.mxu0 %v4761
        %5016 = vmatpush1.bf16.msra.mxu0 %v4760
        %5017 = vmatprep.subr.bf16.mxu0 %v4765
        %5018 = vmatpush1.bf16.msra.mxu0 %v4764
        %5019 = vmatprep.subr.bf16.mxu0 %v4769
        %5020 = vmatpush1.bf16.msra.mxu0 %v4768
        %5021 = vmatprep.subr.bf16.mxu0 %v4773
        %5022 = vmatpush1.bf16.msra.mxu0 %v4772
        %5023 = vmatprep.subr.bf16.mxu0 %v4777
        %5024 = vmatpush1.bf16.msra.mxu0 %v4776
        %5025 = vmatprep.subr.bf16.mxu0 %v4781
        %5026 = vmatpush1.bf16.msra.mxu0 %v4780
        %5027 = vmatprep.subr.bf16.mxu0 %v4785
        %5028 = vmatpush1.bf16.msra.mxu0 %v4784
        %5029 = vmatprep.subr.bf16.mxu0 %v4789
        %5030 = vmatpush1.bf16.msra.mxu0 %v4788
        %5031 = vmatprep.subr.bf16.mxu0 0
        %5032 = vmatpush1.bf16.msra.mxu0 0
        %5033 = vmatprep.subr.bf16.mxu0 0
        %5034 = vmatpush1.bf16.msra.mxu0 0
        %5035 = vmatprep.subr.bf16.mxu0 0
        %5036 = vmatpush1.bf16.msra.mxu0 0
        %5037 = vmatprep.subr.bf16.mxu0 0
        %5038 = vmatpush1.bf16.msra.mxu0 0
        %5039 = vmatprep.subr.bf16.mxu0 0
        %5040 = vmatpush1.bf16.msra.mxu0 0
        %5041 = vmatprep.subr.bf16.mxu0 0
        %5042 = vmatpush1.bf16.msra.mxu0 0
        %5043 = vmatprep.subr.bf16.mxu0 0
        %5044 = vmatpush1.bf16.msra.mxu0 0
        %5045 = vmatprep.subr.bf16.mxu0 0
        %5046 = vmatpush1.bf16.msra.mxu0 0
        %5047 = vmatprep.mubr.bf16.mxu0 0
        %5048 = vmatmul.mubr.bf16.gmra.mrb[0].mxu0 %v422
        %v5049 = vpop.f32.mrb[0].mxu0
        %v5050 = vadd.f32 %v4653, %v5049
        %v5051 = vpop.f32.mrb[0].mxu0
        %v5052 = vadd.f32 %v4657, %v5051
        %v5053 = vpop.f32.mrb[0].mxu0
        %v5054 = vadd.f32 %v4653, %v5053
        %v5055 = vpop.f32.mrb[0].mxu0
        %v5056 = vadd.f32 %v4657, %v5055
        %5057 = vmatprep.mubr.bf16.mxu0 0
        %5058 = vmatmul.mubr.bf16.gmra.mrb[0].mxu0 %v423
        %v5059 = vpop.f32.mrb[0].mxu0
        %v5060 = vadd.f32 %v4653, %v5059
        %v5061 = vpop.f32.mrb[0].mxu0
        %v5062 = vadd.f32 %v4657, %v5061
        %v5063 = vpop.f32.mrb[0].mxu0
        %v5064 = vadd.f32 %v4653, %v5063
        %v5065 = vpop.f32.mrb[0].mxu0
        %v5066 = vadd.f32 %v4657, %v5065
        %5067 = vmatprep.mubr.bf16.mxu0 0
        %5068 = vmatmul.mubr.bf16.gmra.mrb[0].mxu0 %v424
        %v5069 = vpop.f32.mrb[0].mxu0
        %v5070 = vadd.f32 %v4653, %v5069
        %v5071 = vpop.f32.mrb[0].mxu0
        %v5072 = vadd.f32 %v4657, %v5071
        %v5073 = vpop.f32.mrb[0].mxu0
        %v5074 = vadd.f32 %v4653, %v5073
        %v5075 = vpop.f32.mrb[0].mxu0
        %v5076 = vadd.f32 %v4657, %v5075
        %5077 = vmatprep.mubr.bf16.mxu0 0
        %5078 = vmatmul.mubr.bf16.gmra.mrb[0].mxu0 %v425
        %v5079 = vpop.f32.mrb[0].mxu0
        %v5080 = vadd.f32 %v4653, %v5079
        %v5081 = vpop.f32.mrb[0].mxu0
        %v5082 = vadd.f32 %v4657, %v5081
        %v5083 = vpop.f32.mrb[0].mxu0
        %v5084 = vadd.f32 %v4653, %v5083
        %v5085 = vpop.f32.mrb[0].mxu0
        %v5086 = vadd.f32 %v4657, %v5085
        %5087 = vmatprep.mubr.bf16.mxu0 0
        %5088 = vmatmul.mubr.bf16.gmra.mrb[0].mxu0 %v426
        %v5089 = vpop.f32.mrb[0].mxu0
        %v5090 = vadd.f32 %v4653, %v5089
        %v5091 = vpop.f32.mrb[0].mxu0
        %v5092 = vadd.f32 %v4657, %v5091
        %v5093 = vpop.f32.mrb[0].mxu0
        %v5094 = vadd.f32 %v4653, %v5093
        %v5095 = vpop.f32.mrb[0].mxu0
        %v5096 = vadd.f32 %v4657, %v5095
        %5097 = vmatprep.mubr.bf16.mxu0 0
        %5098 = vmatmul.mubr.bf16.gmra.mrb[0].mxu0 %v427
        %v5099 = vpop.f32.mrb[0].mxu0
        %v5100 = vadd.f32 %v4653, %v5099
        %v5101 = vpop.f32.mrb[0].mxu0
        %v5102 = vadd.f32 %v4657, %v5101
        %v5103 = vpop.f32.mrb[0].mxu0
        %v5104 = vadd.f32 %v4653, %v5103
        %v5105 = vpop.f32.mrb[0].mxu0
        %v5106 = vadd.f32 %v4657, %v5105
        %5107 = vmatprep.mubr.bf16.mxu0 0
        %5108 = vmatmul.mubr.bf16.gmra.mrb[0].mxu0 %v428
        %v5109 = vpop.f32.mrb[0].mxu0
        %v5110 = vadd.f32 %v4653, %v5109
        %v5111 = vpop.f32.mrb[0].mxu0
        %v5112 = vadd.f32 %v4657, %v5111
        %v5113 = vpop.f32.mrb[0].mxu0
        %v5114 = vadd.f32 %v4653, %v5113
        %v5115 = vpop.f32.mrb[0].mxu0
        %v5116 = vadd.f32 %v4657, %v5115
        %5117 = vmatprep.mubr.bf16.mxu0 0
        %5118 = vmatmul.mubr.bf16.gmra.mrb[0].mxu0 %v429
        %v5119 = vpop.f32.mrb[0].mxu0
        %v5120 = vadd.f32 %v4653, %v5119
        %v5121 = vpop.f32.mrb[0].mxu0
        %v5122 = vadd.f32 %v4657, %v5121
        %v5123 = vpop.f32.mrb[0].mxu0
        %v5124 = vadd.f32 %v4653, %v5123
        %v5125 = vpop.f32.mrb[0].mxu0
        %v5126 = vadd.f32 %v4657, %v5125
        %5127 = vmatprep.mubr.bf16.mxu0 0
        %5128 = vmatmul.mubr.bf16.gmra.mrb[0].mxu0 %v430
        %v5129 = vpop.f32.mrb[0].mxu0
        %v5130 = vadd.f32 %v4653, %v5129
        %v5131 = vpop.f32.mrb[0].mxu0
        %v5132 = vadd.f32 %v4657, %v5131
        %v5133 = vpop.f32.mrb[0].mxu0
        %v5134 = vadd.f32 %v4653, %v5133
        %v5135 = vpop.f32.mrb[0].mxu0
        %v5136 = vadd.f32 %v4657, %v5135
        %5137 = vmatprep.mubr.bf16.mxu0 0
        %5138 = vmatmul.mubr.bf16.gmra.mrb[0].mxu0 %v431
        %v5139 = vpop.f32.mrb[0].mxu0
        %v5140 = vadd.f32 %v4653, %v5139
        %v5141 = vpop.f32.mrb[0].mxu0
        %v5142 = vadd.f32 %v4657, %v5141
        %v5143 = vpop.f32.mrb[0].mxu0
        %v5144 = vadd.f32 %v4653, %v5143
        %v5145 = vpop.f32.mrb[0].mxu0
        %v5146 = vadd.f32 %v4657, %v5145
        %5147 = vmatprep.mubr.bf16.mxu0 0
        %5148 = vmatmul.mubr.bf16.gmra.mrb[0].mxu0 %v432
        %v5149 = vpop.f32.mrb[0].mxu0
        %v5150 = vadd.f32 %v4653, %v5149
        %v5151 = vpop.f32.mrb[0].mxu0
        %v5152 = vadd.f32 %v4657, %v5151
        %v5153 = vpop.f32.mrb[0].mxu0
        %v5154 = vadd.f32 %v4653, %v5153
        %v5155 = vpop.f32.mrb[0].mxu0
        %v5156 = vadd.f32 %v4657, %v5155
        %5157 = vmatprep.mubr.bf16.mxu0 0
        %5158 = vmatmul.mubr.bf16.gmra.mrb[0].mxu0 %v433
        %v5159 = vpop.f32.mrb[0].mxu0
        %v5160 = vadd.f32 %v4653, %v5159
        %v5161 = vpop.f32.mrb[0].mxu0
        %v5162 = vadd.f32 %v4657, %v5161
        %v5163 = vpop.f32.mrb[0].mxu0
        %v5164 = vadd.f32 %v4653, %v5163
        %v5165 = vpop.f32.mrb[0].mxu0
        %v5166 = vadd.f32 %v4657, %v5165
        %5167 = vmatprep.mubr.bf16.mxu0 0
        %5168 = vmatmul.mubr.bf16.gmra.mrb[0].mxu0 %v434
        %v5169 = vpop.f32.mrb[0].mxu0
        %v5170 = vadd.f32 %v4653, %v5169
        %v5171 = vpop.f32.mrb[0].mxu0
        %v5172 = vadd.f32 %v4657, %v5171
        %v5173 = vpop.f32.mrb[0].mxu0
        %v5174 = vadd.f32 %v4653, %v5173
        %v5175 = vpop.f32.mrb[0].mxu0
        %v5176 = vadd.f32 %v4657, %v5175
        %5177 = vmatprep.mubr.bf16.mxu0 0
        %5178 = vmatmul.mubr.bf16.gmra.mrb[0].mxu0 %v435
        %v5179 = vpop.f32.mrb[0].mxu0
        %v5180 = vadd.f32 %v4653, %v5179
        %v5181 = vpop.f32.mrb[0].mxu0
        %v5182 = vadd.f32 %v4657, %v5181
        %v5183 = vpop.f32.mrb[0].mxu0
        %v5184 = vadd.f32 %v4653, %v5183
        %v5185 = vpop.f32.mrb[0].mxu0
        %v5186 = vadd.f32 %v4657, %v5185
        %5187 = vmatprep.mubr.bf16.mxu0 0
        %5188 = vmatmul.mubr.bf16.gmra.mrb[0].mxu0 %v436
        %v5189 = vpop.f32.mrb[0].mxu0
        %v5190 = vadd.f32 %v4653, %v5189
        %v5191 = vpop.f32.mrb[0].mxu0
        %v5192 = vadd.f32 %v4657, %v5191
        %v5193 = vpop.f32.mrb[0].mxu0
        %v5194 = vadd.f32 %v4653, %v5193
        %v5195 = vpop.f32.mrb[0].mxu0
        %v5196 = vadd.f32 %v4657, %v5195
        %5197 = vmatprep.mubr.bf16.mxu0 0
        %5198 = vmatmul.mubr.bf16.gmra.mrb[0].mxu0 %v437
        %v5199 = vpop.f32.mrb[0].mxu0
        %v5200 = vadd.f32 %v4653, %v5199
        %v5201 = vpop.f32.mrb[0].mxu0
        %v5202 = vadd.f32 %v4657, %v5201
        %v5203 = vpop.f32.mrb[0].mxu0
        %v5204 = vadd.f32 %v4653, %v5203
        %v5205 = vpop.f32.mrb[0].mxu0
        %v5206 = vadd.f32 %v4657, %v5205
        %5207 = vdwg.mxu0
        %v5208 = vmul.f32 %v4857, 0.5
        %v5209 = vmul.f32 %v4859, 0.5
        %v5210 = vmul.f32 %v5050, 0.5
        %v5211 = vmul.f32 %v5052, 0.5
        %v5212 = vmul.f32 %v4861, 0.5
        %v5213 = vmul.f32 %v4863, 0.5
        %v5214 = vmul.f32 %v5054, 0.5
        %v5215 = vmul.f32 %v5056, 0.5
        %v5216 = vmul.f32 %v4867, 0.5
        %v5217 = vmul.f32 %v4869, 0.5
        %v5218 = vmul.f32 %v5060, 0.5
        %v5219 = vmul.f32 %v5062, 0.5
        %v5220 = vmul.f32 %v4871, 0.5
        %v5221 = vmul.f32 %v4873, 0.5
        %v5222 = vmul.f32 %v5064, 0.5
        %v5223 = vmul.f32 %v5066, 0.5
        %v5224 = vmul.f32 %v4877, 0.5
        %v5225 = vmul.f32 %v4879, 0.5
        %v5226 = vmul.f32 %v5070, 0.5
        %v5227 = vmul.f32 %v5072, 0.5
        %v5228 = vmul.f32 %v4881, 0.5
        %v5229 = vmul.f32 %v4883, 0.5
        %v5230 = vmul.f32 %v5074, 0.5
        %v5231 = vmul.f32 %v5076, 0.5
        %v5232 = vmul.f32 %v4887, 0.5
        %v5233 = vmul.f32 %v4889, 0.5
        %v5234 = vmul.f32 %v5080, 0.5
        %v5235 = vmul.f32 %v5082, 0.5
        %v5236 = vmul.f32 %v4891, 0.5
        %v5237 = vmul.f32 %v4893, 0.5
        %v5238 = vmul.f32 %v5084, 0.5
        %v5239 = vmul.f32 %v5086, 0.5
        %v5240 = vmul.f32 %v4897, 0.5
        %v5241 = vmul.f32 %v4899, 0.5
        %v5242 = vmul.f32 %v5090, 0.5
        %v5243 = vmul.f32 %v5092, 0.5
        %v5244 = vmul.f32 %v4901, 0.5
        %v5245 = vmul.f32 %v4903, 0.5
        %v5246 = vmul.f32 %v5094, 0.5
        %v5247 = vmul.f32 %v5096, 0.5
        %v5248 = vmul.f32 %v4907, 0.5
        %v5249 = vmul.f32 %v4909, 0.5
        %v5250 = vmul.f32 %v5100, 0.5
        %v5251 = vmul.f32 %v5102, 0.5
        %v5252 = vmul.f32 %v4911, 0.5
        %v5253 = vmul.f32 %v4913, 0.5
        %v5254 = vmul.f32 %v5104, 0.5
        %v5255 = vmul.f32 %v5106, 0.5
        %v5256 = vmul.f32 %v4917, 0.5
        %v5257 = vmul.f32 %v4919, 0.5
        %v5258 = vmul.f32 %v5110, 0.5
        %v5259 = vmul.f32 %v5112, 0.5
        %v5260 = vmul.f32 %v4921, 0.5
        %v5261 = vmul.f32 %v4923, 0.5
        %v5262 = vmul.f32 %v5114, 0.5
        %v5263 = vmul.f32 %v5116, 0.5
        %v5264 = vmul.f32 %v4927, 0.5
        %v5265 = vmul.f32 %v4929, 0.5
        %v5266 = vmul.f32 %v5120, 0.5
        %v5267 = vmul.f32 %v5122, 0.5
        %v5268 = vmul.f32 %v4931, 0.5
        %v5269 = vmul.f32 %v4933, 0.5
        %v5270 = vmul.f32 %v5124, 0.5
        %v5271 = vmul.f32 %v5126, 0.5
        %v5272 = vmul.f32 %v4937, 0.5
        %v5273 = vmul.f32 %v4939, 0.5
        %v5274 = vmul.f32 %v5130, 0.5
        %v5275 = vmul.f32 %v5132, 0.5
        %v5276 = vmul.f32 %v4941, 0.5
        %v5277 = vmul.f32 %v4943, 0.5
        %v5278 = vmul.f32 %v5134, 0.5
        %v5279 = vmul.f32 %v5136, 0.5
        %v5280 = vmul.f32 %v4947, 0.5
        %v5281 = vmul.f32 %v4949, 0.5
        %v5282 = vmul.f32 %v5140, 0.5
        %v5283 = vmul.f32 %v5142, 0.5
        %v5284 = vmul.f32 %v4951, 0.5
        %v5285 = vmul.f32 %v4953, 0.5
        %v5286 = vmul.f32 %v5144, 0.5
        %v5287 = vmul.f32 %v5146, 0.5
        %v5288 = vmul.f32 %v4957, 0.5
        %v5289 = vmul.f32 %v4959, 0.5
        %v5290 = vmul.f32 %v5150, 0.5
        %v5291 = vmul.f32 %v5152, 0.5
        %v5292 = vmul.f32 %v4961, 0.5
        %v5293 = vmul.f32 %v4963, 0.5
        %v5294 = vmul.f32 %v5154, 0.5
        %v5295 = vmul.f32 %v5156, 0.5
        %v5296 = vmul.f32 %v4967, 0.5
        %v5297 = vmul.f32 %v4969, 0.5
        %v5298 = vmul.f32 %v5160, 0.5
        %v5299 = vmul.f32 %v5162, 0.5
        %v5300 = vmul.f32 %v4971, 0.5
        %v5301 = vmul.f32 %v4973, 0.5
        %v5302 = vmul.f32 %v5164, 0.5
        %v5303 = vmul.f32 %v5166, 0.5
        %v5304 = vmul.f32 %v4977, 0.5
        %v5305 = vmul.f32 %v4979, 0.5
        %v5306 = vmul.f32 %v5170, 0.5
        %v5307 = vmul.f32 %v5172, 0.5
        %v5308 = vmul.f32 %v4981, 0.5
        %v5309 = vmul.f32 %v4983, 0.5
        %v5310 = vmul.f32 %v5174, 0.5
        %v5311 = vmul.f32 %v5176, 0.5
        %v5312 = vmul.f32 %v4987, 0.5
        %v5313 = vmul.f32 %v4989, 0.5
        %v5314 = vmul.f32 %v5180, 0.5
        %v5315 = vmul.f32 %v5182, 0.5
        %v5316 = vmul.f32 %v4991, 0.5
        %v5317 = vmul.f32 %v4993, 0.5
        %v5318 = vmul.f32 %v5184, 0.5
        %v5319 = vmul.f32 %v5186, 0.5
        %v5320 = vmul.f32 %v4997, 0.5
        %v5321 = vmul.f32 %v4999, 0.5
        %v5322 = vmul.f32 %v5190, 0.5
        %v5323 = vmul.f32 %v5192, 0.5
        %v5324 = vmul.f32 %v5001, 0.5
        %v5325 = vmul.f32 %v5003, 0.5
        %v5326 = vmul.f32 %v5194, 0.5
        %v5327 = vmul.f32 %v5196, 0.5
        %v5328 = vmul.f32 %v5007, 0.5
        %v5329 = vmul.f32 %v5009, 0.5
        %v5330 = vmul.f32 %v5200, 0.5
        %v5331 = vmul.f32 %v5202, 0.5
        %v5332 = vmul.f32 %v5011, 0.5
        %v5333 = vmul.f32 %v5013, 0.5
        %v5334 = vmul.f32 %v5204, 0.5
        %v5335 = vmul.f32 %v5206, 0.5
        %v5336 = vmul.f32 %v4857, 0.70710677
        %v5337 = vmul.f32 %v4859, 0.70710677
        %v5338 = vmul.f32 %v5050, 0.70710677
        %v5339 = vmul.f32 %v5052, 0.70710677
        %v5340 = vmul.f32 %v4861, 0.70710677
        %v5341 = vmul.f32 %v4863, 0.70710677
        %v5342 = vmul.f32 %v5054, 0.70710677
        %v5343 = vmul.f32 %v5056, 0.70710677
        %v5344 = vmul.f32 %v4867, 0.70710677
        %v5345 = vmul.f32 %v4869, 0.70710677
        %v5346 = vmul.f32 %v5060, 0.70710677
        %v5347 = vmul.f32 %v5062, 0.70710677
        %v5348 = vmul.f32 %v4871, 0.70710677
        %v5349 = vmul.f32 %v4873, 0.70710677
        %v5350 = vmul.f32 %v5064, 0.70710677
        %v5351 = vmul.f32 %v5066, 0.70710677
        %v5352 = vmul.f32 %v4877, 0.70710677
        %v5353 = vmul.f32 %v4879, 0.70710677
        %v5354 = vmul.f32 %v5070, 0.70710677
        %v5355 = vmul.f32 %v5072, 0.70710677
        %v5356 = vmul.f32 %v4881, 0.70710677
        %v5357 = vmul.f32 %v4883, 0.70710677
        %v5358 = vmul.f32 %v5074, 0.70710677
        %v5359 = vmul.f32 %v5076, 0.70710677
        %v5360 = vmul.f32 %v4887, 0.70710677
        %v5361 = vmul.f32 %v4889, 0.70710677
        %v5362 = vmul.f32 %v5080, 0.70710677
        %v5363 = vmul.f32 %v5082, 0.70710677
        %v5364 = vmul.f32 %v4891, 0.70710677
        %v5365 = vmul.f32 %v4893, 0.70710677
        %v5366 = vmul.f32 %v5084, 0.70710677
        %v5367 = vmul.f32 %v5086, 0.70710677
        %v5368 = vmul.f32 %v4897, 0.70710677
        %v5369 = vmul.f32 %v4899, 0.70710677
        %v5370 = vmul.f32 %v5090, 0.70710677
        %v5371 = vmul.f32 %v5092, 0.70710677
        %v5372 = vmul.f32 %v4901, 0.70710677
        %v5373 = vmul.f32 %v4903, 0.70710677
        %v5374 = vmul.f32 %v5094, 0.70710677
        %v5375 = vmul.f32 %v5096, 0.70710677
        %v5376 = vmul.f32 %v4907, 0.70710677
        %v5377 = vmul.f32 %v4909, 0.70710677
        %v5378 = vmul.f32 %v5100, 0.70710677
        %v5379 = vmul.f32 %v5102, 0.70710677
        %v5380 = vmul.f32 %v4911, 0.70710677
        %v5381 = vmul.f32 %v4913, 0.70710677
        %v5382 = vmul.f32 %v5104, 0.70710677
        %v5383 = vmul.f32 %v5106, 0.70710677
        %v5384 = vmul.f32 %v4917, 0.70710677
        %v5385 = vmul.f32 %v4919, 0.70710677
        %v5386 = vmul.f32 %v5110, 0.70710677
        %v5387 = vmul.f32 %v5112, 0.70710677
        %v5388 = vmul.f32 %v4921, 0.70710677
        %v5389 = vmul.f32 %v4923, 0.70710677
        %v5390 = vmul.f32 %v5114, 0.70710677
        %v5391 = vmul.f32 %v5116, 0.70710677
        %v5392 = vmul.f32 %v4927, 0.70710677
        %v5393 = vmul.f32 %v4929, 0.70710677
        %v5394 = vmul.f32 %v5120, 0.70710677
        %v5395 = vmul.f32 %v5122, 0.70710677
        %v5396 = vmul.f32 %v4931, 0.70710677
        %v5397 = vmul.f32 %v4933, 0.70710677
        %v5398 = vmul.f32 %v5124, 0.70710677
        %v5399 = vmul.f32 %v5126, 0.70710677
        %v5400 = vmul.f32 %v4937, 0.70710677
        %v5401 = vmul.f32 %v4939, 0.70710677
        %v5402 = vmul.f32 %v5130, 0.70710677
        %v5403 = vmul.f32 %v5132, 0.70710677
        %v5404 = vmul.f32 %v4941, 0.70710677
        %v5405 = vmul.f32 %v4943, 0.70710677
        %v5406 = vmul.f32 %v5134, 0.70710677
        %v5407 = vmul.f32 %v5136, 0.70710677
        %v5408 = vmul.f32 %v4947, 0.70710677
        %v5409 = vmul.f32 %v4949, 0.70710677
        %v5410 = vmul.f32 %v5140, 0.70710677
        %v5411 = vmul.f32 %v5142, 0.70710677
        %v5412 = vmul.f32 %v4951, 0.70710677
        %v5413 = vmul.f32 %v4953, 0.70710677
        %v5414 = vmul.f32 %v5144, 0.70710677
        %v5415 = vmul.f32 %v5146, 0.70710677
        %v5416 = vmul.f32 %v4957, 0.70710677
        %v5417 = vmul.f32 %v4959, 0.70710677
        %v5418 = vmul.f32 %v5150, 0.70710677
        %v5419 = vmul.f32 %v5152, 0.70710677
        %v5420 = vmul.f32 %v4961, 0.70710677
        %v5421 = vmul.f32 %v4963, 0.70710677
        %v5422 = vmul.f32 %v5154, 0.70710677
        %v5423 = vmul.f32 %v5156, 0.70710677
        %v5424 = vmul.f32 %v4967, 0.70710677
        %v5425 = vmul.f32 %v4969, 0.70710677
        %v5426 = vmul.f32 %v5160, 0.70710677
        %v5427 = vmul.f32 %v5162, 0.70710677
        %v5428 = vmul.f32 %v4971, 0.70710677
        %v5429 = vmul.f32 %v4973, 0.70710677
        %v5430 = vmul.f32 %v5164, 0.70710677
        %v5431 = vmul.f32 %v5166, 0.70710677
        %v5432 = vmul.f32 %v4977, 0.70710677
        %v5433 = vmul.f32 %v4979, 0.70710677
        %v5434 = vmul.f32 %v5170, 0.70710677
        %v5435 = vmul.f32 %v5172, 0.70710677
        %v5436 = vmul.f32 %v4981, 0.70710677
        %v5437 = vmul.f32 %v4983, 0.70710677
        %v5438 = vmul.f32 %v5174, 0.70710677
        %v5439 = vmul.f32 %v5176, 0.70710677
        %v5440 = vmul.f32 %v4987, 0.70710677
        %v5441 = vmul.f32 %v4989, 0.70710677
        %v5442 = vmul.f32 %v5180, 0.70710677
        %v5443 = vmul.f32 %v5182, 0.70710677
        %v5444 = vmul.f32 %v4991, 0.70710677
        %v5445 = vmul.f32 %v4993, 0.70710677
        %v5446 = vmul.f32 %v5184, 0.70710677
        %v5447 = vmul.f32 %v5186, 0.70710677
        %v5448 = vmul.f32 %v4997, 0.70710677
        %v5449 = vmul.f32 %v4999, 0.70710677
        %v5450 = vmul.f32 %v5190, 0.70710677
        %v5451 = vmul.f32 %v5192, 0.70710677
        %v5452 = vmul.f32 %v5001, 0.70710677
        %v5453 = vmul.f32 %v5003, 0.70710677
        %v5454 = vmul.f32 %v5194, 0.70710677
        %v5455 = vmul.f32 %v5196, 0.70710677
        %v5456 = vmul.f32 %v5007, 0.70710677
        %v5457 = vmul.f32 %v5009, 0.70710677
        %v5458 = vmul.f32 %v5200, 0.70710677
        %v5459 = vmul.f32 %v5202, 0.70710677
        %v5460 = vmul.f32 %v5011, 0.70710677
        %v5461 = vmul.f32 %v5013, 0.70710677
        %v5462 = vmul.f32 %v5204, 0.70710677
        %v5463 = vmul.f32 %v5206, 0.70710677
        %v5464 = verf.f32.pop %v5336
        %v5465 = verf.f32.pop %v5337
        %v5466 = verf.f32.pop %v5338
        %v5467 = verf.f32.pop %v5339
        %v5468 = verf.f32.pop %v5340
        %v5469 = verf.f32.pop %v5341
        %v5470 = verf.f32.pop %v5342
        %v5471 = verf.f32.pop %v5343
        %v5472 = verf.f32.pop %v5344
        %v5473 = verf.f32.pop %v5345
        %v5474 = verf.f32.pop %v5346
        %v5475 = verf.f32.pop %v5347
        %v5476 = verf.f32.pop %v5348
        %v5477 = verf.f32.pop %v5349
        %v5478 = verf.f32.pop %v5350
        %v5479 = verf.f32.pop %v5351
        %v5480 = verf.f32.pop %v5352
        %v5481 = verf.f32.pop %v5353
        %v5482 = verf.f32.pop %v5354
        %v5483 = verf.f32.pop %v5355
        %v5484 = verf.f32.pop %v5356
        %v5485 = verf.f32.pop %v5357
        %v5486 = verf.f32.pop %v5358
        %v5487 = verf.f32.pop %v5359
        %v5488 = verf.f32.pop %v5360
        %v5489 = verf.f32.pop %v5361
        %v5490 = verf.f32.pop %v5362
        %v5491 = verf.f32.pop %v5363
        %v5492 = verf.f32.pop %v5364
        %v5493 = verf.f32.pop %v5365
        %v5494 = verf.f32.pop %v5366
        %v5495 = verf.f32.pop %v5367
        %v5496 = verf.f32.pop %v5368
        %v5497 = verf.f32.pop %v5369
        %v5498 = verf.f32.pop %v5370
        %v5499 = verf.f32.pop %v5371
        %v5500 = verf.f32.pop %v5372
        %v5501 = verf.f32.pop %v5373
        %v5502 = verf.f32.pop %v5374
        %v5503 = verf.f32.pop %v5375
        %v5504 = verf.f32.pop %v5376
        %v5505 = verf.f32.pop %v5377
        %v5506 = verf.f32.pop %v5378
        %v5507 = verf.f32.pop %v5379
        %v5508 = verf.f32.pop %v5380
        %v5509 = verf.f32.pop %v5381
        %v5510 = verf.f32.pop %v5382
        %v5511 = verf.f32.pop %v5383
        %v5512 = verf.f32.pop %v5384
        %v5513 = verf.f32.pop %v5385
        %v5514 = verf.f32.pop %v5386
        %v5515 = verf.f32.pop %v5387
        %v5516 = verf.f32.pop %v5388
        %v5517 = verf.f32.pop %v5389
        %v5518 = verf.f32.pop %v5390
        %v5519 = verf.f32.pop %v5391
        %v5520 = verf.f32.pop %v5392
        %v5521 = verf.f32.pop %v5393
        %v5522 = verf.f32.pop %v5394
        %v5523 = verf.f32.pop %v5395
        %v5524 = verf.f32.pop %v5396
        %v5525 = verf.f32.pop %v5397
        %v5526 = verf.f32.pop %v5398
        %v5527 = verf.f32.pop %v5399
        %v5528 = verf.f32.pop %v5400
        %v5529 = verf.f32.pop %v5401
        %v5530 = verf.f32.pop %v5402
        %v5531 = verf.f32.pop %v5403
        %v5532 = verf.f32.pop %v5404
        %v5533 = verf.f32.pop %v5405
        %v5534 = verf.f32.pop %v5406
        %v5535 = verf.f32.pop %v5407
        %v5536 = verf.f32.pop %v5408
        %v5537 = verf.f32.pop %v5409
        %v5538 = verf.f32.pop %v5410
        %v5539 = verf.f32.pop %v5411
        %v5540 = verf.f32.pop %v5412
        %v5541 = verf.f32.pop %v5413
        %v5542 = verf.f32.pop %v5414
        %v5543 = verf.f32.pop %v5415
        %v5544 = verf.f32.pop %v5416
        %v5545 = verf.f32.pop %v5417
        %v5546 = verf.f32.pop %v5418
        %v5547 = verf.f32.pop %v5419
        %v5548 = verf.f32.pop %v5420
        %v5549 = verf.f32.pop %v5421
        %v5550 = verf.f32.pop %v5422
        %v5551 = verf.f32.pop %v5423
        %v5552 = verf.f32.pop %v5424
        %v5553 = verf.f32.pop %v5425
        %v5554 = verf.f32.pop %v5426
        %v5555 = verf.f32.pop %v5427
        %v5556 = verf.f32.pop %v5428
        %v5557 = verf.f32.pop %v5429
        %v5558 = verf.f32.pop %v5430
        %v5559 = verf.f32.pop %v5431
        %v5560 = verf.f32.pop %v5432
        %v5561 = verf.f32.pop %v5433
        %v5562 = verf.f32.pop %v5434
        %v5563 = verf.f32.pop %v5435
        %v5564 = verf.f32.pop %v5436
        %v5565 = verf.f32.pop %v5437
        %v5566 = verf.f32.pop %v5438
        %v5567 = verf.f32.pop %v5439
        %v5568 = verf.f32.pop %v5440
        %v5569 = verf.f32.pop %v5441
        %v5570 = verf.f32.pop %v5442
        %v5571 = verf.f32.pop %v5443
        %v5572 = verf.f32.pop %v5444
        %v5573 = verf.f32.pop %v5445
        %v5574 = verf.f32.pop %v5446
        %v5575 = verf.f32.pop %v5447
        %v5576 = verf.f32.pop %v5448
        %v5577 = verf.f32.pop %v5449
        %v5578 = verf.f32.pop %v5450
        %v5579 = verf.f32.pop %v5451
        %v5580 = verf.f32.pop %v5452
        %v5581 = verf.f32.pop %v5453
        %v5582 = verf.f32.pop %v5454
        %v5583 = verf.f32.pop %v5455
        %v5584 = verf.f32.pop %v5456
        %v5585 = verf.f32.pop %v5457
        %v5586 = verf.f32.pop %v5458
        %v5587 = verf.f32.pop %v5459
        %v5588 = verf.f32.pop %v5460
        %v5589 = verf.f32.pop %v5461
        %v5590 = verf.f32.pop %v5462
        %v5591 = verf.f32.pop %v5463
        %v5592 = vadd.f32 %v5464, 1.0
        %v5593 = vadd.f32 %v5465, 1.0
        %v5594 = vadd.f32 %v5466, 1.0
        %v5595 = vadd.f32 %v5467, 1.0
        %v5596 = vadd.f32 %v5468, 1.0
        %v5597 = vadd.f32 %v5469, 1.0
        %v5598 = vadd.f32 %v5470, 1.0
        %v5599 = vadd.f32 %v5471, 1.0
        %v5600 = vadd.f32 %v5472, 1.0
        %v5601 = vadd.f32 %v5473, 1.0
        %v5602 = vadd.f32 %v5474, 1.0
        %v5603 = vadd.f32 %v5475, 1.0
        %v5604 = vadd.f32 %v5476, 1.0
        %v5605 = vadd.f32 %v5477, 1.0
        %v5606 = vadd.f32 %v5478, 1.0
        %v5607 = vadd.f32 %v5479, 1.0
        %v5608 = vadd.f32 %v5480, 1.0
        %v5609 = vadd.f32 %v5481, 1.0
        %v5610 = vadd.f32 %v5482, 1.0
        %v5611 = vadd.f32 %v5483, 1.0
        %v5612 = vadd.f32 %v5484, 1.0
        %v5613 = vadd.f32 %v5485, 1.0
        %v5614 = vadd.f32 %v5486, 1.0
        %v5615 = vadd.f32 %v5487, 1.0
        %v5616 = vadd.f32 %v5488, 1.0
        %v5617 = vadd.f32 %v5489, 1.0
        %v5618 = vadd.f32 %v5490, 1.0
        %v5619 = vadd.f32 %v5491, 1.0
        %v5620 = vadd.f32 %v5492, 1.0
        %v5621 = vadd.f32 %v5493, 1.0
        %v5622 = vadd.f32 %v5494, 1.0
        %v5623 = vadd.f32 %v5495, 1.0
        %v5624 = vadd.f32 %v5496, 1.0
        %v5625 = vadd.f32 %v5497, 1.0
        %v5626 = vadd.f32 %v5498, 1.0
        %v5627 = vadd.f32 %v5499, 1.0
        %v5628 = vadd.f32 %v5500, 1.0
        %v5629 = vadd.f32 %v5501, 1.0
        %v5630 = vadd.f32 %v5502, 1.0
        %v5631 = vadd.f32 %v5503, 1.0
        %v5632 = vadd.f32 %v5504, 1.0
        %v5633 = vadd.f32 %v5505, 1.0
        %v5634 = vadd.f32 %v5506, 1.0
        %v5635 = vadd.f32 %v5507, 1.0
        %v5636 = vadd.f32 %v5508, 1.0
        %v5637 = vadd.f32 %v5509, 1.0
        %v5638 = vadd.f32 %v5510, 1.0
        %v5639 = vadd.f32 %v5511, 1.0
        %v5640 = vadd.f32 %v5512, 1.0
        %v5641 = vadd.f32 %v5513, 1.0
        %v5642 = vadd.f32 %v5514, 1.0
        %v5643 = vadd.f32 %v5515, 1.0
        %v5644 = vadd.f32 %v5516, 1.0
        %v5645 = vadd.f32 %v5517, 1.0
        %v5646 = vadd.f32 %v5518, 1.0
        %v5647 = vadd.f32 %v5519, 1.0
        %v5648 = vadd.f32 %v5520, 1.0
        %v5649 = vadd.f32 %v5521, 1.0
        %v5650 = vadd.f32 %v5522, 1.0
        %v5651 = vadd.f32 %v5523, 1.0
        %v5652 = vadd.f32 %v5524, 1.0
        %v5653 = vadd.f32 %v5525, 1.0
        %v5654 = vadd.f32 %v5526, 1.0
        %v5655 = vadd.f32 %v5527, 1.0
        %v5656 = vadd.f32 %v5528, 1.0
        %v5657 = vadd.f32 %v5529, 1.0
        %v5658 = vadd.f32 %v5530, 1.0
        %v5659 = vadd.f32 %v5531, 1.0
        %v5660 = vadd.f32 %v5532, 1.0
        %v5661 = vadd.f32 %v5533, 1.0
        %v5662 = vadd.f32 %v5534, 1.0
        %v5663 = vadd.f32 %v5535, 1.0
        %v5664 = vadd.f32 %v5536, 1.0
        %v5665 = vadd.f32 %v5537, 1.0
        %v5666 = vadd.f32 %v5538, 1.0
        %v5667 = vadd.f32 %v5539, 1.0
        %v5668 = vadd.f32 %v5540, 1.0
        %v5669 = vadd.f32 %v5541, 1.0
        %v5670 = vadd.f32 %v5542, 1.0
        %v5671 = vadd.f32 %v5543, 1.0
        %v5672 = vadd.f32 %v5544, 1.0
        %v5673 = vadd.f32 %v5545, 1.0
        %v5674 = vadd.f32 %v5546, 1.0
        %v5675 = vadd.f32 %v5547, 1.0
        %v5676 = vadd.f32 %v5548, 1.0
        %v5677 = vadd.f32 %v5549, 1.0
        %v5678 = vadd.f32 %v5550, 1.0
        %v5679 = vadd.f32 %v5551, 1.0
        %v5680 = vadd.f32 %v5552, 1.0
        %v5681 = vadd.f32 %v5553, 1.0
        %v5682 = vadd.f32 %v5554, 1.0
        %v5683 = vadd.f32 %v5555, 1.0
        %v5684 = vadd.f32 %v5556, 1.0
        %v5685 = vadd.f32 %v5557, 1.0
        %v5686 = vadd.f32 %v5558, 1.0
        %v5687 = vadd.f32 %v5559, 1.0
        %v5688 = vadd.f32 %v5560, 1.0
        %v5689 = vadd.f32 %v5561, 1.0
        %v5690 = vadd.f32 %v5562, 1.0
        %v5691 = vadd.f32 %v5563, 1.0
        %v5692 = vadd.f32 %v5564, 1.0
        %v5693 = vadd.f32 %v5565, 1.0
        %v5694 = vadd.f32 %v5566, 1.0
        %v5695 = vadd.f32 %v5567, 1.0
        %v5696 = vadd.f32 %v5568, 1.0
        %v5697 = vadd.f32 %v5569, 1.0
        %v5698 = vadd.f32 %v5570, 1.0
        %v5699 = vadd.f32 %v5571, 1.0
        %v5700 = vadd.f32 %v5572, 1.0
        %v5701 = vadd.f32 %v5573, 1.0
        %v5702 = vadd.f32 %v5574, 1.0
        %v5703 = vadd.f32 %v5575, 1.0
        %v5704 = vadd.f32 %v5576, 1.0
        %v5705 = vadd.f32 %v5577, 1.0
        %v5706 = vadd.f32 %v5578, 1.0
        %v5707 = vadd.f32 %v5579, 1.0
        %v5708 = vadd.f32 %v5580, 1.0
        %v5709 = vadd.f32 %v5581, 1.0
        %v5710 = vadd.f32 %v5582, 1.0
        %v5711 = vadd.f32 %v5583, 1.0
        %v5712 = vadd.f32 %v5584, 1.0
        %v5713 = vadd.f32 %v5585, 1.0
        %v5714 = vadd.f32 %v5586, 1.0
        %v5715 = vadd.f32 %v5587, 1.0
        %v5716 = vadd.f32 %v5588, 1.0
        %v5717 = vadd.f32 %v5589, 1.0
        %v5718 = vadd.f32 %v5590, 1.0
        %v5719 = vadd.f32 %v5591, 1.0
        %v5720 = vmul.f32 %v5208, %v5592
        %v5721 = vmul.f32 %v5209, %v5593
        %v5722 = vmul.f32 %v5210, %v5594
        %v5723 = vmul.f32 %v5211, %v5595
        %v5724 = vmul.f32 %v5212, %v5596
        %v5725 = vmul.f32 %v5213, %v5597
        %v5726 = vmul.f32 %v5214, %v5598
        %v5727 = vmul.f32 %v5215, %v5599
        %v5728 = vmul.f32 %v5216, %v5600
        %v5729 = vmul.f32 %v5217, %v5601
        %v5730 = vmul.f32 %v5218, %v5602
        %v5731 = vmul.f32 %v5219, %v5603
        %v5732 = vmul.f32 %v5220, %v5604
        %v5733 = vmul.f32 %v5221, %v5605
        %v5734 = vmul.f32 %v5222, %v5606
        %v5735 = vmul.f32 %v5223, %v5607
        %v5736 = vmul.f32 %v5224, %v5608
        %v5737 = vmul.f32 %v5225, %v5609
        %v5738 = vmul.f32 %v5226, %v5610
        %v5739 = vmul.f32 %v5227, %v5611
        %v5740 = vmul.f32 %v5228, %v5612
        %v5741 = vmul.f32 %v5229, %v5613
        %v5742 = vmul.f32 %v5230, %v5614
        %v5743 = vmul.f32 %v5231, %v5615
        %v5744 = vmul.f32 %v5232, %v5616
        %v5745 = vmul.f32 %v5233, %v5617
        %v5746 = vmul.f32 %v5234, %v5618
        %v5747 = vmul.f32 %v5235, %v5619
        %v5748 = vmul.f32 %v5236, %v5620
        %v5749 = vmul.f32 %v5237, %v5621
        %v5750 = vmul.f32 %v5238, %v5622
        %v5751 = vmul.f32 %v5239, %v5623
        %v5752 = vmul.f32 %v5240, %v5624
        %v5753 = vmul.f32 %v5241, %v5625
        %v5754 = vmul.f32 %v5242, %v5626
        %v5755 = vmul.f32 %v5243, %v5627
        %v5756 = vmul.f32 %v5244, %v5628
        %v5757 = vmul.f32 %v5245, %v5629
        %v5758 = vmul.f32 %v5246, %v5630
        %v5759 = vmul.f32 %v5247, %v5631
        %v5760 = vmul.f32 %v5248, %v5632
        %v5761 = vmul.f32 %v5249, %v5633
        %v5762 = vmul.f32 %v5250, %v5634
        %v5763 = vmul.f32 %v5251, %v5635
        %v5764 = vmul.f32 %v5252, %v5636
        %v5765 = vmul.f32 %v5253, %v5637
        %v5766 = vmul.f32 %v5254, %v5638
        %v5767 = vmul.f32 %v5255, %v5639
        %v5768 = vmul.f32 %v5256, %v5640
        %v5769 = vmul.f32 %v5257, %v5641
        %v5770 = vmul.f32 %v5258, %v5642
        %v5771 = vmul.f32 %v5259, %v5643
        %v5772 = vmul.f32 %v5260, %v5644
        %v5773 = vmul.f32 %v5261, %v5645
        %v5774 = vmul.f32 %v5262, %v5646
        %v5775 = vmul.f32 %v5263, %v5647
        %v5776 = vmul.f32 %v5264, %v5648
        %v5777 = vmul.f32 %v5265, %v5649
        %v5778 = vmul.f32 %v5266, %v5650
        %v5779 = vmul.f32 %v5267, %v5651
        %v5780 = vmul.f32 %v5268, %v5652
        %v5781 = vmul.f32 %v5269, %v5653
        %v5782 = vmul.f32 %v5270, %v5654
        %v5783 = vmul.f32 %v5271, %v5655
        %v5784 = vmul.f32 %v5272, %v5656
        %v5785 = vmul.f32 %v5273, %v5657
        %v5786 = vmul.f32 %v5274, %v5658
        %v5787 = vmul.f32 %v5275, %v5659
        %v5788 = vmul.f32 %v5276, %v5660
        %v5789 = vmul.f32 %v5277, %v5661
        %v5790 = vmul.f32 %v5278, %v5662
        %v5791 = vmul.f32 %v5279, %v5663
        %v5792 = vmul.f32 %v5280, %v5664
        %v5793 = vmul.f32 %v5281, %v5665
        %v5794 = vmul.f32 %v5282, %v5666
        %v5795 = vmul.f32 %v5283, %v5667
        %v5796 = vmul.f32 %v5284, %v5668
        %v5797 = vmul.f32 %v5285, %v5669
        %v5798 = vmul.f32 %v5286, %v5670
        %v5799 = vmul.f32 %v5287, %v5671
        %v5800 = vmul.f32 %v5288, %v5672
        %v5801 = vmul.f32 %v5289, %v5673
        %v5802 = vmul.f32 %v5290, %v5674
        %v5803 = vmul.f32 %v5291, %v5675
        %v5804 = vmul.f32 %v5292, %v5676
        %v5805 = vmul.f32 %v5293, %v5677
        %v5806 = vmul.f32 %v5294, %v5678
        %v5807 = vmul.f32 %v5295, %v5679
        %v5808 = vmul.f32 %v5296, %v5680
        %v5809 = vmul.f32 %v5297, %v5681
        %v5810 = vmul.f32 %v5298, %v5682
        %v5811 = vmul.f32 %v5299, %v5683
        %v5812 = vmul.f32 %v5300, %v5684
        %v5813 = vmul.f32 %v5301, %v5685
        %v5814 = vmul.f32 %v5302, %v5686
        %v5815 = vmul.f32 %v5303, %v5687
        %v5816 = vmul.f32 %v5304, %v5688
        %v5817 = vmul.f32 %v5305, %v5689
        %v5818 = vmul.f32 %v5306, %v5690
        %v5819 = vmul.f32 %v5307, %v5691
        %v5820 = vmul.f32 %v5308, %v5692
        %v5821 = vmul.f32 %v5309, %v5693
        %v5822 = vmul.f32 %v5310, %v5694
        %v5823 = vmul.f32 %v5311, %v5695
        %v5824 = vmul.f32 %v5312, %v5696
        %v5825 = vmul.f32 %v5313, %v5697
        %v5826 = vmul.f32 %v5314, %v5698
        %v5827 = vmul.f32 %v5315, %v5699
        %v5828 = vmul.f32 %v5316, %v5700
        %v5829 = vmul.f32 %v5317, %v5701
        %v5830 = vmul.f32 %v5318, %v5702
        %v5831 = vmul.f32 %v5319, %v5703
        %v5832 = vmul.f32 %v5320, %v5704
        %v5833 = vmul.f32 %v5321, %v5705
        %v5834 = vmul.f32 %v5322, %v5706
        %v5835 = vmul.f32 %v5323, %v5707
        %v5836 = vmul.f32 %v5324, %v5708
        %v5837 = vmul.f32 %v5325, %v5709
        %v5838 = vmul.f32 %v5326, %v5710
        %v5839 = vmul.f32 %v5327, %v5711
        %v5840 = vmul.f32 %v5328, %v5712
        %v5841 = vmul.f32 %v5329, %v5713
        %v5842 = vmul.f32 %v5330, %v5714
        %v5843 = vmul.f32 %v5331, %v5715
        %v5844 = vmul.f32 %v5332, %v5716
        %v5845 = vmul.f32 %v5333, %v5717
        %v5846 = vmul.f32 %v5334, %v5718
        %v5847 = vmul.f32 %v5335, %v5719
        %v5848 = vld [vmem:[#allocation7 + $0x30] sm:$0xff]
        %v5849 = vld [vmem:[#allocation7 + $0x38] sm:$0xff]
        %v5850 = vpack.c.bf16 %v5724, %v5720
        %v5851 = vpack.c.bf16 %v5725, %v5721
        %v5852 = vpack.c.bf16 %v5726, %v5722
        %v5853 = vpack.c.bf16 %v5727, %v5723
        %v5854 = vpack.c.bf16 %v5732, %v5728
        %v5855 = vpack.c.bf16 %v5733, %v5729
        %v5856 = vpack.c.bf16 %v5734, %v5730
        %v5857 = vpack.c.bf16 %v5735, %v5731
        %v5858 = vpack.c.bf16 %v5740, %v5736
        %v5859 = vpack.c.bf16 %v5741, %v5737
        %v5860 = vpack.c.bf16 %v5742, %v5738
        %v5861 = vpack.c.bf16 %v5743, %v5739
        %v5862 = vpack.c.bf16 %v5748, %v5744
        %v5863 = vpack.c.bf16 %v5749, %v5745
        %v5864 = vpack.c.bf16 %v5750, %v5746
        %v5865 = vpack.c.bf16 %v5751, %v5747
        %v5866 = vpack.c.bf16 %v5756, %v5752
        %v5867 = vpack.c.bf16 %v5757, %v5753
        %v5868 = vpack.c.bf16 %v5758, %v5754
        %v5869 = vpack.c.bf16 %v5759, %v5755
        %v5870 = vpack.c.bf16 %v5764, %v5760
        %v5871 = vpack.c.bf16 %v5765, %v5761
        %v5872 = vpack.c.bf16 %v5766, %v5762
        %v5873 = vpack.c.bf16 %v5767, %v5763
        %v5874 = vpack.c.bf16 %v5772, %v5768
        %v5875 = vpack.c.bf16 %v5773, %v5769
        %v5876 = vpack.c.bf16 %v5774, %v5770
        %v5877 = vpack.c.bf16 %v5775, %v5771
        %v5878 = vpack.c.bf16 %v5780, %v5776
        %v5879 = vpack.c.bf16 %v5781, %v5777
        %v5880 = vpack.c.bf16 %v5782, %v5778
        %v5881 = vpack.c.bf16 %v5783, %v5779
        %v5882 = vpack.c.bf16 %v5788, %v5784
        %v5883 = vpack.c.bf16 %v5789, %v5785
        %v5884 = vpack.c.bf16 %v5790, %v5786
        %v5885 = vpack.c.bf16 %v5791, %v5787
        %v5886 = vpack.c.bf16 %v5796, %v5792
        %v5887 = vpack.c.bf16 %v5797, %v5793
        %v5888 = vpack.c.bf16 %v5798, %v5794
        %v5889 = vpack.c.bf16 %v5799, %v5795
        %v5890 = vpack.c.bf16 %v5804, %v5800
        %v5891 = vpack.c.bf16 %v5805, %v5801
        %v5892 = vpack.c.bf16 %v5806, %v5802
        %v5893 = vpack.c.bf16 %v5807, %v5803
        %v5894 = vpack.c.bf16 %v5812, %v5808
        %v5895 = vpack.c.bf16 %v5813, %v5809
        %v5896 = vpack.c.bf16 %v5814, %v5810
        %v5897 = vpack.c.bf16 %v5815, %v5811
        %v5898 = vpack.c.bf16 %v5820, %v5816
        %v5899 = vpack.c.bf16 %v5821, %v5817
        %v5900 = vpack.c.bf16 %v5822, %v5818
        %v5901 = vpack.c.bf16 %v5823, %v5819
        %v5902 = vpack.c.bf16 %v5828, %v5824
        %v5903 = vpack.c.bf16 %v5829, %v5825
        %v5904 = vpack.c.bf16 %v5830, %v5826
        %v5905 = vpack.c.bf16 %v5831, %v5827
        %v5906 = vpack.c.bf16 %v5836, %v5832
        %v5907 = vpack.c.bf16 %v5837, %v5833
        %v5908 = vpack.c.bf16 %v5838, %v5834
        %v5909 = vpack.c.bf16 %v5839, %v5835
        %v5910 = vpack.c.bf16 %v5844, %v5840
        %v5911 = vpack.c.bf16 %v5845, %v5841
        %v5912 = vpack.c.bf16 %v5846, %v5842
        %v5913 = vpack.c.bf16 %v5847, %v5843
        %v5916 = vunpack.c.l.b16 %v5848
        %v5917 = vunpack.c.h.b16 %v5848
        %v5918 = vunpack.c.l.b16 %v5849
        %v5919 = vunpack.c.h.b16 %v5849
        %v5920 = vpack.c.b16 %v5916, %v5916
        %v5921 = vpack.c.b16 %v5917, %v5917
        %v5922 = vpack.c.b16 %v5918, %v5918
        %v5923 = vpack.c.b16 %v5919, %v5919
        %5928 = vmatprep.subr.bf16.mxu0 %v5851
        %5929 = vmatpush1.bf16.xpose.msra.mxu0 %v5850
        %5930 = vmatprep.subr.bf16.mxu0 %v5855
        %5931 = vmatpush1.bf16.xpose.msra.mxu0 %v5854
        %5932 = vmatprep.subr.bf16.mxu0 %v5859
        %5933 = vmatpush1.bf16.xpose.msra.mxu0 %v5858
        %5934 = vmatprep.subr.bf16.mxu0 %v5863
        %5935 = vmatpush1.bf16.xpose.msra.mxu0 %v5862
        %5936 = vmatprep.subr.bf16.mxu0 %v5867
        %5937 = vmatpush1.bf16.xpose.msra.mxu0 %v5866
        %5938 = vmatprep.subr.bf16.mxu0 %v5871
        %5939 = vmatpush1.bf16.xpose.msra.mxu0 %v5870
        %5940 = vmatprep.subr.bf16.mxu0 %v5875
        %5941 = vmatpush1.bf16.xpose.msra.mxu0 %v5874
        %5942 = vmatprep.subr.bf16.mxu0 %v5879
        %5943 = vmatpush1.bf16.xpose.msra.mxu0 %v5878
        %5944 = vmatprep.subr.bf16.mxu0 %v5883
        %5945 = vmatpush1.bf16.xpose.msra.mxu0 %v5882
        %5946 = vmatprep.subr.bf16.mxu0 %v5887
        %5947 = vmatpush1.bf16.xpose.msra.mxu0 %v5886
        %5948 = vmatprep.subr.bf16.mxu0 %v5891
        %5949 = vmatpush1.bf16.xpose.msra.mxu0 %v5890
        %5950 = vmatprep.subr.bf16.mxu0 %v5895
        %5951 = vmatpush1.bf16.xpose.msra.mxu0 %v5894
        %5952 = vmatprep.subr.bf16.mxu0 %v5899
        %5953 = vmatpush1.bf16.xpose.msra.mxu0 %v5898
        %5954 = vmatprep.subr.bf16.mxu0 %v5903
        %5955 = vmatpush1.bf16.xpose.msra.mxu0 %v5902
        %5956 = vmatprep.subr.bf16.mxu0 %v5907
        %5957 = vmatpush1.bf16.xpose.msra.mxu0 %v5906
        %5958 = vmatprep.subr.bf16.mxu0 %v5911
        %5959 = vmatpush1.bf16.xpose.msra.mxu0 %v5910
        %5960 = vmatprep.mubr.bf16.mxu0 %v5921
        %5961 = vmatmul.mubr.bf16.gmra.mrb[0].mxu0 %v5920
        %v5962 = vpop.f32.mrb[0].mxu0
        %v5963 = vadd.f32 0.0, %v5962
        %v5964 = vpop.f32.mrb[0].mxu0
        %v5965 = vadd.f32 0.0, %v5964
        %v5966 = vpop.f32.mrb[0].mxu0
        %v5967 = vpop.f32.mrb[0].mxu0
        %5968 = vdwg.mxu0
        %5969 = vmatprep.subr.bf16.mxu0 %v5853
        %5970 = vmatpush1.bf16.xpose.msra.mxu0 %v5852
        %5971 = vmatprep.subr.bf16.mxu0 %v5857
        %5972 = vmatpush1.bf16.xpose.msra.mxu0 %v5856
        %5973 = vmatprep.subr.bf16.mxu0 %v5861
        %5974 = vmatpush1.bf16.xpose.msra.mxu0 %v5860
        %5975 = vmatprep.subr.bf16.mxu0 %v5865
        %5976 = vmatpush1.bf16.xpose.msra.mxu0 %v5864
        %5977 = vmatprep.subr.bf16.mxu0 %v5869
        %5978 = vmatpush1.bf16.xpose.msra.mxu0 %v5868
        %5979 = vmatprep.subr.bf16.mxu0 %v5873
        %5980 = vmatpush1.bf16.xpose.msra.mxu0 %v5872
        %5981 = vmatprep.subr.bf16.mxu0 %v5877
        %5982 = vmatpush1.bf16.xpose.msra.mxu0 %v5876
        %5983 = vmatprep.subr.bf16.mxu0 %v5881
        %5984 = vmatpush1.bf16.xpose.msra.mxu0 %v5880
        %5985 = vmatprep.subr.bf16.mxu0 %v5885
        %5986 = vmatpush1.bf16.xpose.msra.mxu0 %v5884
        %5987 = vmatprep.subr.bf16.mxu0 %v5889
        %5988 = vmatpush1.bf16.xpose.msra.mxu0 %v5888
        %5989 = vmatprep.subr.bf16.mxu0 %v5893
        %5990 = vmatpush1.bf16.xpose.msra.mxu0 %v5892
        %5991 = vmatprep.subr.bf16.mxu0 %v5897
        %5992 = vmatpush1.bf16.xpose.msra.mxu0 %v5896
        %5993 = vmatprep.subr.bf16.mxu0 %v5901
        %5994 = vmatpush1.bf16.xpose.msra.mxu0 %v5900
        %5995 = vmatprep.subr.bf16.mxu0 %v5905
        %5996 = vmatpush1.bf16.xpose.msra.mxu0 %v5904
        %5997 = vmatprep.subr.bf16.mxu0 %v5909
        %5998 = vmatpush1.bf16.xpose.msra.mxu0 %v5908
        %5999 = vmatprep.subr.bf16.mxu0 %v5913
        %6000 = vmatpush1.bf16.xpose.msra.mxu0 %v5912
        %6001 = vmatprep.mubr.bf16.mxu0 %v5923
        %6002 = vmatmul.mubr.bf16.gmra.mrb[0].mxu0 %v5922
        %v6003 = vpop.f32.mrb[0].mxu0
        %v6004 = vadd.f32 %v5963, %v6003
        %v6005 = vpop.f32.mrb[0].mxu0
        %v6006 = vadd.f32 %v5965, %v6005
        %v6007 = vpop.f32.mrb[0].mxu0
        %v6008 = vpop.f32.mrb[0].mxu0
        %6009 = vdwg.mxu0
        %v6010 = vadd.f32 %v4606, %v6004
        %v6011 = vadd.f32 %v4607, %v6006
        %v6012 = vld [vmem:[%s4] sm:$0xff]
        %6014 = vset.pattern.permute.xlu0 0
        %6015 = vperm.xlu0 %6014, %v6012
        %v6016 = vpop.permute.xlu0 %6015
        %v6018 = vadd.f32 %v6010, %v6016
        %v6019 = vadd.f32 %v6011, %v6016
        %v6020 = vpack.c.bf16 %v6018, %v6018
        %v6021 = vpack.c.bf16 %v6019, %v6019
        %vm6022 = vcmask 523264
        %v6024 = vsel %vm6022, %v6020, 0
        %6026 = vmatprep.subr.bf16.mxu0 0
        %6027 = vmatpush1.bf16.msra.mxu0 %v422
        %6028 = vmatprep.subr.bf16.mxu0 0
        %6029 = vmatpush1.bf16.msra.mxu0 %v423
        %6030 = vmatprep.subr.bf16.mxu0 0
        %6031 = vmatpush1.bf16.msra.mxu0 %v424
        %6032 = vmatprep.subr.bf16.mxu0 0
        %6033 = vmatpush1.bf16.msra.mxu0 %v425
        %6034 = vmatprep.subr.bf16.mxu0 0
        %6035 = vmatpush1.bf16.msra.mxu0 0
        %6036 = vmatprep.subr.bf16.mxu0 0
        %6037 = vmatpush1.bf16.msra.mxu0 0
        %6038 = vmatprep.subr.bf16.mxu0 0
        %6039 = vmatpush1.bf16.msra.mxu0 0
        %6040 = vmatprep.subr.bf16.mxu0 0
        %6041 = vmatpush1.bf16.msra.mxu0 0
        %6042 = vmatprep.subr.bf16.mxu0 0
        %6043 = vmatpush1.bf16.msra.mxu0 0
        %6044 = vmatprep.subr.bf16.mxu0 0
        %6045 = vmatpush1.bf16.msra.mxu0 0
        %6046 = vmatprep.subr.bf16.mxu0 0
        %6047 = vmatpush1.bf16.msra.mxu0 0
        %6048 = vmatprep.subr.bf16.mxu0 0
        %6049 = vmatpush1.bf16.msra.mxu0 0
        %6050 = vmatprep.subr.bf16.mxu0 0
        %6051 = vmatpush1.bf16.msra.mxu0 0
        %6052 = vmatprep.subr.bf16.mxu0 0
        %6053 = vmatpush1.bf16.msra.mxu0 0
        %6054 = vmatprep.subr.bf16.mxu0 0
        %6055 = vmatpush1.bf16.msra.mxu0 0
        %6056 = vmatprep.subr.bf16.mxu0 0
        %6057 = vmatpush1.bf16.msra.mxu0 0
        %6058 = vmatprep.mubr.bf16.mxu0 0
        %6059 = vmatmul.mubr.bf16.gmra.mrb[0].mxu0 %v6024
        %v6060 = vpop.f32.mrb[0].mxu0
        %v6061 = vadd.f32 0.0, %v6060
        %v6062 = vpop.f32.mrb[0].mxu0
        %v6063 = vpop.f32.mrb[0].mxu0
        %v6064 = vpop.f32.mrb[0].mxu0
        %6065 = vdwg.mxu0
        %v6066 = vmul.f32 %v6061, 0.015625
        %6067 = vst [vmem:[%s269] sm:$0xff] %v6066
        %6069 = vrot.lane.b32.xlu0 %v6020, 64
        %v6070 = vpop.permute.xlu0 %6069
        %v6072 = vsel %vm6022, %v6070, 0
        %6074 = vmatprep.subr.bf16.mxu0 0
        %6075 = vmatpush1.bf16.msra.mxu0 %v426
        %6076 = vmatprep.subr.bf16.mxu0 0
        %6077 = vmatpush1.bf16.msra.mxu0 %v427
        %6078 = vmatprep.subr.bf16.mxu0 0
        %6079 = vmatpush1.bf16.msra.mxu0 %v428
        %6080 = vmatprep.subr.bf16.mxu0 0
        %6081 = vmatpush1.bf16.msra.mxu0 %v429
        %6082 = vmatprep.subr.bf16.mxu0 0
        %6083 = vmatpush1.bf16.msra.mxu0 0
        %6084 = vmatprep.subr.bf16.mxu0 0
        %6085 = vmatpush1.bf16.msra.mxu0 0
        %6086 = vmatprep.subr.bf16.mxu0 0
        %6087 = vmatpush1.bf16.msra.mxu0 0
        %6088 = vmatprep.subr.bf16.mxu0 0
        %6089 = vmatpush1.bf16.msra.mxu0 0
        %6090 = vmatprep.subr.bf16.mxu0 0
        %6091 = vmatpush1.bf16.msra.mxu0 0
        %6092 = vmatprep.subr.bf16.mxu0 0
        %6093 = vmatpush1.bf16.msra.mxu0 0
        %6094 = vmatprep.subr.bf16.mxu0 0
        %6095 = vmatpush1.bf16.msra.mxu0 0
        %6096 = vmatprep.subr.bf16.mxu0 0
        %6097 = vmatpush1.bf16.msra.mxu0 0
        %6098 = vmatprep.subr.bf16.mxu0 0
        %6099 = vmatpush1.bf16.msra.mxu0 0
        %6100 = vmatprep.subr.bf16.mxu0 0
        %6101 = vmatpush1.bf16.msra.mxu0 0
        %6102 = vmatprep.subr.bf16.mxu0 0
        %6103 = vmatpush1.bf16.msra.mxu0 0
        %6104 = vmatprep.subr.bf16.mxu0 0
        %6105 = vmatpush1.bf16.msra.mxu0 0
        %6106 = vmatprep.mubr.bf16.mxu0 0
        %6107 = vmatmul.mubr.bf16.gmra.mrb[0].mxu0 %v6072
        %v6108 = vpop.f32.mrb[0].mxu0
        %v6109 = vadd.f32 0.0, %v6108
        %v6110 = vpop.f32.mrb[0].mxu0
        %v6111 = vpop.f32.mrb[0].mxu0
        %v6112 = vpop.f32.mrb[0].mxu0
        %6113 = vdwg.mxu0
        %v6114 = vmul.f32 %v6109, 0.015625
        %s6115 = scalar_lea.vmem %s269, 8 [#allocation8]
        %6116 = vst [vmem:[%s6115] sm:$0xff] %v6114
        %v6118 = vsel %vm6022, %v6021, 0
        %6120 = vmatprep.subr.bf16.mxu0 0
        %6121 = vmatpush1.bf16.msra.mxu0 %v430
        %6122 = vmatprep.subr.bf16.mxu0 0
        %6123 = vmatpush1.bf16.msra.mxu0 %v431
        %6124 = vmatprep.subr.bf16.mxu0 0
        %6125 = vmatpush1.bf16.msra.mxu0 %v432
        %6126 = vmatprep.subr.bf16.mxu0 0
        %6127 = vmatpush1.bf16.msra.mxu0 %v433
        %6128 = vmatprep.subr.bf16.mxu0 0
        %6129 = vmatpush1.bf16.msra.mxu0 0
        %6130 = vmatprep.subr.bf16.mxu0 0
        %6131 = vmatpush1.bf16.msra.mxu0 0
        %6132 = vmatprep.subr.bf16.mxu0 0
        %6133 = vmatpush1.bf16.msra.mxu0 0
        %6134 = vmatprep.subr.bf16.mxu0 0
        %6135 = vmatpush1.bf16.msra.mxu0 0
        %6136 = vmatprep.subr.bf16.mxu0 0
        %6137 = vmatpush1.bf16.msra.mxu0 0
        %6138 = vmatprep.subr.bf16.mxu0 0
        %6139 = vmatpush1.bf16.msra.mxu0 0
        %6140 = vmatprep.subr.bf16.mxu0 0
        %6141 = vmatpush1.bf16.msra.mxu0 0
        %6142 = vmatprep.subr.bf16.mxu0 0
        %6143 = vmatpush1.bf16.msra.mxu0 0
        %6144 = vmatprep.subr.bf16.mxu0 0
        %6145 = vmatpush1.bf16.msra.mxu0 0
        %6146 = vmatprep.subr.bf16.mxu0 0
        %6147 = vmatpush1.bf16.msra.mxu0 0
        %6148 = vmatprep.subr.bf16.mxu0 0
        %6149 = vmatpush1.bf16.msra.mxu0 0
        %6150 = vmatprep.subr.bf16.mxu0 0
        %6151 = vmatpush1.bf16.msra.mxu0 0
        %6152 = vmatprep.mubr.bf16.mxu0 0
        %6153 = vmatmul.mubr.bf16.gmra.mrb[0].mxu0 %v6118
        %v6154 = vpop.f32.mrb[0].mxu0
        %v6155 = vadd.f32 0.0, %v6154
        %v6156 = vpop.f32.mrb[0].mxu0
        %v6157 = vpop.f32.mrb[0].mxu0
        %v6158 = vpop.f32.mrb[0].mxu0
        %6159 = vdwg.mxu0
        %v6160 = vmul.f32 %v6155, 0.015625
        %s6161 = scalar_lea.vmem %s269, 16 [#allocation8]
        %6162 = vst [vmem:[%s6161] sm:$0xff] %v6160
        %6164 = vrot.lane.b32.xlu0 %v6021, 64
        %v6165 = vpop.permute.xlu0 %6164
        %v6167 = vsel %vm6022, %v6165, 0
        %6169 = vmatprep.subr.bf16.mxu0 0
        %6170 = vmatpush1.bf16.msra.mxu0 %v434
        %6171 = vmatprep.subr.bf16.mxu0 0
        %6172 = vmatpush1.bf16.msra.mxu0 %v435
        %6173 = vmatprep.subr.bf16.mxu0 0
        %6174 = vmatpush1.bf16.msra.mxu0 %v436
        %6175 = vmatprep.subr.bf16.mxu0 0
        %6176 = vmatpush1.bf16.msra.mxu0 %v437
        %6177 = vmatprep.subr.bf16.mxu0 0
        %6178 = vmatpush1.bf16.msra.mxu0 0
        %6179 = vmatprep.subr.bf16.mxu0 0
        %6180 = vmatpush1.bf16.msra.mxu0 0
        %6181 = vmatprep.subr.bf16.mxu0 0
        %6182 = vmatpush1.bf16.msra.mxu0 0
        %6183 = vmatprep.subr.bf16.mxu0 0
        %6184 = vmatpush1.bf16.msra.mxu0 0
        %6185 = vmatprep.subr.bf16.mxu0 0
        %6186 = vmatpush1.bf16.msra.mxu0 0
        %6187 = vmatprep.subr.bf16.mxu0 0
        %6188 = vmatpush1.bf16.msra.mxu0 0
        %6189 = vmatprep.subr.bf16.mxu0 0
        %6190 = vmatpush1.bf16.msra.mxu0 0
        %6191 = vmatprep.subr.bf16.mxu0 0
        %6192 = vmatpush1.bf16.msra.mxu0 0
        %6193 = vmatprep.subr.bf16.mxu0 0
        %6194 = vmatpush1.bf16.msra.mxu0 0
        %6195 = vmatprep.subr.bf16.mxu0 0
        %6196 = vmatpush1.bf16.msra.mxu0 0
        %6197 = vmatprep.subr.bf16.mxu0 0
        %6198 = vmatpush1.bf16.msra.mxu0 0
        %6199 = vmatprep.subr.bf16.mxu0 0
        %6200 = vmatpush1.bf16.msra.mxu0 0
        %6201 = vmatprep.mubr.bf16.mxu0 0
        %6202 = vmatmul.mubr.bf16.gmra.mrb[0].mxu0 %v6167
        %v6203 = vpop.f32.mrb[0].mxu0
        %v6204 = vadd.f32 0.0, %v6203
        %v6205 = vpop.f32.mrb[0].mxu0
        %v6206 = vpop.f32.mrb[0].mxu0
        %v6207 = vpop.f32.mrb[0].mxu0
        %6208 = vdwg.mxu0
        %v6209 = vmul.f32 %v6204, 0.015625
        %s6210 = scalar_lea.vmem %s269, 24 [#allocation8]
        %6211 = vst [vmem:[%s6210] sm:$0xff] %v6209
        %s6212 = sand.u32 %s141, 1
        %s6213 = scalar_lea.sflag [#allocation4], %s6212
        %s6214 = sand.u32 %s141, 1
        %s6215 = smul.addr %s6214, 32
        %s6216 = scalar_lea.vmem [#allocation8], %s6215
        // Predicated region
        $region53: #{tpu_custom_call.1} parent=39 // pred_check
          %p6217 = pneg %p151
        $region54: #{tpu_custom_call.1} parent=39 // pred_check_branch
          %6219 = sbr.rel (%p6217) target = $region56
        $region55: #{tpu_custom_call.1} parent=39 // pred_region
          %s6220 = smul.u32 4, %s23
          %s6222 = ssub.s32 512, 512
          %6223 = vsyncadd %s6213, %s6222
          %s6224 = smul.addr %s6220, 128
          %s6225 = scalar_lea.hbm %s5, %s6224
          %s6226 = sshll.u32 %s6216, 4
          %s6227 = int_to_ptr.vmem [resolvable:$true] %s6226
          %6232 = dma.vmem_to_hbm [thread:$0]  %s6227, 512, %s6225, %s6213, 128, 128, 8
        $region56: #{tpu_custom_call.1} parent=39 // pred_fallthru
          _
      $region40: #{tpu_custom_call.1} parent=5 // pred_fallthru
        _
      %p6233 = scmp.le.s32.totalorder 2, %s18
      // Predicated region
      $region57: #{tpu_custom_call.1} parent=5 // pred_check
        %p6234 = pneg %p6233
      $region58: #{tpu_custom_call.1} parent=5 // pred_check_branch
        %6236 = sbr.rel (%p6234) target = $region60
      $region59: #{tpu_custom_call.1} parent=5 // pred_region
        %s6237 = ssub.s32 %s18, 2
        // Predicated region
        $region61: #{tpu_custom_call.1} parent=59 // pred_check
          %p6238 = pneg %p157
        $region62: #{tpu_custom_call.1} parent=59 // pred_check_branch
          %6240 = sbr.rel (%p6238) target = $region64
        $region63: #{tpu_custom_call.1} parent=59 // pred_region
          %s6241 = sand.u32 %s142, 1
          %s6242 = scalar_lea.sflag [#allocation4], %s6241
          %s6243 = sand.u32 %s142, 1
          %s6244 = smul.addr %s6243, 32
          %s6245 = scalar_lea.vmem [#allocation8], %s6244
          %6246 = dma.done %s6242, 512
        $region64: #{tpu_custom_call.1} parent=59 // pred_fallthru
          _
      $region60: #{tpu_custom_call.1} parent=5 // pred_fallthru
        _
    $region6: #{tpu_custom_call.1} parent=1 // loop_footer
      %s22 = sadd.s32 1, %s18
    $region7: #{tpu_custom_call.1} parent=1 // loop_footer_branch
      %17 = sbr.rel target = $region3
    $region8: #{tpu_custom_call.1} parent=1 // loop_exit
      _
    %6247 = vsyncpa [#allocation3], 1
    %s6248 = scalar_lea.sflag [#allocation3], 1
    %6249 = vsyncpa %s6248, 1
    %6250 = vsyncpa [#allocation6], 1
    %6251 = vsyncpa [#allocation4], 1
    %s6252 = scalar_lea.sflag [#allocation4], 1
    %6253 = vsyncpa %s6252, 1

</llo_original>
